<compile_context>
chip_gen: v7x
topology: tpu7x:2x2x1
jax: 0.10.0
libtpu: 0.0.40
codegen_flags: <defaults>
</compile_context>

<pallas_src>
import math

import jax
import jax.numpy as jnp
import numpy as np
from jax.experimental import pallas as pl
from jax.experimental.pallas import tpu as pltpu

# ---- small BERT config (synthetic) -----------------------------------------
B, S, H = 2, 8, 32          # batch, seq, hidden
NH = 4                      # attention heads
HD = H // NH                # head dim
I = 64                      # intermediate (FFN) size
L = 2                       # encoder layers
V = 100                     # vocab size
EPS = 1e-12                 # BERT LayerNorm eps


def _layer_norm(x, gamma, beta):
    mu = jnp.mean(x, axis=-1, keepdims=True)
    var = jnp.mean((x - mu) ** 2, axis=-1, keepdims=True)
    inv = jax.lax.rsqrt(var + EPS)
    return (x - mu) * inv * gamma + beta


def _gelu(x):
    # TODO(synk): HF BERT default hidden_act is exact erf-GELU; tanh approximation used here.
    c = math.sqrt(2.0 / math.pi)
    return 0.5 * x * (1.0 + jnp.tanh(c * (x + 0.044715 * x * x * x)))


def bert_cls_kernel(emb_ref, eg_ref, eb_ref,
                    wqkv_ref, bqkv_ref, wo_ref, bo_ref, g1_ref, b1_ref,
                    w1_ref, bff1_ref, w2_ref, bff2_ref, g2_ref, b2_ref,
                    out_ref):
    # Residual stream kept flat as (B*S, H) f32 for all dense ops.
    h = _layer_norm(emb_ref[...].astype(jnp.float32).reshape(B * S, H),
                    eg_ref[...], eb_ref[...])

    for l in range(L):  # static unroll; all L layers' weights already in VMEM
        # --- fused QKV projection: single (B*S,H) @ (H,3H) MXU matmul -------
        # Columns are pre-permuted head-major: head n -> [q_n | k_n | v_n],
        # and 1/sqrt(HD) is already folded into the Q columns/bias.
        qkv = jnp.dot(h.astype(jnp.bfloat16), wqkv_ref[l],
                      preferred_element_type=jnp.float32) + bqkv_ref[l]

        # Single NH-way split of the fused tensor (instead of 3 separate ones):
        # (B*S, 3H) -> (NH*B, S, 3*HD), head-major batch.
        qkvh = jnp.concatenate(
            [qkv[:, n * 3 * HD:(n + 1) * 3 * HD].astype(jnp.bfloat16)
                 .reshape(B, S, 3 * HD)
             for n in range(NH)], axis=0)
        qh = qkvh[:, :, 0:HD]
        kh = qkvh[:, :, HD:2 * HD]
        vh = qkvh[:, :, 2 * HD:3 * HD]

        # --- attention: two batched einsums over NH*B head-batches ----------
        sc = jnp.einsum('bqd,bkd->bqk', qh, kh,
                        preferred_element_type=jnp.float32)
        # TODO(synk): no attention_mask applied (module forwards only input_ids,
        # so HF's all-ones mask is an additive no-op; padded inputs would differ).
        sc = sc - jnp.max(sc, axis=-1, keepdims=True)
        p = jnp.exp(sc)
        p = p * pl.reciprocal(jnp.sum(p, axis=-1, keepdims=True), approx=True)
        ctx = jnp.einsum('bqk,bkd->bqd', p.astype(jnp.bfloat16), vh,
                         preferred_element_type=jnp.float32)       # (NH*B,S,HD)
        # heads -> lanes: head blocks back onto the hidden axis (cheap leading
        # slices + one lane concat), matching wo's head-major row order.
        ctx = jnp.concatenate([ctx[n * B:(n + 1) * B] for n in range(NH)],
                              axis=-1).reshape(B * S, H)

        attn = jnp.dot(ctx.astype(jnp.bfloat16), wo_ref[l],
                       preferred_element_type=jnp.float32) + bo_ref[l]
        h = _layer_norm(h + attn, g1_ref[l], b1_ref[l])

        # --- feed forward ----------------------------------------------------
        ff = _gelu(jnp.dot(h.astype(jnp.bfloat16), w1_ref[l],
                           preferred_element_type=jnp.float32) + bff1_ref[l])
        ff = jnp.dot(ff.astype(jnp.bfloat16), w2_ref[l],
                     preferred_element_type=jnp.float32) + bff2_ref[l]
        h = _layer_norm(h + ff, g2_ref[l], b2_ref[l])

    # Lane-dense 2-D CLS output: only (B, H) leaves the kernel.
    out_ref[...] = h.reshape(B, S, H)[:, 0, :].astype(out_ref.dtype)


def prepare_params(params):
    """One-time model preprocessing (hoisted out of the per-call path).

    Fuses Q/K/V into a single head-grouped (L, H, 3H) bf16 weight, folds the
    1/sqrt(HD) attention scale into the Q columns/bias, and casts all matmul
    weights to bf16.  Run once at init; the forward path only does the
    embedding gather + one pallas_call.
    """
    assert params['emb_ln_g'].shape == (1, H) and params['emb_ln_b'].shape == (1, H)
    assert params['bq'].shape == (L, 1, H) and params['ln1_g'].shape == (L, 1, H)

    bf16 = jnp.bfloat16
    scale = 1.0 / math.sqrt(HD)
    wq = params['wq'] * scale            # fold attention scale into Q proj
    bq = params['bq'] * scale

    # Head-grouped column order: for head n, columns [q_n | k_n | v_n].
    wqkv_parts, bqkv_parts = [], []
    for n in range(NH):
        sl = slice(n * HD, (n + 1) * HD)
        wqkv_parts += [wq[..., sl], params['wk'][..., sl], params['wv'][..., sl]]
        bqkv_parts += [bq[..., sl], params['bk'][..., sl], params['bv'][..., sl]]
    wqkv = jnp.concatenate(wqkv_parts, axis=-1).astype(bf16)   # (L, H, 3H)
    bqkv = jnp.concatenate(bqkv_parts, axis=-1)                # (L, 1, 3H) f32

    return {
        'word_emb': params['word_emb'],
        'pos_emb': params['pos_emb'],
        'type_emb': params['type_emb'],
        'emb_ln_g': params['emb_ln_g'], 'emb_ln_b': params['emb_ln_b'],
        'wqkv': wqkv, 'bqkv': bqkv,
        'wo': params['wo'].astype(bf16), 'bo': params['bo'],
        'ln1_g': params['ln1_g'], 'ln1_b': params['ln1_b'],
        'w1': params['w1'].astype(bf16), 'b1': params['b1'],
        'w2': params['w2'].astype(bf16), 'b2': params['b2'],
        'ln2_g': params['ln2_g'], 'ln2_b': params['ln2_b'],
    }


def bert_cls_forward(input_ids, prep):
    """Returns last_hidden_state[:, 0]  (shape (B, H))."""
    # Embedding gather (word + position + token_type=0) stays in JAX glue.
    emb = (prep['word_emb'][input_ids]
           + prep['pos_emb'][None, :S, :]
           + prep['type_emb'][0][None, None, :]).astype(jnp.float32)

    args = (emb,
            prep['emb_ln_g'], prep['emb_ln_b'],
            prep['wqkv'], prep['bqkv'],
            prep['wo'], prep['bo'],
            prep['ln1_g'], prep['ln1_b'],
            prep['w1'], prep['b1'],
            prep['w2'], prep['b2'],
            prep['ln2_g'], prep['ln2_b'])

    return pl.pallas_call(
        bert_cls_kernel,
        out_shape=jax.ShapeDtypeStruct((B, H), jnp.float32),
        # Single invocation (no grid): every operand is a full-array VMEM block.
        in_specs=[pl.BlockSpec(memory_space=pltpu.MemorySpace.VMEM)
                  for _ in args],
        out_specs=pl.BlockSpec(memory_space=pltpu.MemorySpace.VMEM),
    )(*args)


# ---- pure JAX f32 reference (same math) for a sanity check -------------------
def bert_cls_reference(input_ids, params):
    h = (params['word_emb'][input_ids]
         + params['pos_emb'][None, :S, :]
         + params['type_emb'][0][None, None, :]).astype(jnp.float32)
    h = _layer_norm(h, params['emb_ln_g'], params['emb_ln_b'])
    for l in range(L):
        q = jnp.einsum('bsh,hd->bsd', h, params['wq'][l]) + params['bq'][l]
        k = jnp.einsum('bsh,hd->bsd', h, params['wk'][l]) + params['bk'][l]
        v = jnp.einsum('bsh,hd->bsd', h, params['wv'][l]) + params['bv'][l]
        qh = q.reshape(B, S, NH, HD); kh = k.reshape(B, S, NH, HD)
        vh = v.reshape(B, S, NH, HD)
        sc = jnp.einsum('bqnd,bknd->bnqk', qh, kh) / math.sqrt(HD)
        p = jax.nn.softmax(sc, axis=-1)
        ctx = jnp.einsum('bnqk,bknd->bqnd', p, vh).reshape(B, S, H)
        attn = jnp.einsum('bsh,hd->bsd', ctx, params['wo'][l]) + params['bo'][l]
        h = _layer_norm(h + attn, params['ln1_g'][l], params['ln1_b'][l])
        ff = _gelu(jnp.einsum('bsh,hd->bsd', h, params['w1'][l]) + params['b1'][l])
        ff = jnp.einsum('bsh,hd->bsd', ff, params['w2'][l]) + params['b2'][l]
        h = _layer_norm(h + ff, params['ln2_g'][l], params['ln2_b'][l])
    return h[:, 0]


def init_params(key):
    std = 0.02
    ks = jax.random.split(key, 8)
    nrm = lambda k, shp: (std * jax.random.normal(k, shp)).astype(jnp.float32)
    z = lambda shp: jnp.zeros(shp, jnp.float32)
    o = lambda shp: jnp.ones(shp, jnp.float32)
    return {
        'word_emb': nrm(ks[0], (V, H)),
        'pos_emb':  nrm(ks[1], (S, H)),
        'type_emb': nrm(ks[2], (2, H)),
        'emb_ln_g': o((1, H)), 'emb_ln_b': z((1, H)),
        'wq': nrm(ks[3], (L, H, H)), 'bq': z((L, 1, H)),
        'wk': nrm(ks[4], (L, H, H)), 'bk': z((L, 1, H)),
        'wv': nrm(ks[5], (L, H, H)), 'bv': z((L, 1, H)),
        'wo': nrm(ks[6], (L, H, H)), 'bo': z((L, 1, H)),
        'ln1_g': o((L, 1, H)), 'ln1_b': z((L, 1, H)),
        'w1': nrm(ks[7], (L, H, I)), 'b1': z((L, 1, I)),
        'w2': nrm(jax.random.fold_in(key, 99), (L, I, H)), 'b2': z((L, 1, H)),
        'ln2_g': o((L, 1, H)), 'ln2_b': z((L, 1, H)),
    }


if __name__ == "__main__":
    key = jax.random.PRNGKey(0)
    params = init_params(key)
    input_ids = jax.random.randint(jax.random.fold_in(key, 1), (B, S), 0, V,
                                   dtype=jnp.int32)

    # One-time preprocessing (QKV fuse + scale fold + bf16 casts) -- not per call.
    prep = jax.tree.map(jax.block_until_ready, prepare_params(params))

    fwd = jax.jit(bert_cls_forward)
    out = jax.block_until_ready(fwd(input_ids, prep))
    assert out.shape == (B, H), out.shape

    ref = jax.block_until_ready(bert_cls_reference(input_ids, params))
    # Tolerance covers bf16 matmul inputs + approx reciprocal vs. the f32 reference.
    np.testing.assert_allclose(np.asarray(out), np.asarray(ref),
                               rtol=2e-2, atol=2e-2)
    print("KERNEL_OK")
</pallas_src>

<mosaic_0001>
module attributes {stable_mosaic.version = 11 : i64} {
  func.func @bert_cls_kernel(%arg0: memref<2x8x32xf32, #tpu.memory_space<vmem>>, %arg1: memref<1x32xf32, #tpu.memory_space<vmem>>, %arg2: memref<1x32xf32, #tpu.memory_space<vmem>>, %arg3: memref<2x32x96xbf16, #tpu.memory_space<vmem>>, %arg4: memref<2x1x96xf32, #tpu.memory_space<vmem>>, %arg5: memref<2x32x32xbf16, #tpu.memory_space<vmem>>, %arg6: memref<2x1x32xf32, #tpu.memory_space<vmem>>, %arg7: memref<2x1x32xf32, #tpu.memory_space<vmem>>, %arg8: memref<2x1x32xf32, #tpu.memory_space<vmem>>, %arg9: memref<2x32x64xbf16, #tpu.memory_space<vmem>>, %arg10: memref<2x1x64xf32, #tpu.memory_space<vmem>>, %arg11: memref<2x64x32xbf16, #tpu.memory_space<vmem>>, %arg12: memref<2x1x32xf32, #tpu.memory_space<vmem>>, %arg13: memref<2x1x32xf32, #tpu.memory_space<vmem>>, %arg14: memref<2x1x32xf32, #tpu.memory_space<vmem>>, %arg15: memref<2x32xf32, #tpu.memory_space<vmem>>) attributes {dimension_semantics = [], scalar_prefetch = 0 : i64, scratch_operands = 0 : i64, tpu.core_type = #tpu.core_type<tc>} {
    %c0 = arith.constant 0 : index
    %c0_0 = arith.constant 0 : index
    %c0_1 = arith.constant 0 : index
    %0 = vector.load %arg0[%c0, %c0_0, %c0_1] : memref<2x8x32xf32, #tpu.memory_space<vmem>>, vector<2x8x32xf32>
    %1 = vector.shape_cast %0 : vector<2x8x32xf32> to vector<16x32xf32>
    %c0_2 = arith.constant 0 : index
    %c0_3 = arith.constant 0 : index
    %2 = vector.load %arg1[%c0_2, %c0_3] : memref<1x32xf32, #tpu.memory_space<vmem>>, vector<1x32xf32>
    %c0_4 = arith.constant 0 : index
    %c0_5 = arith.constant 0 : index
    %3 = vector.load %arg2[%c0_4, %c0_5] : memref<1x32xf32, #tpu.memory_space<vmem>>, vector<1x32xf32>
    %cst = arith.constant dense<0.000000e+00> : vector<16xf32>
    %4 = vector.multi_reduction <add>, %1, %cst [1] : vector<16x32xf32> to vector<16xf32>
    %5 = vector.shape_cast %4 : vector<16xf32> to vector<16x1xf32>
    %cst_6 = arith.constant 3.200000e+01 : f32
    %6 = vector.broadcast %cst_6 : f32 to vector<16x1xf32>
    %7 = arith.divf %5, %6 : vector<16x1xf32>
    %8 = vector.broadcast %7 : vector<16x1xf32> to vector<16x32xf32>
    %9 = arith.subf %1, %8 : vector<16x32xf32>
    %10 = arith.mulf %9, %9 : vector<16x32xf32>
    %cst_7 = arith.constant dense<0.000000e+00> : vector<16xf32>
    %11 = vector.multi_reduction <add>, %10, %cst_7 [1] : vector<16x32xf32> to vector<16xf32>
    %12 = vector.shape_cast %11 : vector<16xf32> to vector<16x1xf32>
    %cst_8 = arith.constant 3.200000e+01 : f32
    %13 = vector.broadcast %cst_8 : f32 to vector<16x1xf32>
    %14 = arith.divf %12, %13 : vector<16x1xf32>
    %cst_9 = arith.constant 9.99999996E-13 : f32
    %15 = vector.broadcast %cst_9 : f32 to vector<16x1xf32>
    %16 = arith.addf %14, %15 : vector<16x1xf32>
    %17 = math.rsqrt %16 : vector<16x1xf32>
    %18 = vector.broadcast %7 : vector<16x1xf32> to vector<16x32xf32>
    %19 = arith.subf %1, %18 : vector<16x32xf32>
    %20 = vector.broadcast %17 : vector<16x1xf32> to vector<16x32xf32>
    %21 = arith.mulf %19, %20 : vector<16x32xf32>
    %22 = vector.broadcast %2 : vector<1x32xf32> to vector<16x32xf32>
    %23 = arith.mulf %21, %22 : vector<16x32xf32>
    %24 = vector.broadcast %3 : vector<1x32xf32> to vector<16x32xf32>
    %25 = arith.addf %23, %24 : vector<16x32xf32>
    %26 = arith.truncf %25 : vector<16x32xf32> to vector<16x32xbf16>
    %c0_10 = arith.constant 0 : index
    %c0_11 = arith.constant 0 : index
    %c0_12 = arith.constant 0 : index
    %27 = vector.load %arg3[%c0_10, %c0_11, %c0_12] : memref<2x32x96xbf16, #tpu.memory_space<vmem>>, vector<1x32x96xbf16>
    %28 = vector.shape_cast %27 : vector<1x32x96xbf16> to vector<32x96xbf16>
    %cst_13 = arith.constant dense<0.000000e+00> : vector<16x96xf32>
    %29 = tpu.matmul %26, %28, %cst_13 {dimension_numbers = #tpu.dot_dimension_numbers<[1], [0], [0], [1], [0, 0, 1, 1], [], []>} : vector<16x32xbf16>, vector<32x96xbf16>, vector<16x96xf32> -> vector<16x96xf32>
    %c0_14 = arith.constant 0 : index
    %c0_15 = arith.constant 0 : index
    %c0_16 = arith.constant 0 : index
    %30 = vector.load %arg4[%c0_14, %c0_15, %c0_16] : memref<2x1x96xf32, #tpu.memory_space<vmem>>, vector<1x1x96xf32>
    %31 = vector.shape_cast %30 : vector<1x1x96xf32> to vector<1x96xf32>
    %32 = vector.broadcast %31 : vector<1x96xf32> to vector<16x96xf32>
    %33 = arith.addf %29, %32 : vector<16x96xf32>
    %34 = vector.extract_strided_slice %33 {offsets = [0, 0], sizes = [16, 24], strides = [1, 1]} : vector<16x96xf32> to vector<16x24xf32>
    %35 = arith.truncf %34 : vector<16x24xf32> to vector<16x24xbf16>
    %36 = vector.shape_cast %35 : vector<16x24xbf16> to vector<2x8x24xbf16>
    %37 = vector.extract_strided_slice %33 {offsets = [0, 24], sizes = [16, 24], strides = [1, 1]} : vector<16x96xf32> to vector<16x24xf32>
    %38 = arith.truncf %37 : vector<16x24xf32> to vector<16x24xbf16>
    %39 = vector.shape_cast %38 : vector<16x24xbf16> to vector<2x8x24xbf16>
    %40 = vector.extract_strided_slice %33 {offsets = [0, 48], sizes = [16, 24], strides = [1, 1]} : vector<16x96xf32> to vector<16x24xf32>
    %41 = arith.truncf %40 : vector<16x24xf32> to vector<16x24xbf16>
    %42 = vector.shape_cast %41 : vector<16x24xbf16> to vector<2x8x24xbf16>
    %43 = vector.extract_strided_slice %33 {offsets = [0, 72], sizes = [16, 24], strides = [1, 1]} : vector<16x96xf32> to vector<16x24xf32>
    %44 = arith.truncf %43 : vector<16x24xf32> to vector<16x24xbf16>
    %45 = vector.shape_cast %44 : vector<16x24xbf16> to vector<2x8x24xbf16>
    %46 = tpu.concatenate %36, %39, %42, %45 in 0 : vector<2x8x24xbf16>, vector<2x8x24xbf16>, vector<2x8x24xbf16>, vector<2x8x24xbf16> -> vector<8x8x24xbf16>
    %47 = vector.extract_strided_slice %46 {offsets = [0, 0, 0], sizes = [8, 8, 8], strides = [1, 1, 1]} : vector<8x8x24xbf16> to vector<8x8x8xbf16>
    %48 = vector.extract_strided_slice %46 {offsets = [0, 0, 8], sizes = [8, 8, 8], strides = [1, 1, 1]} : vector<8x8x24xbf16> to vector<8x8x8xbf16>
    %49 = vector.extract_strided_slice %46 {offsets = [0, 0, 16], sizes = [8, 8, 8], strides = [1, 1, 1]} : vector<8x8x24xbf16> to vector<8x8x8xbf16>
    "tpu.trace_start"() <{level = 10 : i32, message = "bqd,bkd->bqk"}> : () -> ()
    %cst_17 = arith.constant dense<0.000000e+00> : vector<8x8x8xf32>
    %50 = tpu.matmul %47, %48, %cst_17 {dimension_numbers = #tpu.dot_dimension_numbers<[2], [2], [1], [1], [0, 0, 0, 1, 1, 1], [0], [0]>} : vector<8x8x8xbf16>, vector<8x8x8xbf16>, vector<8x8x8xf32> -> vector<8x8x8xf32>
    "tpu.trace_stop"() : () -> ()
    %cst_18 = arith.constant dense<0xFF800000> : vector<8x8xf32>
    %51 = vector.multi_reduction <maximumf>, %50, %cst_18 [2] : vector<8x8x8xf32> to vector<8x8xf32>
    %52 = vector.shape_cast %51 : vector<8x8xf32> to vector<8x8x1xf32>
    %53 = vector.broadcast %52 : vector<8x8x1xf32> to vector<8x8x8xf32>
    %54 = arith.subf %50, %53 : vector<8x8x8xf32>
    %55 = math.exp %54 : vector<8x8x8xf32>
    %cst_19 = arith.constant dense<0.000000e+00> : vector<8x8xf32>
    %56 = vector.multi_reduction <add>, %55, %cst_19 [2] : vector<8x8x8xf32> to vector<8x8xf32>
    %57 = vector.shape_cast %56 : vector<8x8xf32> to vector<8x8x1xf32>
    %58 = tpu.reciprocal %57 {approx = true} : vector<8x8x1xf32> -> vector<8x8x1xf32>
    %59 = vector.broadcast %58 : vector<8x8x1xf32> to vector<8x8x8xf32>
    %60 = arith.mulf %55, %59 : vector<8x8x8xf32>
    %61 = arith.truncf %60 : vector<8x8x8xf32> to vector<8x8x8xbf16>
    "tpu.trace_start"() <{level = 10 : i32, message = "bqk,bkd->bqd"}> : () -> ()
    %cst_20 = arith.constant dense<0.000000e+00> : vector<8x8x8xf32>
    %62 = tpu.matmul %61, %49, %cst_20 {dimension_numbers = #tpu.dot_dimension_numbers<[2], [1], [1], [2], [0, 0, 0, 1, 1, 2], [0], [0]>} : vector<8x8x8xbf16>, vector<8x8x8xbf16>, vector<8x8x8xf32> -> vector<8x8x8xf32>
    "tpu.trace_stop"() : () -> ()
    %63 = vector.extract_strided_slice %62 {offsets = [0, 0, 0], sizes = [2, 8, 8], strides = [1, 1, 1]} : vector<8x8x8xf32> to vector<2x8x8xf32>
    %64 = vector.extract_strided_slice %62 {offsets = [2, 0, 0], sizes = [2, 8, 8], strides = [1, 1, 1]} : vector<8x8x8xf32> to vector<2x8x8xf32>
    %65 = vector.extract_strided_slice %62 {offsets = [4, 0, 0], sizes = [2, 8, 8], strides = [1, 1, 1]} : vector<8x8x8xf32> to vector<2x8x8xf32>
    %66 = vector.extract_strided_slice %62 {offsets = [6, 0, 0], sizes = [2, 8, 8], strides = [1, 1, 1]} : vector<8x8x8xf32> to vector<2x8x8xf32>
    %67 = tpu.concatenate %63, %64, %65, %66 in 2 : vector<2x8x8xf32>, vector<2x8x8xf32>, vector<2x8x8xf32>, vector<2x8x8xf32> -> vector<2x8x32xf32>
    %68 = vector.shape_cast %67 : vector<2x8x32xf32> to vector<16x32xf32>
    %69 = arith.truncf %68 : vector<16x32xf32> to vector<16x32xbf16>
    %c0_21 = arith.constant 0 : index
    %c0_22 = arith.constant 0 : index
    %c0_23 = arith.constant 0 : index
    %70 = vector.load %arg5[%c0_21, %c0_22, %c0_23] : memref<2x32x32xbf16, #tpu.memory_space<vmem>>, vector<1x32x32xbf16>
    %71 = vector.shape_cast %70 : vector<1x32x32xbf16> to vector<32x32xbf16>
    %cst_24 = arith.constant dense<0.000000e+00> : vector<16x32xf32>
    %72 = tpu.matmul %69, %71, %cst_24 {dimension_numbers = #tpu.dot_dimension_numbers<[1], [0], [0], [1], [0, 0, 1, 1], [], []>} : vector<16x32xbf16>, vector<32x32xbf16>, vector<16x32xf32> -> vector<16x32xf32>
    %c0_25 = arith.constant 0 : index
    %c0_26 = arith.constant 0 : index
    %c0_27 = arith.constant 0 : index
    %73 = vector.load %arg6[%c0_25, %c0_26, %c0_27] : memref<2x1x32xf32, #tpu.memory_space<vmem>>, vector<1x1x32xf32>
    %74 = vector.shape_cast %73 : vector<1x1x32xf32> to vector<1x32xf32>
    %75 = vector.broadcast %74 : vector<1x32xf32> to vector<16x32xf32>
    %76 = arith.addf %72, %75 : vector<16x32xf32>
    %77 = arith.addf %25, %76 : vector<16x32xf32>
    %c0_28 = arith.constant 0 : index
    %c0_29 = arith.constant 0 : index
    %c0_30 = arith.constant 0 : index
    %78 = vector.load %arg7[%c0_28, %c0_29, %c0_30] : memref<2x1x32xf32, #tpu.memory_space<vmem>>, vector<1x1x32xf32>
    %79 = vector.shape_cast %78 : vector<1x1x32xf32> to vector<1x32xf32>
    %c0_31 = arith.constant 0 : index
    %c0_32 = arith.constant 0 : index
    %c0_33 = arith.constant 0 : index
    %80 = vector.load %arg8[%c0_31, %c0_32, %c0_33] : memref<2x1x32xf32, #tpu.memory_space<vmem>>, vector<1x1x32xf32>
    %81 = vector.shape_cast %80 : vector<1x1x32xf32> to vector<1x32xf32>
    %cst_34 = arith.constant dense<0.000000e+00> : vector<16xf32>
    %82 = vector.multi_reduction <add>, %77, %cst_34 [1] : vector<16x32xf32> to vector<16xf32>
    %83 = vector.shape_cast %82 : vector<16xf32> to vector<16x1xf32>
    %cst_35 = arith.constant 3.200000e+01 : f32
    %84 = vector.broadcast %cst_35 : f32 to vector<16x1xf32>
    %85 = arith.divf %83, %84 : vector<16x1xf32>
    %86 = vector.broadcast %85 : vector<16x1xf32> to vector<16x32xf32>
    %87 = arith.subf %77, %86 : vector<16x32xf32>
    %88 = arith.mulf %87, %87 : vector<16x32xf32>
    %cst_36 = arith.constant dense<0.000000e+00> : vector<16xf32>
    %89 = vector.multi_reduction <add>, %88, %cst_36 [1] : vector<16x32xf32> to vector<16xf32>
    %90 = vector.shape_cast %89 : vector<16xf32> to vector<16x1xf32>
    %cst_37 = arith.constant 3.200000e+01 : f32
    %91 = vector.broadcast %cst_37 : f32 to vector<16x1xf32>
    %92 = arith.divf %90, %91 : vector<16x1xf32>
    %cst_38 = arith.constant 9.99999996E-13 : f32
    %93 = vector.broadcast %cst_38 : f32 to vector<16x1xf32>
    %94 = arith.addf %92, %93 : vector<16x1xf32>
    %95 = math.rsqrt %94 : vector<16x1xf32>
    %96 = vector.broadcast %85 : vector<16x1xf32> to vector<16x32xf32>
    %97 = arith.subf %77, %96 : vector<16x32xf32>
    %98 = vector.broadcast %95 : vector<16x1xf32> to vector<16x32xf32>
    %99 = arith.mulf %97, %98 : vector<16x32xf32>
    %100 = vector.broadcast %79 : vector<1x32xf32> to vector<16x32xf32>
    %101 = arith.mulf %99, %100 : vector<16x32xf32>
    %102 = vector.broadcast %81 : vector<1x32xf32> to vector<16x32xf32>
    %103 = arith.addf %101, %102 : vector<16x32xf32>
    %104 = arith.truncf %103 : vector<16x32xf32> to vector<16x32xbf16>
    %c0_39 = arith.constant 0 : index
    %c0_40 = arith.constant 0 : index
    %c0_41 = arith.constant 0 : index
    %105 = vector.load %arg9[%c0_39, %c0_40, %c0_41] : memref<2x32x64xbf16, #tpu.memory_space<vmem>>, vector<1x32x64xbf16>
    %106 = vector.shape_cast %105 : vector<1x32x64xbf16> to vector<32x64xbf16>
    %cst_42 = arith.constant dense<0.000000e+00> : vector<16x64xf32>
    %107 = tpu.matmul %104, %106, %cst_42 {dimension_numbers = #tpu.dot_dimension_numbers<[1], [0], [0], [1], [0, 0, 1, 1], [], []>} : vector<16x32xbf16>, vector<32x64xbf16>, vector<16x64xf32> -> vector<16x64xf32>
    %c0_43 = arith.constant 0 : index
    %c0_44 = arith.constant 0 : index
    %c0_45 = arith.constant 0 : index
    %108 = vector.load %arg10[%c0_43, %c0_44, %c0_45] : memref<2x1x64xf32, #tpu.memory_space<vmem>>, vector<1x1x64xf32>
    %109 = vector.shape_cast %108 : vector<1x1x64xf32> to vector<1x64xf32>
    %110 = vector.broadcast %109 : vector<1x64xf32> to vector<16x64xf32>
    %111 = arith.addf %107, %110 : vector<16x64xf32>
    %cst_46 = arith.constant 5.000000e-01 : f32
    %112 = vector.broadcast %cst_46 : f32 to vector<16x64xf32>
    %113 = arith.mulf %112, %111 : vector<16x64xf32>
    %cst_47 = arith.constant 4.471500e-02 : f32
    %114 = vector.broadcast %cst_47 : f32 to vector<16x64xf32>
    %115 = arith.mulf %114, %111 : vector<16x64xf32>
    %116 = arith.mulf %115, %111 : vector<16x64xf32>
    %117 = arith.mulf %116, %111 : vector<16x64xf32>
    %118 = arith.addf %111, %117 : vector<16x64xf32>
    %cst_48 = arith.constant 0.797884583 : f32
    %119 = vector.broadcast %cst_48 : f32 to vector<16x64xf32>
    %120 = arith.mulf %119, %118 : vector<16x64xf32>
    %121 = math.tanh %120 : vector<16x64xf32>
    %cst_49 = arith.constant 1.000000e+00 : f32
    %122 = vector.broadcast %cst_49 : f32 to vector<16x64xf32>
    %123 = arith.addf %122, %121 : vector<16x64xf32>
    %124 = arith.mulf %113, %123 : vector<16x64xf32>
    %125 = arith.truncf %124 : vector<16x64xf32> to vector<16x64xbf16>
    %c0_50 = arith.constant 0 : index
    %c0_51 = arith.constant 0 : index
    %c0_52 = arith.constant 0 : index
    %126 = vector.load %arg11[%c0_50, %c0_51, %c0_52] : memref<2x64x32xbf16, #tpu.memory_space<vmem>>, vector<1x64x32xbf16>
    %127 = vector.shape_cast %126 : vector<1x64x32xbf16> to vector<64x32xbf16>
    %cst_53 = arith.constant dense<0.000000e+00> : vector<16x32xf32>
    %128 = tpu.matmul %125, %127, %cst_53 {dimension_numbers = #tpu.dot_dimension_numbers<[1], [0], [0], [1], [0, 0, 1, 1], [], []>} : vector<16x64xbf16>, vector<64x32xbf16>, vector<16x32xf32> -> vector<16x32xf32>
    %c0_54 = arith.constant 0 : index
    %c0_55 = arith.constant 0 : index
    %c0_56 = arith.constant 0 : index
    %129 = vector.load %arg12[%c0_54, %c0_55, %c0_56] : memref<2x1x32xf32, #tpu.memory_space<vmem>>, vector<1x1x32xf32>
    %130 = vector.shape_cast %129 : vector<1x1x32xf32> to vector<1x32xf32>
    %131 = vector.broadcast %130 : vector<1x32xf32> to vector<16x32xf32>
    %132 = arith.addf %128, %131 : vector<16x32xf32>
    %133 = arith.addf %103, %132 : vector<16x32xf32>
    %c0_57 = arith.constant 0 : index
    %c0_58 = arith.constant 0 : index
    %c0_59 = arith.constant 0 : index
    %134 = vector.load %arg13[%c0_57, %c0_58, %c0_59] : memref<2x1x32xf32, #tpu.memory_space<vmem>>, vector<1x1x32xf32>
    %135 = vector.shape_cast %134 : vector<1x1x32xf32> to vector<1x32xf32>
    %c0_60 = arith.constant 0 : index
    %c0_61 = arith.constant 0 : index
    %c0_62 = arith.constant 0 : index
    %136 = vector.load %arg14[%c0_60, %c0_61, %c0_62] : memref<2x1x32xf32, #tpu.memory_space<vmem>>, vector<1x1x32xf32>
    %137 = vector.shape_cast %136 : vector<1x1x32xf32> to vector<1x32xf32>
    %cst_63 = arith.constant dense<0.000000e+00> : vector<16xf32>
    %138 = vector.multi_reduction <add>, %133, %cst_63 [1] : vector<16x32xf32> to vector<16xf32>
    %139 = vector.shape_cast %138 : vector<16xf32> to vector<16x1xf32>
    %cst_64 = arith.constant 3.200000e+01 : f32
    %140 = vector.broadcast %cst_64 : f32 to vector<16x1xf32>
    %141 = arith.divf %139, %140 : vector<16x1xf32>
    %142 = vector.broadcast %141 : vector<16x1xf32> to vector<16x32xf32>
    %143 = arith.subf %133, %142 : vector<16x32xf32>
    %144 = arith.mulf %143, %143 : vector<16x32xf32>
    %cst_65 = arith.constant dense<0.000000e+00> : vector<16xf32>
    %145 = vector.multi_reduction <add>, %144, %cst_65 [1] : vector<16x32xf32> to vector<16xf32>
    %146 = vector.shape_cast %145 : vector<16xf32> to vector<16x1xf32>
    %cst_66 = arith.constant 3.200000e+01 : f32
    %147 = vector.broadcast %cst_66 : f32 to vector<16x1xf32>
    %148 = arith.divf %146, %147 : vector<16x1xf32>
    %cst_67 = arith.constant 9.99999996E-13 : f32
    %149 = vector.broadcast %cst_67 : f32 to vector<16x1xf32>
    %150 = arith.addf %148, %149 : vector<16x1xf32>
    %151 = math.rsqrt %150 : vector<16x1xf32>
    %152 = vector.broadcast %141 : vector<16x1xf32> to vector<16x32xf32>
    %153 = arith.subf %133, %152 : vector<16x32xf32>
    %154 = vector.broadcast %151 : vector<16x1xf32> to vector<16x32xf32>
    %155 = arith.mulf %153, %154 : vector<16x32xf32>
    %156 = vector.broadcast %135 : vector<1x32xf32> to vector<16x32xf32>
    %157 = arith.mulf %155, %156 : vector<16x32xf32>
    %158 = vector.broadcast %137 : vector<1x32xf32> to vector<16x32xf32>
    %159 = arith.addf %157, %158 : vector<16x32xf32>
    %160 = arith.truncf %159 : vector<16x32xf32> to vector<16x32xbf16>
    %c1 = arith.constant 1 : index
    %c0_68 = arith.constant 0 : index
    %c0_69 = arith.constant 0 : index
    %161 = vector.load %arg3[%c1, %c0_68, %c0_69] : memref<2x32x96xbf16, #tpu.memory_space<vmem>>, vector<1x32x96xbf16>
    %162 = vector.shape_cast %161 : vector<1x32x96xbf16> to vector<32x96xbf16>
    %cst_70 = arith.constant dense<0.000000e+00> : vector<16x96xf32>
    %163 = tpu.matmul %160, %162, %cst_70 {dimension_numbers = #tpu.dot_dimension_numbers<[1], [0], [0], [1], [0, 0, 1, 1], [], []>} : vector<16x32xbf16>, vector<32x96xbf16>, vector<16x96xf32> -> vector<16x96xf32>
    %c1_71 = arith.constant 1 : index
    %c0_72 = arith.constant 0 : index
    %c0_73 = arith.constant 0 : index
    %164 = vector.load %arg4[%c1_71, %c0_72, %c0_73] : memref<2x1x96xf32, #tpu.memory_space<vmem>>, vector<1x1x96xf32>
    %165 = vector.shape_cast %164 : vector<1x1x96xf32> to vector<1x96xf32>
    %166 = vector.broadcast %165 : vector<1x96xf32> to vector<16x96xf32>
    %167 = arith.addf %163, %166 : vector<16x96xf32>
    %168 = vector.extract_strided_slice %167 {offsets = [0, 0], sizes = [16, 24], strides = [1, 1]} : vector<16x96xf32> to vector<16x24xf32>
    %169 = arith.truncf %168 : vector<16x24xf32> to vector<16x24xbf16>
    %170 = vector.shape_cast %169 : vector<16x24xbf16> to vector<2x8x24xbf16>
    %171 = vector.extract_strided_slice %167 {offsets = [0, 24], sizes = [16, 24], strides = [1, 1]} : vector<16x96xf32> to vector<16x24xf32>
    %172 = arith.truncf %171 : vector<16x24xf32> to vector<16x24xbf16>
    %173 = vector.shape_cast %172 : vector<16x24xbf16> to vector<2x8x24xbf16>
    %174 = vector.extract_strided_slice %167 {offsets = [0, 48], sizes = [16, 24], strides = [1, 1]} : vector<16x96xf32> to vector<16x24xf32>
    %175 = arith.truncf %174 : vector<16x24xf32> to vector<16x24xbf16>
    %176 = vector.shape_cast %175 : vector<16x24xbf16> to vector<2x8x24xbf16>
    %177 = vector.extract_strided_slice %167 {offsets = [0, 72], sizes = [16, 24], strides = [1, 1]} : vector<16x96xf32> to vector<16x24xf32>
    %178 = arith.truncf %177 : vector<16x24xf32> to vector<16x24xbf16>
    %179 = vector.shape_cast %178 : vector<16x24xbf16> to vector<2x8x24xbf16>
    %180 = tpu.concatenate %170, %173, %176, %179 in 0 : vector<2x8x24xbf16>, vector<2x8x24xbf16>, vector<2x8x24xbf16>, vector<2x8x24xbf16> -> vector<8x8x24xbf16>
    %181 = vector.extract_strided_slice %180 {offsets = [0, 0, 0], sizes = [8, 8, 8], strides = [1, 1, 1]} : vector<8x8x24xbf16> to vector<8x8x8xbf16>
    %182 = vector.extract_strided_slice %180 {offsets = [0, 0, 8], sizes = [8, 8, 8], strides = [1, 1, 1]} : vector<8x8x24xbf16> to vector<8x8x8xbf16>
    %183 = vector.extract_strided_slice %180 {offsets = [0, 0, 16], sizes = [8, 8, 8], strides = [1, 1, 1]} : vector<8x8x24xbf16> to vector<8x8x8xbf16>
    "tpu.trace_start"() <{level = 10 : i32, message = "bqd,bkd->bqk"}> : () -> ()
    %cst_74 = arith.constant dense<0.000000e+00> : vector<8x8x8xf32>
    %184 = tpu.matmul %181, %182, %cst_74 {dimension_numbers = #tpu.dot_dimension_numbers<[2], [2], [1], [1], [0, 0, 0, 1, 1, 1], [0], [0]>} : vector<8x8x8xbf16>, vector<8x8x8xbf16>, vector<8x8x8xf32> -> vector<8x8x8xf32>
    "tpu.trace_stop"() : () -> ()
    %cst_75 = arith.constant dense<0xFF800000> : vector<8x8xf32>
    %185 = vector.multi_reduction <maximumf>, %184, %cst_75 [2] : vector<8x8x8xf32> to vector<8x8xf32>
    %186 = vector.shape_cast %185 : vector<8x8xf32> to vector<8x8x1xf32>
    %187 = vector.broadcast %186 : vector<8x8x1xf32> to vector<8x8x8xf32>
    %188 = arith.subf %184, %187 : vector<8x8x8xf32>
    %189 = math.exp %188 : vector<8x8x8xf32>
    %cst_76 = arith.constant dense<0.000000e+00> : vector<8x8xf32>
    %190 = vector.multi_reduction <add>, %189, %cst_76 [2] : vector<8x8x8xf32> to vector<8x8xf32>
    %191 = vector.shape_cast %190 : vector<8x8xf32> to vector<8x8x1xf32>
    %192 = tpu.reciprocal %191 {approx = true} : vector<8x8x1xf32> -> vector<8x8x1xf32>
    %193 = vector.broadcast %192 : vector<8x8x1xf32> to vector<8x8x8xf32>
    %194 = arith.mulf %189, %193 : vector<8x8x8xf32>
    %195 = arith.truncf %194 : vector<8x8x8xf32> to vector<8x8x8xbf16>
    "tpu.trace_start"() <{level = 10 : i32, message = "bqk,bkd->bqd"}> : () -> ()
    %cst_77 = arith.constant dense<0.000000e+00> : vector<8x8x8xf32>
    %196 = tpu.matmul %195, %183, %cst_77 {dimension_numbers = #tpu.dot_dimension_numbers<[2], [1], [1], [2], [0, 0, 0, 1, 1, 2], [0], [0]>} : vector<8x8x8xbf16>, vector<8x8x8xbf16>, vector<8x8x8xf32> -> vector<8x8x8xf32>
    "tpu.trace_stop"() : () -> ()
    %197 = vector.extract_strided_slice %196 {offsets = [0, 0, 0], sizes = [2, 8, 8], strides = [1, 1, 1]} : vector<8x8x8xf32> to vector<2x8x8xf32>
    %198 = vector.extract_strided_slice %196 {offsets = [2, 0, 0], sizes = [2, 8, 8], strides = [1, 1, 1]} : vector<8x8x8xf32> to vector<2x8x8xf32>
    %199 = vector.extract_strided_slice %196 {offsets = [4, 0, 0], sizes = [2, 8, 8], strides = [1, 1, 1]} : vector<8x8x8xf32> to vector<2x8x8xf32>
    %200 = vector.extract_strided_slice %196 {offsets = [6, 0, 0], sizes = [2, 8, 8], strides = [1, 1, 1]} : vector<8x8x8xf32> to vector<2x8x8xf32>
    %201 = tpu.concatenate %197, %198, %199, %200 in 2 : vector<2x8x8xf32>, vector<2x8x8xf32>, vector<2x8x8xf32>, vector<2x8x8xf32> -> vector<2x8x32xf32>
    %202 = vector.shape_cast %201 : vector<2x8x32xf32> to vector<16x32xf32>
    %203 = arith.truncf %202 : vector<16x32xf32> to vector<16x32xbf16>
    %c1_78 = arith.constant 1 : index
    %c0_79 = arith.constant 0 : index
    %c0_80 = arith.constant 0 : index
    %204 = vector.load %arg5[%c1_78, %c0_79, %c0_80] : memref<2x32x32xbf16, #tpu.memory_space<vmem>>, vector<1x32x32xbf16>
    %205 = vector.shape_cast %204 : vector<1x32x32xbf16> to vector<32x32xbf16>
    %cst_81 = arith.constant dense<0.000000e+00> : vector<16x32xf32>
    %206 = tpu.matmul %203, %205, %cst_81 {dimension_numbers = #tpu.dot_dimension_numbers<[1], [0], [0], [1], [0, 0, 1, 1], [], []>} : vector<16x32xbf16>, vector<32x32xbf16>, vector<16x32xf32> -> vector<16x32xf32>
    %c1_82 = arith.constant 1 : index
    %c0_83 = arith.constant 0 : index
    %c0_84 = arith.constant 0 : index
    %207 = vector.load %arg6[%c1_82, %c0_83, %c0_84] : memref<2x1x32xf32, #tpu.memory_space<vmem>>, vector<1x1x32xf32>
    %208 = vector.shape_cast %207 : vector<1x1x32xf32> to vector<1x32xf32>
    %209 = vector.broadcast %208 : vector<1x32xf32> to vector<16x32xf32>
    %210 = arith.addf %206, %209 : vector<16x32xf32>
    %211 = arith.addf %159, %210 : vector<16x32xf32>
    %c1_85 = arith.constant 1 : index
    %c0_86 = arith.constant 0 : index
    %c0_87 = arith.constant 0 : index
    %212 = vector.load %arg7[%c1_85, %c0_86, %c0_87] : memref<2x1x32xf32, #tpu.memory_space<vmem>>, vector<1x1x32xf32>
    %213 = vector.shape_cast %212 : vector<1x1x32xf32> to vector<1x32xf32>
    %c1_88 = arith.constant 1 : index
    %c0_89 = arith.constant 0 : index
    %c0_90 = arith.constant 0 : index
    %214 = vector.load %arg8[%c1_88, %c0_89, %c0_90] : memref<2x1x32xf32, #tpu.memory_space<vmem>>, vector<1x1x32xf32>
    %215 = vector.shape_cast %214 : vector<1x1x32xf32> to vector<1x32xf32>
    %cst_91 = arith.constant dense<0.000000e+00> : vector<16xf32>
    %216 = vector.multi_reduction <add>, %211, %cst_91 [1] : vector<16x32xf32> to vector<16xf32>
    %217 = vector.shape_cast %216 : vector<16xf32> to vector<16x1xf32>
    %cst_92 = arith.constant 3.200000e+01 : f32
    %218 = vector.broadcast %cst_92 : f32 to vector<16x1xf32>
    %219 = arith.divf %217, %218 : vector<16x1xf32>
    %220 = vector.broadcast %219 : vector<16x1xf32> to vector<16x32xf32>
    %221 = arith.subf %211, %220 : vector<16x32xf32>
    %222 = arith.mulf %221, %221 : vector<16x32xf32>
    %cst_93 = arith.constant dense<0.000000e+00> : vector<16xf32>
    %223 = vector.multi_reduction <add>, %222, %cst_93 [1] : vector<16x32xf32> to vector<16xf32>
    %224 = vector.shape_cast %223 : vector<16xf32> to vector<16x1xf32>
    %cst_94 = arith.constant 3.200000e+01 : f32
    %225 = vector.broadcast %cst_94 : f32 to vector<16x1xf32>
    %226 = arith.divf %224, %225 : vector<16x1xf32>
    %cst_95 = arith.constant 9.99999996E-13 : f32
    %227 = vector.broadcast %cst_95 : f32 to vector<16x1xf32>
    %228 = arith.addf %226, %227 : vector<16x1xf32>
    %229 = math.rsqrt %228 : vector<16x1xf32>
    %230 = vector.broadcast %219 : vector<16x1xf32> to vector<16x32xf32>
    %231 = arith.subf %211, %230 : vector<16x32xf32>
    %232 = vector.broadcast %229 : vector<16x1xf32> to vector<16x32xf32>
    %233 = arith.mulf %231, %232 : vector<16x32xf32>
    %234 = vector.broadcast %213 : vector<1x32xf32> to vector<16x32xf32>
    %235 = arith.mulf %233, %234 : vector<16x32xf32>
    %236 = vector.broadcast %215 : vector<1x32xf32> to vector<16x32xf32>
    %237 = arith.addf %235, %236 : vector<16x32xf32>
    %238 = arith.truncf %237 : vector<16x32xf32> to vector<16x32xbf16>
    %c1_96 = arith.constant 1 : index
    %c0_97 = arith.constant 0 : index
    %c0_98 = arith.constant 0 : index
    %239 = vector.load %arg9[%c1_96, %c0_97, %c0_98] : memref<2x32x64xbf16, #tpu.memory_space<vmem>>, vector<1x32x64xbf16>
    %240 = vector.shape_cast %239 : vector<1x32x64xbf16> to vector<32x64xbf16>
    %cst_99 = arith.constant dense<0.000000e+00> : vector<16x64xf32>
    %241 = tpu.matmul %238, %240, %cst_99 {dimension_numbers = #tpu.dot_dimension_numbers<[1], [0], [0], [1], [0, 0, 1, 1], [], []>} : vector<16x32xbf16>, vector<32x64xbf16>, vector<16x64xf32> -> vector<16x64xf32>
    %c1_100 = arith.constant 1 : index
    %c0_101 = arith.constant 0 : index
    %c0_102 = arith.constant 0 : index
    %242 = vector.load %arg10[%c1_100, %c0_101, %c0_102] : memref<2x1x64xf32, #tpu.memory_space<vmem>>, vector<1x1x64xf32>
    %243 = vector.shape_cast %242 : vector<1x1x64xf32> to vector<1x64xf32>
    %244 = vector.broadcast %243 : vector<1x64xf32> to vector<16x64xf32>
    %245 = arith.addf %241, %244 : vector<16x64xf32>
    %cst_103 = arith.constant 5.000000e-01 : f32
    %246 = vector.broadcast %cst_103 : f32 to vector<16x64xf32>
    %247 = arith.mulf %246, %245 : vector<16x64xf32>
    %cst_104 = arith.constant 4.471500e-02 : f32
    %248 = vector.broadcast %cst_104 : f32 to vector<16x64xf32>
    %249 = arith.mulf %248, %245 : vector<16x64xf32>
    %250 = arith.mulf %249, %245 : vector<16x64xf32>
    %251 = arith.mulf %250, %245 : vector<16x64xf32>
    %252 = arith.addf %245, %251 : vector<16x64xf32>
    %cst_105 = arith.constant 0.797884583 : f32
    %253 = vector.broadcast %cst_105 : f32 to vector<16x64xf32>
    %254 = arith.mulf %253, %252 : vector<16x64xf32>
    %255 = math.tanh %254 : vector<16x64xf32>
    %cst_106 = arith.constant 1.000000e+00 : f32
    %256 = vector.broadcast %cst_106 : f32 to vector<16x64xf32>
    %257 = arith.addf %256, %255 : vector<16x64xf32>
    %258 = arith.mulf %247, %257 : vector<16x64xf32>
    %259 = arith.truncf %258 : vector<16x64xf32> to vector<16x64xbf16>
    %c1_107 = arith.constant 1 : index
    %c0_108 = arith.constant 0 : index
    %c0_109 = arith.constant 0 : index
    %260 = vector.load %arg11[%c1_107, %c0_108, %c0_109] : memref<2x64x32xbf16, #tpu.memory_space<vmem>>, vector<1x64x32xbf16>
    %261 = vector.shape_cast %260 : vector<1x64x32xbf16> to vector<64x32xbf16>
    %cst_110 = arith.constant dense<0.000000e+00> : vector<16x32xf32>
    %262 = tpu.matmul %259, %261, %cst_110 {dimension_numbers = #tpu.dot_dimension_numbers<[1], [0], [0], [1], [0, 0, 1, 1], [], []>} : vector<16x64xbf16>, vector<64x32xbf16>, vector<16x32xf32> -> vector<16x32xf32>
    %c1_111 = arith.constant 1 : index
    %c0_112 = arith.constant 0 : index
    %c0_113 = arith.constant 0 : index
    %263 = vector.load %arg12[%c1_111, %c0_112, %c0_113] : memref<2x1x32xf32, #tpu.memory_space<vmem>>, vector<1x1x32xf32>
    %264 = vector.shape_cast %263 : vector<1x1x32xf32> to vector<1x32xf32>
    %265 = vector.broadcast %264 : vector<1x32xf32> to vector<16x32xf32>
    %266 = arith.addf %262, %265 : vector<16x32xf32>
    %267 = arith.addf %237, %266 : vector<16x32xf32>
    %c1_114 = arith.constant 1 : index
    %c0_115 = arith.constant 0 : index
    %c0_116 = arith.constant 0 : index
    %268 = vector.load %arg13[%c1_114, %c0_115, %c0_116] : memref<2x1x32xf32, #tpu.memory_space<vmem>>, vector<1x1x32xf32>
    %269 = vector.shape_cast %268 : vector<1x1x32xf32> to vector<1x32xf32>
    %c1_117 = arith.constant 1 : index
    %c0_118 = arith.constant 0 : index
    %c0_119 = arith.constant 0 : index
    %270 = vector.load %arg14[%c1_117, %c0_118, %c0_119] : memref<2x1x32xf32, #tpu.memory_space<vmem>>, vector<1x1x32xf32>
    %271 = vector.shape_cast %270 : vector<1x1x32xf32> to vector<1x32xf32>
    %cst_120 = arith.constant dense<0.000000e+00> : vector<16xf32>
    %272 = vector.multi_reduction <add>, %267, %cst_120 [1] : vector<16x32xf32> to vector<16xf32>
    %273 = vector.shape_cast %272 : vector<16xf32> to vector<16x1xf32>
    %cst_121 = arith.constant 3.200000e+01 : f32
    %274 = vector.broadcast %cst_121 : f32 to vector<16x1xf32>
    %275 = arith.divf %273, %274 : vector<16x1xf32>
    %276 = vector.broadcast %275 : vector<16x1xf32> to vector<16x32xf32>
    %277 = arith.subf %267, %276 : vector<16x32xf32>
    %278 = arith.mulf %277, %277 : vector<16x32xf32>
    %cst_122 = arith.constant dense<0.000000e+00> : vector<16xf32>
    %279 = vector.multi_reduction <add>, %278, %cst_122 [1] : vector<16x32xf32> to vector<16xf32>
    %280 = vector.shape_cast %279 : vector<16xf32> to vector<16x1xf32>
    %cst_123 = arith.constant 3.200000e+01 : f32
    %281 = vector.broadcast %cst_123 : f32 to vector<16x1xf32>
    %282 = arith.divf %280, %281 : vector<16x1xf32>
    %cst_124 = arith.constant 9.99999996E-13 : f32
    %283 = vector.broadcast %cst_124 : f32 to vector<16x1xf32>
    %284 = arith.addf %282, %283 : vector<16x1xf32>
    %285 = math.rsqrt %284 : vector<16x1xf32>
    %286 = vector.broadcast %275 : vector<16x1xf32> to vector<16x32xf32>
    %287 = arith.subf %267, %286 : vector<16x32xf32>
    %288 = vector.broadcast %285 : vector<16x1xf32> to vector<16x32xf32>
    %289 = arith.mulf %287, %288 : vector<16x32xf32>
    %290 = vector.broadcast %269 : vector<1x32xf32> to vector<16x32xf32>
    %291 = arith.mulf %289, %290 : vector<16x32xf32>
    %292 = vector.broadcast %271 : vector<1x32xf32> to vector<16x32xf32>
    %293 = arith.addf %291, %292 : vector<16x32xf32>
    %294 = vector.shape_cast %293 : vector<16x32xf32> to vector<2x8x32xf32>
    %295 = vector.extract_strided_slice %294 {offsets = [0, 0, 0], sizes = [2, 1, 32], strides = [1, 1, 1]} : vector<2x8x32xf32> to vector<2x1x32xf32>
    %296 = vector.shape_cast %295 : vector<2x1x32xf32> to vector<2x32xf32>
    %c0_125 = arith.constant 0 : index
    %c0_126 = arith.constant 0 : index
    %297 = vector.load %arg15[%c0_125, %c0_126] : memref<2x32xf32, #tpu.memory_space<vmem>>, vector<2x32xf32>
    tpu.vector_store %arg15[%c0_125, %c0_126], %296 {strides = array<i32>} : memref<2x32xf32, #tpu.memory_space<vmem>>, vector<2x32xf32>,
    return
  }
}

</mosaic_0001>

<llo_original>
// kernel: bert_cls_forward.1
$region0: #{bert_cls_forward.1}
  #allocation0 [shape = 'u32[]', space=smem, size = 0x4, offset = 0x4, fixed_abs, tag = 'smem constant byte address 0x4 - core index']
  #allocation1 [shape = 'u32[144,128]{1,0:T(1,128)}', space=vmem, size = 0x12000, scoped, tag = 'internal scratch']
  %s0 = inlined_call_operand.vmem [shape: f32[2,8,32], index: 0, kind: input, shape index: {}]
  %s1 = inlined_call_operand.vmem [shape: f32[1,32], index: 1, kind: input, shape index: {}]
  %s2 = inlined_call_operand.vmem [shape: f32[1,32], index: 2, kind: input, shape index: {}]
  %s3 = inlined_call_operand.vmem [shape: bf16[2,32,96], index: 3, kind: input, shape index: {}]
  %s4 = inlined_call_operand.vmem [shape: f32[2,1,96], index: 4, kind: input, shape index: {}]
  %s5 = inlined_call_operand.vmem [shape: bf16[2,32,32], index: 5, kind: input, shape index: {}]
  %s6 = inlined_call_operand.vmem [shape: f32[2,1,32], index: 6, kind: input, shape index: {}]
  %s7 = inlined_call_operand.vmem [shape: f32[2,1,32], index: 7, kind: input, shape index: {}]
  %s8 = inlined_call_operand.vmem [shape: f32[2,1,32], index: 8, kind: input, shape index: {}]
  %s9 = inlined_call_operand.vmem [shape: bf16[2,32,64], index: 9, kind: input, shape index: {}]
  %s10 = inlined_call_operand.vmem [shape: f32[2,1,64], index: 10, kind: input, shape index: {}]
  %s11 = inlined_call_operand.vmem [shape: bf16[2,64,32], index: 11, kind: input, shape index: {}]
  %s12 = inlined_call_operand.vmem [shape: f32[2,1,32], index: 12, kind: input, shape index: {}]
  %s13 = inlined_call_operand.vmem [shape: f32[2,1,32], index: 13, kind: input, shape index: {}]
  %s14 = inlined_call_operand.vmem [shape: f32[2,1,32], index: 14, kind: input, shape index: {}]
  %s15 = inlined_call_operand.hbm [shape: f32[2,32], index: 15, kind: output, shape index: {}]
  %s16 = sld [smem:[#allocation0]]
  $region70: #{bert_cls_forward.1} parent=0
    _
  %s18 = ssub.s32 1, %s16
  %s19 = scalar_select 0, %s18, %s16
  $region1: #{bert_cls_forward.1} parent=0
    #allocation2 [shape = 'u8[1024]{0}', space=vmem, size = 0x400, scoped, tag = 'output window, operand 0, single buffered']
    #allocation3 [shape = 's32[1]{0}', space=sflag, size = 0x4, scoped, tag = 'scoped memory for bert_cls_forward.1']
    %20 = vsyncpa [#allocation3], 0
    // Predicated region
    $region2: #{bert_cls_forward.1} parent=1 // pred_check
      _
    $region3: #{bert_cls_forward.1} parent=1 // pred_check_branch
      %22 = sbr.rel (0) target = $region5
    $region4: #{bert_cls_forward.1} parent=1 // pred_region
      _
    $region5: #{bert_cls_forward.1} parent=1 // pred_fallthru
      _
    // Predicated region
    $region6: #{bert_cls_forward.1} parent=1 // pred_check
      _
    $region7: #{bert_cls_forward.1} parent=1 // pred_check_branch
      %24 = sbr.rel (0) target = $region9
    $region8: #{bert_cls_forward.1} parent=1 // pred_region
      _
    $region9: #{bert_cls_forward.1} parent=1 // pred_fallthru
      _
    // Predicated region
    $region10: #{bert_cls_forward.1} parent=1 // pred_check
      _
    $region11: #{bert_cls_forward.1} parent=1 // pred_check_branch
      %26 = sbr.rel (0) target = $region13
    $region12: #{bert_cls_forward.1} parent=1 // pred_region
      _
    $region13: #{bert_cls_forward.1} parent=1 // pred_fallthru
      _
    // Predicated region
    $region14: #{bert_cls_forward.1} parent=1 // pred_check
      _
    $region15: #{bert_cls_forward.1} parent=1 // pred_check_branch
      %28 = sbr.rel (0) target = $region17
    $region16: #{bert_cls_forward.1} parent=1 // pred_region
      _
    $region17: #{bert_cls_forward.1} parent=1 // pred_fallthru
      _
    // Predicated region
    $region18: #{bert_cls_forward.1} parent=1 // pred_check
      _
    $region19: #{bert_cls_forward.1} parent=1 // pred_check_branch
      %30 = sbr.rel (0) target = $region21
    $region20: #{bert_cls_forward.1} parent=1 // pred_region
      _
    $region21: #{bert_cls_forward.1} parent=1 // pred_fallthru
      _
    // Predicated region
    $region22: #{bert_cls_forward.1} parent=1 // pred_check
      _
    $region23: #{bert_cls_forward.1} parent=1 // pred_check_branch
      %32 = sbr.rel (0) target = $region25
    $region24: #{bert_cls_forward.1} parent=1 // pred_region
      _
    $region25: #{bert_cls_forward.1} parent=1 // pred_fallthru
      _
    // Predicated region
    $region26: #{bert_cls_forward.1} parent=1 // pred_check
      _
    $region27: #{bert_cls_forward.1} parent=1 // pred_check_branch
      %34 = sbr.rel (0) target = $region29
    $region28: #{bert_cls_forward.1} parent=1 // pred_region
      _
    $region29: #{bert_cls_forward.1} parent=1 // pred_fallthru
      _
    // Predicated region
    $region30: #{bert_cls_forward.1} parent=1 // pred_check
      _
    $region31: #{bert_cls_forward.1} parent=1 // pred_check_branch
      %36 = sbr.rel (0) target = $region33
    $region32: #{bert_cls_forward.1} parent=1 // pred_region
      _
    $region33: #{bert_cls_forward.1} parent=1 // pred_fallthru
      _
    // Predicated region
    $region34: #{bert_cls_forward.1} parent=1 // pred_check
      _
    $region35: #{bert_cls_forward.1} parent=1 // pred_check_branch
      %38 = sbr.rel (0) target = $region37
    $region36: #{bert_cls_forward.1} parent=1 // pred_region
      _
    $region37: #{bert_cls_forward.1} parent=1 // pred_fallthru
      _
    // Predicated region
    $region38: #{bert_cls_forward.1} parent=1 // pred_check
      _
    $region39: #{bert_cls_forward.1} parent=1 // pred_check_branch
      %40 = sbr.rel (0) target = $region41
    $region40: #{bert_cls_forward.1} parent=1 // pred_region
      _
    $region41: #{bert_cls_forward.1} parent=1 // pred_fallthru
      _
    // Predicated region
    $region42: #{bert_cls_forward.1} parent=1 // pred_check
      _
    $region43: #{bert_cls_forward.1} parent=1 // pred_check_branch
      %42 = sbr.rel (0) target = $region45
    $region44: #{bert_cls_forward.1} parent=1 // pred_region
      _
    $region45: #{bert_cls_forward.1} parent=1 // pred_fallthru
      _
    // Predicated region
    $region46: #{bert_cls_forward.1} parent=1 // pred_check
      _
    $region47: #{bert_cls_forward.1} parent=1 // pred_check_branch
      %44 = sbr.rel (0) target = $region49
    $region48: #{bert_cls_forward.1} parent=1 // pred_region
      _
    $region49: #{bert_cls_forward.1} parent=1 // pred_fallthru
      _
    // Predicated region
    $region50: #{bert_cls_forward.1} parent=1 // pred_check
      _
    $region51: #{bert_cls_forward.1} parent=1 // pred_check_branch
      %46 = sbr.rel (0) target = $region53
    $region52: #{bert_cls_forward.1} parent=1 // pred_region
      _
    $region53: #{bert_cls_forward.1} parent=1 // pred_fallthru
      _
    // Predicated region
    $region54: #{bert_cls_forward.1} parent=1 // pred_check
      _
    $region55: #{bert_cls_forward.1} parent=1 // pred_check_branch
      %48 = sbr.rel (0) target = $region57
    $region56: #{bert_cls_forward.1} parent=1 // pred_region
      _
    $region57: #{bert_cls_forward.1} parent=1 // pred_fallthru
      _
    // Predicated region
    $region58: #{bert_cls_forward.1} parent=1 // pred_check
      _
    $region59: #{bert_cls_forward.1} parent=1 // pred_check_branch
      %50 = sbr.rel (0) target = $region61
    $region60: #{bert_cls_forward.1} parent=1 // pred_region
      _
    $region61: #{bert_cls_forward.1} parent=1 // pred_fallthru
      _
    %v52 = vld [vmem:[%s0] sm:$0xff]
    %v53 = vld [vmem:[%s0 + $0x8] sm:$0xff]
    %v54 = vld [vmem:[%s1] sm:$0x1]
    %v55 = vld [vmem:[%s2] sm:$0x1]
    %vm56 = vcmask 261120
    %v57 = vsel %vm56, %v52, 0.0
    %58 = vadd.xlane.f32.xlu0 %v57
    %v59 = vpop.xlane.xlu0 %58
    %v60 = vsel %vm56, %v53, 0.0
    %61 = vadd.xlane.f32.xlu0 %v60
    %v62 = vpop.xlane.xlu0 %61
    %v63 = vrcp.pop 32.0
    %v64 = vmul.f32 %v59, %v63
    %v65 = vmul.f32 %v62, %v63
    %v66 = vsub.f32 %v52, %v64
    %v67 = vsub.f32 %v53, %v65
    %v68 = vmul.f32 %v66, %v66
    %v69 = vmul.f32 %v67, %v67
    %v70 = vsel %vm56, %v68, 0.0
    %71 = vadd.xlane.f32.xlu0 %v70
    %v72 = vpop.xlane.xlu0 %71
    %v73 = vsel %vm56, %v69, 0.0
    %74 = vadd.xlane.f32.xlu0 %v73
    %v75 = vpop.xlane.xlu0 %74
    %v76 = vmul.f32 %v72, %v63
    %v77 = vmul.f32 %v75, %v63
    %v78 = vadd.f32 %v76, 1e-12
    %v79 = vadd.f32 %v77, 1e-12
    %v80 = vrsqrt.pop %v78
    %v81 = vrsqrt.pop %v79
    %v82 = vmul.f32 %v66, %v80
    %v83 = vmul.f32 %v67, %v81
    %v85 = vlaneseq
    %v86 = vshrl.u32 %v85, 7
    %v87 = vsub.s32 0, %v86
    %v88 = vrot.slane %v54, %v87
    %v90 = vmul.f32 %v82, %v88
    %v91 = vmul.f32 %v83, %v88
    %v93 = vlaneseq
    %v94 = vshrl.u32 %v93, 7
    %v95 = vsub.s32 0, %v94
    %v96 = vrot.slane %v55, %v95
    %v98 = vadd.f32 %v90, %v96
    %v99 = vadd.f32 %v91, %v96
    %v100 = vpack.c.bf16 %v99, %v98
    %v101 = vld [vmem:[%s3] sm:$0xf]
    %v102 = vld [vmem:[%s3 + $0x4] sm:$0xf]
    %v103 = vld [vmem:[%s3 + $0x8] sm:$0xf]
    %v104 = vld [vmem:[%s3 + $0xc] sm:$0xf]
    %v105 = vld [vmem:[%s4] sm:$0x1]
    %v107 = vlaneseq
    %v108 = vshrl.u32 %v107, 7
    %v109 = vsub.s32 0, %v108
    %v110 = vrot.slane %v105, %v109
    %v116 = vunpack.c.l.b16 %v101
    %v117 = vunpack.c.l.b16 %v102
    %v118 = vunpack.c.l.b16 %v103
    %v119 = vunpack.c.l.b16 %v104
    %v120 = vpack.c.b16 %v117, %v116
    %v121 = vpack.c.b16 %v119, %v118
    %v125 = vsel %vm56, %v100, 0
    %127 = vmatprep.subr.bf16.mxu0 0
    %128 = vmatpush1.bf16.msra.mxu0 %v120
    %129 = vmatprep.subr.bf16.mxu0 0
    %130 = vmatpush1.bf16.msra.mxu0 %v121
    %131 = vmatprep.subr.bf16.mxu0 0
    %132 = vmatpush1.bf16.msra.mxu0 0
    %133 = vmatprep.subr.bf16.mxu0 0
    %134 = vmatpush1.bf16.msra.mxu0 0
    %135 = vmatprep.subr.bf16.mxu0 0
    %136 = vmatpush1.bf16.msra.mxu0 0
    %137 = vmatprep.subr.bf16.mxu0 0
    %138 = vmatpush1.bf16.msra.mxu0 0
    %139 = vmatprep.subr.bf16.mxu0 0
    %140 = vmatpush1.bf16.msra.mxu0 0
    %141 = vmatprep.subr.bf16.mxu0 0
    %142 = vmatpush1.bf16.msra.mxu0 0
    %143 = vmatprep.subr.bf16.mxu0 0
    %144 = vmatpush1.bf16.msra.mxu0 0
    %145 = vmatprep.subr.bf16.mxu0 0
    %146 = vmatpush1.bf16.msra.mxu0 0
    %147 = vmatprep.subr.bf16.mxu0 0
    %148 = vmatpush1.bf16.msra.mxu0 0
    %149 = vmatprep.subr.bf16.mxu0 0
    %150 = vmatpush1.bf16.msra.mxu0 0
    %151 = vmatprep.subr.bf16.mxu0 0
    %152 = vmatpush1.bf16.msra.mxu0 0
    %153 = vmatprep.subr.bf16.mxu0 0
    %154 = vmatpush1.bf16.msra.mxu0 0
    %155 = vmatprep.subr.bf16.mxu0 0
    %156 = vmatpush1.bf16.msra.mxu0 0
    %157 = vmatprep.subr.bf16.mxu0 0
    %158 = vmatpush1.bf16.msra.mxu0 0
    %159 = vmatprep.mubr.bf16.mxu0 0
    %160 = vmatmul.mubr.bf16.gmra.mrb[0].mxu0 %v125
    %v161 = vpop.f32.mrb[0].mxu0
    %v162 = vadd.f32 %v110, %v161
    %v163 = vpop.f32.mrb[0].mxu0
    %v164 = vpop.f32.mrb[0].mxu0
    %v165 = vadd.f32 %v110, %v164
    %v166 = vpop.f32.mrb[0].mxu0
    %167 = vdwg.mxu0
    %v168 = vpack.c.bf16 %v165, %v162
    %v170 = vunpack.c.l.b16 %v168
    %v171 = vunpack.c.h.b16 %v168
    %v172 = vpack.c.b16 %v170, %v170
    %v173 = vpack.c.b16 %v171, %v171
    %174 = vrot.lane.b32.xlu0 %v172, 104
    %v175 = vpop.permute.xlu0 %174
    %176 = vrot.lane.b32.xlu0 %v173, 104
    %v177 = vpop.permute.xlu0 %176
    %178 = vrot.lane.b32.xlu0 %v172, 80
    %v179 = vpop.permute.xlu0 %178
    %180 = vrot.lane.b32.xlu0 %v173, 80
    %v181 = vpop.permute.xlu0 %180
    %182 = vrot.lane.b32.xlu0 %v172, 56
    %v183 = vpop.permute.xlu0 %182
    %184 = vrot.lane.b32.xlu0 %v173, 56
    %v185 = vpop.permute.xlu0 %184
    %186 = vrot.lane.b32.xlu0 %v172, 120
    %v187 = vpop.permute.xlu0 %186
    %vm188 = vcmask 64512
    %v190 = vsel %vm188, %v172, 0
    %v193 = vsel %vm188, %v187, 0
    %195 = vmatprep.subr.bf16.mxu0 0
    %196 = vmatpush1.bf16.xpose.msra.mxu0 %v193
    %197 = vmatprep.subr.bf16.mxu0 0
    %198 = vmatpush1.bf16.xpose.msra.mxu0 0
    %199 = vmatprep.subr.bf16.mxu0 0
    %200 = vmatpush1.bf16.xpose.msra.mxu0 0
    %201 = vmatprep.subr.bf16.mxu0 0
    %202 = vmatpush1.bf16.xpose.msra.mxu0 0
    %203 = vmatprep.subr.bf16.mxu0 0
    %204 = vmatpush1.bf16.xpose.msra.mxu0 0
    %205 = vmatprep.subr.bf16.mxu0 0
    %206 = vmatpush1.bf16.xpose.msra.mxu0 0
    %207 = vmatprep.subr.bf16.mxu0 0
    %208 = vmatpush1.bf16.xpose.msra.mxu0 0
    %209 = vmatprep.subr.bf16.mxu0 0
    %210 = vmatpush1.bf16.xpose.msra.mxu0 0
    %211 = vmatprep.subr.bf16.mxu0 0
    %212 = vmatpush1.bf16.xpose.msra.mxu0 0
    %213 = vmatprep.subr.bf16.mxu0 0
    %214 = vmatpush1.bf16.xpose.msra.mxu0 0
    %215 = vmatprep.subr.bf16.mxu0 0
    %216 = vmatpush1.bf16.xpose.msra.mxu0 0
    %217 = vmatprep.subr.bf16.mxu0 0
    %218 = vmatpush1.bf16.xpose.msra.mxu0 0
    %219 = vmatprep.subr.bf16.mxu0 0
    %220 = vmatpush1.bf16.xpose.msra.mxu0 0
    %221 = vmatprep.subr.bf16.mxu0 0
    %222 = vmatpush1.bf16.xpose.msra.mxu0 0
    %223 = vmatprep.subr.bf16.mxu0 0
    %224 = vmatpush1.bf16.xpose.msra.mxu0 0
    %225 = vmatprep.subr.bf16.mxu0 0
    %226 = vmatpush1.bf16.xpose.msra.mxu0 0
    %227 = vmatprep.mubr.bf16.mxu0 0
    %228 = vmatmul.mubr.bf16.gmra.mrb[0].mxu0 %v190
    %v229 = vpop.f32.mrb[0].mxu0
    %v230 = vadd.f32 0.0, %v229
    %v231 = vpop.f32.mrb[0].mxu0
    %v232 = vpop.f32.mrb[0].mxu0
    %v233 = vpop.f32.mrb[0].mxu0
    %234 = vdwg.mxu0
    %235 = vrot.lane.b32.xlu0 %v173, 120
    %v236 = vpop.permute.xlu0 %235
    %v238 = vsel %vm188, %v173, 0
    %v241 = vsel %vm188, %v236, 0
    %243 = vmatprep.subr.bf16.mxu0 0
    %244 = vmatpush1.bf16.xpose.msra.mxu0 %v241
    %245 = vmatprep.subr.bf16.mxu0 0
    %246 = vmatpush1.bf16.xpose.msra.mxu0 0
    %247 = vmatprep.subr.bf16.mxu0 0
    %248 = vmatpush1.bf16.xpose.msra.mxu0 0
    %249 = vmatprep.subr.bf16.mxu0 0
    %250 = vmatpush1.bf16.xpose.msra.mxu0 0
    %251 = vmatprep.subr.bf16.mxu0 0
    %252 = vmatpush1.bf16.xpose.msra.mxu0 0
    %253 = vmatprep.subr.bf16.mxu0 0
    %254 = vmatpush1.bf16.xpose.msra.mxu0 0
    %255 = vmatprep.subr.bf16.mxu0 0
    %256 = vmatpush1.bf16.xpose.msra.mxu0 0
    %257 = vmatprep.subr.bf16.mxu0 0
    %258 = vmatpush1.bf16.xpose.msra.mxu0 0
    %259 = vmatprep.subr.bf16.mxu0 0
    %260 = vmatpush1.bf16.xpose.msra.mxu0 0
    %261 = vmatprep.subr.bf16.mxu0 0
    %262 = vmatpush1.bf16.xpose.msra.mxu0 0
    %263 = vmatprep.subr.bf16.mxu0 0
    %264 = vmatpush1.bf16.xpose.msra.mxu0 0
    %265 = vmatprep.subr.bf16.mxu0 0
    %266 = vmatpush1.bf16.xpose.msra.mxu0 0
    %267 = vmatprep.subr.bf16.mxu0 0
    %268 = vmatpush1.bf16.xpose.msra.mxu0 0
    %269 = vmatprep.subr.bf16.mxu0 0
    %270 = vmatpush1.bf16.xpose.msra.mxu0 0
    %271 = vmatprep.subr.bf16.mxu0 0
    %272 = vmatpush1.bf16.xpose.msra.mxu0 0
    %273 = vmatprep.subr.bf16.mxu0 0
    %274 = vmatpush1.bf16.xpose.msra.mxu0 0
    %275 = vmatprep.mubr.bf16.mxu0 0
    %276 = vmatmul.mubr.bf16.gmra.mrb[0].mxu0 %v238
    %v277 = vpop.f32.mrb[0].mxu0
    %v278 = vadd.f32 0.0, %v277
    %v279 = vpop.f32.mrb[0].mxu0
    %v280 = vpop.f32.mrb[0].mxu0
    %v281 = vpop.f32.mrb[0].mxu0
    %282 = vdwg.mxu0
    %v283 = vunpack.c.l.b16 %v175
    %v284 = vpack.c.b16 %v283, %v283
    %285 = vrot.lane.b32.xlu0 %v284, 120
    %v286 = vpop.permute.xlu0 %285
    %v288 = vsel %vm188, %v175, 0
    %v291 = vsel %vm188, %v286, 0
    %293 = vmatprep.subr.bf16.mxu0 0
    %294 = vmatpush1.bf16.xpose.msra.mxu0 %v291
    %295 = vmatprep.subr.bf16.mxu0 0
    %296 = vmatpush1.bf16.xpose.msra.mxu0 0
    %297 = vmatprep.subr.bf16.mxu0 0
    %298 = vmatpush1.bf16.xpose.msra.mxu0 0
    %299 = vmatprep.subr.bf16.mxu0 0
    %300 = vmatpush1.bf16.xpose.msra.mxu0 0
    %301 = vmatprep.subr.bf16.mxu0 0
    %302 = vmatpush1.bf16.xpose.msra.mxu0 0
    %303 = vmatprep.subr.bf16.mxu0 0
    %304 = vmatpush1.bf16.xpose.msra.mxu0 0
    %305 = vmatprep.subr.bf16.mxu0 0
    %306 = vmatpush1.bf16.xpose.msra.mxu0 0
    %307 = vmatprep.subr.bf16.mxu0 0
    %308 = vmatpush1.bf16.xpose.msra.mxu0 0
    %309 = vmatprep.subr.bf16.mxu0 0
    %310 = vmatpush1.bf16.xpose.msra.mxu0 0
    %311 = vmatprep.subr.bf16.mxu0 0
    %312 = vmatpush1.bf16.xpose.msra.mxu0 0
    %313 = vmatprep.subr.bf16.mxu0 0
    %314 = vmatpush1.bf16.xpose.msra.mxu0 0
    %315 = vmatprep.subr.bf16.mxu0 0
    %316 = vmatpush1.bf16.xpose.msra.mxu0 0
    %317 = vmatprep.subr.bf16.mxu0 0
    %318 = vmatpush1.bf16.xpose.msra.mxu0 0
    %319 = vmatprep.subr.bf16.mxu0 0
    %320 = vmatpush1.bf16.xpose.msra.mxu0 0
    %321 = vmatprep.subr.bf16.mxu0 0
    %322 = vmatpush1.bf16.xpose.msra.mxu0 0
    %323 = vmatprep.subr.bf16.mxu0 0
    %324 = vmatpush1.bf16.xpose.msra.mxu0 0
    %325 = vmatprep.mubr.bf16.mxu0 0
    %326 = vmatmul.mubr.bf16.gmra.mrb[0].mxu0 %v288
    %v327 = vpop.f32.mrb[0].mxu0
    %v328 = vadd.f32 0.0, %v327
    %v329 = vpop.f32.mrb[0].mxu0
    %v330 = vpop.f32.mrb[0].mxu0
    %v331 = vpop.f32.mrb[0].mxu0
    %332 = vdwg.mxu0
    %v333 = vunpack.c.l.b16 %v177
    %v334 = vpack.c.b16 %v333, %v333
    %335 = vrot.lane.b32.xlu0 %v334, 120
    %v336 = vpop.permute.xlu0 %335
    %v338 = vsel %vm188, %v177, 0
    %v341 = vsel %vm188, %v336, 0
    %343 = vmatprep.subr.bf16.mxu0 0
    %344 = vmatpush1.bf16.xpose.msra.mxu0 %v341
    %345 = vmatprep.subr.bf16.mxu0 0
    %346 = vmatpush1.bf16.xpose.msra.mxu0 0
    %347 = vmatprep.subr.bf16.mxu0 0
    %348 = vmatpush1.bf16.xpose.msra.mxu0 0
    %349 = vmatprep.subr.bf16.mxu0 0
    %350 = vmatpush1.bf16.xpose.msra.mxu0 0
    %351 = vmatprep.subr.bf16.mxu0 0
    %352 = vmatpush1.bf16.xpose.msra.mxu0 0
    %353 = vmatprep.subr.bf16.mxu0 0
    %354 = vmatpush1.bf16.xpose.msra.mxu0 0
    %355 = vmatprep.subr.bf16.mxu0 0
    %356 = vmatpush1.bf16.xpose.msra.mxu0 0
    %357 = vmatprep.subr.bf16.mxu0 0
    %358 = vmatpush1.bf16.xpose.msra.mxu0 0
    %359 = vmatprep.subr.bf16.mxu0 0
    %360 = vmatpush1.bf16.xpose.msra.mxu0 0
    %361 = vmatprep.subr.bf16.mxu0 0
    %362 = vmatpush1.bf16.xpose.msra.mxu0 0
    %363 = vmatprep.subr.bf16.mxu0 0
    %364 = vmatpush1.bf16.xpose.msra.mxu0 0
    %365 = vmatprep.subr.bf16.mxu0 0
    %366 = vmatpush1.bf16.xpose.msra.mxu0 0
    %367 = vmatprep.subr.bf16.mxu0 0
    %368 = vmatpush1.bf16.xpose.msra.mxu0 0
    %369 = vmatprep.subr.bf16.mxu0 0
    %370 = vmatpush1.bf16.xpose.msra.mxu0 0
    %371 = vmatprep.subr.bf16.mxu0 0
    %372 = vmatpush1.bf16.xpose.msra.mxu0 0
    %373 = vmatprep.subr.bf16.mxu0 0
    %374 = vmatpush1.bf16.xpose.msra.mxu0 0
    %375 = vmatprep.mubr.bf16.mxu0 0
    %376 = vmatmul.mubr.bf16.gmra.mrb[0].mxu0 %v338
    %v377 = vpop.f32.mrb[0].mxu0
    %v378 = vadd.f32 0.0, %v377
    %v379 = vpop.f32.mrb[0].mxu0
    %v380 = vpop.f32.mrb[0].mxu0
    %v381 = vpop.f32.mrb[0].mxu0
    %382 = vdwg.mxu0
    %v383 = vunpack.c.l.b16 %v179
    %v384 = vpack.c.b16 %v383, %v383
    %385 = vrot.lane.b32.xlu0 %v384, 120
    %v386 = vpop.permute.xlu0 %385
    %v388 = vsel %vm188, %v179, 0
    %v391 = vsel %vm188, %v386, 0
    %393 = vmatprep.subr.bf16.mxu0 0
    %394 = vmatpush1.bf16.xpose.msra.mxu0 %v391
    %395 = vmatprep.subr.bf16.mxu0 0
    %396 = vmatpush1.bf16.xpose.msra.mxu0 0
    %397 = vmatprep.subr.bf16.mxu0 0
    %398 = vmatpush1.bf16.xpose.msra.mxu0 0
    %399 = vmatprep.subr.bf16.mxu0 0
    %400 = vmatpush1.bf16.xpose.msra.mxu0 0
    %401 = vmatprep.subr.bf16.mxu0 0
    %402 = vmatpush1.bf16.xpose.msra.mxu0 0
    %403 = vmatprep.subr.bf16.mxu0 0
    %404 = vmatpush1.bf16.xpose.msra.mxu0 0
    %405 = vmatprep.subr.bf16.mxu0 0
    %406 = vmatpush1.bf16.xpose.msra.mxu0 0
    %407 = vmatprep.subr.bf16.mxu0 0
    %408 = vmatpush1.bf16.xpose.msra.mxu0 0
    %409 = vmatprep.subr.bf16.mxu0 0
    %410 = vmatpush1.bf16.xpose.msra.mxu0 0
    %411 = vmatprep.subr.bf16.mxu0 0
    %412 = vmatpush1.bf16.xpose.msra.mxu0 0
    %413 = vmatprep.subr.bf16.mxu0 0
    %414 = vmatpush1.bf16.xpose.msra.mxu0 0
    %415 = vmatprep.subr.bf16.mxu0 0
    %416 = vmatpush1.bf16.xpose.msra.mxu0 0
    %417 = vmatprep.subr.bf16.mxu0 0
    %418 = vmatpush1.bf16.xpose.msra.mxu0 0
    %419 = vmatprep.subr.bf16.mxu0 0
    %420 = vmatpush1.bf16.xpose.msra.mxu0 0
    %421 = vmatprep.subr.bf16.mxu0 0
    %422 = vmatpush1.bf16.xpose.msra.mxu0 0
    %423 = vmatprep.subr.bf16.mxu0 0
    %424 = vmatpush1.bf16.xpose.msra.mxu0 0
    %425 = vmatprep.mubr.bf16.mxu0 0
    %426 = vmatmul.mubr.bf16.gmra.mrb[0].mxu0 %v388
    %v427 = vpop.f32.mrb[0].mxu0
    %v428 = vadd.f32 0.0, %v427
    %v429 = vpop.f32.mrb[0].mxu0
    %v430 = vpop.f32.mrb[0].mxu0
    %v431 = vpop.f32.mrb[0].mxu0
    %432 = vdwg.mxu0
    %v433 = vunpack.c.l.b16 %v181
    %v434 = vpack.c.b16 %v433, %v433
    %435 = vrot.lane.b32.xlu0 %v434, 120
    %v436 = vpop.permute.xlu0 %435
    %v438 = vsel %vm188, %v181, 0
    %v441 = vsel %vm188, %v436, 0
    %443 = vmatprep.subr.bf16.mxu0 0
    %444 = vmatpush1.bf16.xpose.msra.mxu0 %v441
    %445 = vmatprep.subr.bf16.mxu0 0
    %446 = vmatpush1.bf16.xpose.msra.mxu0 0
    %447 = vmatprep.subr.bf16.mxu0 0
    %448 = vmatpush1.bf16.xpose.msra.mxu0 0
    %449 = vmatprep.subr.bf16.mxu0 0
    %450 = vmatpush1.bf16.xpose.msra.mxu0 0
    %451 = vmatprep.subr.bf16.mxu0 0
    %452 = vmatpush1.bf16.xpose.msra.mxu0 0
    %453 = vmatprep.subr.bf16.mxu0 0
    %454 = vmatpush1.bf16.xpose.msra.mxu0 0
    %455 = vmatprep.subr.bf16.mxu0 0
    %456 = vmatpush1.bf16.xpose.msra.mxu0 0
    %457 = vmatprep.subr.bf16.mxu0 0
    %458 = vmatpush1.bf16.xpose.msra.mxu0 0
    %459 = vmatprep.subr.bf16.mxu0 0
    %460 = vmatpush1.bf16.xpose.msra.mxu0 0
    %461 = vmatprep.subr.bf16.mxu0 0
    %462 = vmatpush1.bf16.xpose.msra.mxu0 0
    %463 = vmatprep.subr.bf16.mxu0 0
    %464 = vmatpush1.bf16.xpose.msra.mxu0 0
    %465 = vmatprep.subr.bf16.mxu0 0
    %466 = vmatpush1.bf16.xpose.msra.mxu0 0
    %467 = vmatprep.subr.bf16.mxu0 0
    %468 = vmatpush1.bf16.xpose.msra.mxu0 0
    %469 = vmatprep.subr.bf16.mxu0 0
    %470 = vmatpush1.bf16.xpose.msra.mxu0 0
    %471 = vmatprep.subr.bf16.mxu0 0
    %472 = vmatpush1.bf16.xpose.msra.mxu0 0
    %473 = vmatprep.subr.bf16.mxu0 0
    %474 = vmatpush1.bf16.xpose.msra.mxu0 0
    %475 = vmatprep.mubr.bf16.mxu0 0
    %476 = vmatmul.mubr.bf16.gmra.mrb[0].mxu0 %v438
    %v477 = vpop.f32.mrb[0].mxu0
    %v478 = vadd.f32 0.0, %v477
    %v479 = vpop.f32.mrb[0].mxu0
    %v480 = vpop.f32.mrb[0].mxu0
    %v481 = vpop.f32.mrb[0].mxu0
    %482 = vdwg.mxu0
    %v483 = vunpack.c.l.b16 %v183
    %v484 = vpack.c.b16 %v483, %v483
    %485 = vrot.lane.b32.xlu0 %v484, 120
    %v486 = vpop.permute.xlu0 %485
    %v488 = vsel %vm188, %v183, 0
    %v491 = vsel %vm188, %v486, 0
    %493 = vmatprep.subr.bf16.mxu0 0
    %494 = vmatpush1.bf16.xpose.msra.mxu0 %v491
    %495 = vmatprep.subr.bf16.mxu0 0
    %496 = vmatpush1.bf16.xpose.msra.mxu0 0
    %497 = vmatprep.subr.bf16.mxu0 0
    %498 = vmatpush1.bf16.xpose.msra.mxu0 0
    %499 = vmatprep.subr.bf16.mxu0 0
    %500 = vmatpush1.bf16.xpose.msra.mxu0 0
    %501 = vmatprep.subr.bf16.mxu0 0
    %502 = vmatpush1.bf16.xpose.msra.mxu0 0
    %503 = vmatprep.subr.bf16.mxu0 0
    %504 = vmatpush1.bf16.xpose.msra.mxu0 0
    %505 = vmatprep.subr.bf16.mxu0 0
    %506 = vmatpush1.bf16.xpose.msra.mxu0 0
    %507 = vmatprep.subr.bf16.mxu0 0
    %508 = vmatpush1.bf16.xpose.msra.mxu0 0
    %509 = vmatprep.subr.bf16.mxu0 0
    %510 = vmatpush1.bf16.xpose.msra.mxu0 0
    %511 = vmatprep.subr.bf16.mxu0 0
    %512 = vmatpush1.bf16.xpose.msra.mxu0 0
    %513 = vmatprep.subr.bf16.mxu0 0
    %514 = vmatpush1.bf16.xpose.msra.mxu0 0
    %515 = vmatprep.subr.bf16.mxu0 0
    %516 = vmatpush1.bf16.xpose.msra.mxu0 0
    %517 = vmatprep.subr.bf16.mxu0 0
    %518 = vmatpush1.bf16.xpose.msra.mxu0 0
    %519 = vmatprep.subr.bf16.mxu0 0
    %520 = vmatpush1.bf16.xpose.msra.mxu0 0
    %521 = vmatprep.subr.bf16.mxu0 0
    %522 = vmatpush1.bf16.xpose.msra.mxu0 0
    %523 = vmatprep.subr.bf16.mxu0 0
    %524 = vmatpush1.bf16.xpose.msra.mxu0 0
    %525 = vmatprep.mubr.bf16.mxu0 0
    %526 = vmatmul.mubr.bf16.gmra.mrb[0].mxu0 %v488
    %v527 = vpop.f32.mrb[0].mxu0
    %v528 = vadd.f32 0.0, %v527
    %v529 = vpop.f32.mrb[0].mxu0
    %v530 = vpop.f32.mrb[0].mxu0
    %v531 = vpop.f32.mrb[0].mxu0
    %532 = vdwg.mxu0
    %v533 = vunpack.c.l.b16 %v185
    %v534 = vpack.c.b16 %v533, %v533
    %535 = vrot.lane.b32.xlu0 %v534, 120
    %v536 = vpop.permute.xlu0 %535
    %v538 = vsel %vm188, %v185, 0
    %v541 = vsel %vm188, %v536, 0
    %543 = vmatprep.subr.bf16.mxu0 0
    %544 = vmatpush1.bf16.xpose.msra.mxu0 %v541
    %545 = vmatprep.subr.bf16.mxu0 0
    %546 = vmatpush1.bf16.xpose.msra.mxu0 0
    %547 = vmatprep.subr.bf16.mxu0 0
    %548 = vmatpush1.bf16.xpose.msra.mxu0 0
    %549 = vmatprep.subr.bf16.mxu0 0
    %550 = vmatpush1.bf16.xpose.msra.mxu0 0
    %551 = vmatprep.subr.bf16.mxu0 0
    %552 = vmatpush1.bf16.xpose.msra.mxu0 0
    %553 = vmatprep.subr.bf16.mxu0 0
    %554 = vmatpush1.bf16.xpose.msra.mxu0 0
    %555 = vmatprep.subr.bf16.mxu0 0
    %556 = vmatpush1.bf16.xpose.msra.mxu0 0
    %557 = vmatprep.subr.bf16.mxu0 0
    %558 = vmatpush1.bf16.xpose.msra.mxu0 0
    %559 = vmatprep.subr.bf16.mxu0 0
    %560 = vmatpush1.bf16.xpose.msra.mxu0 0
    %561 = vmatprep.subr.bf16.mxu0 0
    %562 = vmatpush1.bf16.xpose.msra.mxu0 0
    %563 = vmatprep.subr.bf16.mxu0 0
    %564 = vmatpush1.bf16.xpose.msra.mxu0 0
    %565 = vmatprep.subr.bf16.mxu0 0
    %566 = vmatpush1.bf16.xpose.msra.mxu0 0
    %567 = vmatprep.subr.bf16.mxu0 0
    %568 = vmatpush1.bf16.xpose.msra.mxu0 0
    %569 = vmatprep.subr.bf16.mxu0 0
    %570 = vmatpush1.bf16.xpose.msra.mxu0 0
    %571 = vmatprep.subr.bf16.mxu0 0
    %572 = vmatpush1.bf16.xpose.msra.mxu0 0
    %573 = vmatprep.subr.bf16.mxu0 0
    %574 = vmatpush1.bf16.xpose.msra.mxu0 0
    %575 = vmatprep.mubr.bf16.mxu0 0
    %576 = vmatmul.mubr.bf16.gmra.mrb[0].mxu0 %v538
    %v577 = vpop.f32.mrb[0].mxu0
    %v578 = vadd.f32 0.0, %v577
    %v579 = vpop.f32.mrb[0].mxu0
    %v580 = vpop.f32.mrb[0].mxu0
    %v581 = vpop.f32.mrb[0].mxu0
    %582 = vdwg.mxu0
    %v583 = vsel %vm188, %v230, -inf
    %584 = vmax.xlane.f32.xlu0 %v583
    %v585 = vpop.xlane.xlu0 %584
    %v586 = vsel %vm188, %v278, -inf
    %587 = vmax.xlane.f32.xlu0 %v586
    %v588 = vpop.xlane.xlu0 %587
    %v589 = vsel %vm188, %v328, -inf
    %590 = vmax.xlane.f32.xlu0 %v589
    %v591 = vpop.xlane.xlu0 %590
    %v592 = vsel %vm188, %v378, -inf
    %593 = vmax.xlane.f32.xlu0 %v592
    %v594 = vpop.xlane.xlu0 %593
    %v595 = vsel %vm188, %v428, -inf
    %596 = vmax.xlane.f32.xlu0 %v595
    %v597 = vpop.xlane.xlu0 %596
    %v598 = vsel %vm188, %v478, -inf
    %599 = vmax.xlane.f32.xlu0 %v598
    %v600 = vpop.xlane.xlu0 %599
    %v601 = vsel %vm188, %v528, -inf
    %602 = vmax.xlane.f32.xlu0 %v601
    %v603 = vpop.xlane.xlu0 %602
    %v604 = vsel %vm188, %v578, -inf
    %605 = vmax.xlane.f32.xlu0 %v604
    %v606 = vpop.xlane.xlu0 %605
    %v607 = vsub.f32 %v230, %v585
    %v608 = vsub.f32 %v278, %v588
    %v609 = vsub.f32 %v328, %v591
    %v610 = vsub.f32 %v378, %v594
    %v611 = vsub.f32 %v428, %v597
    %v612 = vsub.f32 %v478, %v600
    %v613 = vsub.f32 %v528, %v603
    %v614 = vsub.f32 %v578, %v606
    %v615 = vmul.f32 %v607, 1.442695
    %v616 = vpow.pop %v615
    %v617 = vmul.f32 %v608, 1.442695
    %v618 = vpow.pop %v617
    %v619 = vmul.f32 %v609, 1.442695
    %v620 = vpow.pop %v619
    %v621 = vmul.f32 %v610, 1.442695
    %v622 = vpow.pop %v621
    %v623 = vmul.f32 %v611, 1.442695
    %v624 = vpow.pop %v623
    %v625 = vmul.f32 %v612, 1.442695
    %v626 = vpow.pop %v625
    %v627 = vmul.f32 %v613, 1.442695
    %v628 = vpow.pop %v627
    %v629 = vmul.f32 %v614, 1.442695
    %v630 = vpow.pop %v629
    %v631 = vsel %vm188, %v616, 0.0
    %632 = vadd.xlane.f32.xlu0 %v631
    %v633 = vpop.xlane.xlu0 %632
    %v634 = vsel %vm188, %v618, 0.0
    %635 = vadd.xlane.f32.xlu0 %v634
    %v636 = vpop.xlane.xlu0 %635
    %v637 = vsel %vm188, %v620, 0.0
    %638 = vadd.xlane.f32.xlu0 %v637
    %v639 = vpop.xlane.xlu0 %638
    %v640 = vsel %vm188, %v622, 0.0
    %641 = vadd.xlane.f32.xlu0 %v640
    %v642 = vpop.xlane.xlu0 %641
    %v643 = vsel %vm188, %v624, 0.0
    %644 = vadd.xlane.f32.xlu0 %v643
    %v645 = vpop.xlane.xlu0 %644
    %v646 = vsel %vm188, %v626, 0.0
    %647 = vadd.xlane.f32.xlu0 %v646
    %v648 = vpop.xlane.xlu0 %647
    %v649 = vsel %vm188, %v628, 0.0
    %650 = vadd.xlane.f32.xlu0 %v649
    %v651 = vpop.xlane.xlu0 %650
    %v652 = vsel %vm188, %v630, 0.0
    %653 = vadd.xlane.f32.xlu0 %v652
    %v654 = vpop.xlane.xlu0 %653
    %v655 = vrcp.pop %v633
    %v656 = vrcp.pop %v636
    %v657 = vrcp.pop %v639
    %v658 = vrcp.pop %v642
    %v659 = vrcp.pop %v645
    %v660 = vrcp.pop %v648
    %v661 = vrcp.pop %v651
    %v662 = vrcp.pop %v654
    %v663 = vmul.f32 %v616, %v655
    %v664 = vmul.f32 %v618, %v656
    %v665 = vmul.f32 %v620, %v657
    %v666 = vmul.f32 %v622, %v658
    %v667 = vmul.f32 %v624, %v659
    %v668 = vmul.f32 %v626, %v660
    %v669 = vmul.f32 %v628, %v661
    %v670 = vmul.f32 %v630, %v662
    %v671 = vpack.c.bf16 %v663, %v663
    %v672 = vpack.c.bf16 %v664, %v664
    %v673 = vpack.c.bf16 %v665, %v665
    %v674 = vpack.c.bf16 %v666, %v666
    %v675 = vpack.c.bf16 %v667, %v667
    %v676 = vpack.c.bf16 %v668, %v668
    %v677 = vpack.c.bf16 %v669, %v669
    %v678 = vpack.c.bf16 %v670, %v670
    %679 = vrot.lane.b32.xlu0 %v172, 112
    %v680 = vpop.permute.xlu0 %679
    %v682 = vsel %vm188, %v671, 0
    %vm684 = vcmask 1043456
    %v686 = vsel %vm684, %v680, 0
    %688 = vmatprep.subr.bf16.mxu0 0
    %689 = vmatpush1.bf16.msra.mxu0 %v686
    %690 = vmatprep.subr.bf16.mxu0 0
    %691 = vmatpush1.bf16.msra.mxu0 0
    %692 = vmatprep.subr.bf16.mxu0 0
    %693 = vmatpush1.bf16.msra.mxu0 0
    %694 = vmatprep.subr.bf16.mxu0 0
    %695 = vmatpush1.bf16.msra.mxu0 0
    %696 = vmatprep.subr.bf16.mxu0 0
    %697 = vmatpush1.bf16.msra.mxu0 0
    %698 = vmatprep.subr.bf16.mxu0 0
    %699 = vmatpush1.bf16.msra.mxu0 0
    %700 = vmatprep.subr.bf16.mxu0 0
    %701 = vmatpush1.bf16.msra.mxu0 0
    %702 = vmatprep.subr.bf16.mxu0 0
    %703 = vmatpush1.bf16.msra.mxu0 0
    %704 = vmatprep.subr.bf16.mxu0 0
    %705 = vmatpush1.bf16.msra.mxu0 0
    %706 = vmatprep.subr.bf16.mxu0 0
    %707 = vmatpush1.bf16.msra.mxu0 0
    %708 = vmatprep.subr.bf16.mxu0 0
    %709 = vmatpush1.bf16.msra.mxu0 0
    %710 = vmatprep.subr.bf16.mxu0 0
    %711 = vmatpush1.bf16.msra.mxu0 0
    %712 = vmatprep.subr.bf16.mxu0 0
    %713 = vmatpush1.bf16.msra.mxu0 0
    %714 = vmatprep.subr.bf16.mxu0 0
    %715 = vmatpush1.bf16.msra.mxu0 0
    %716 = vmatprep.subr.bf16.mxu0 0
    %717 = vmatpush1.bf16.msra.mxu0 0
    %718 = vmatprep.subr.bf16.mxu0 0
    %719 = vmatpush1.bf16.msra.mxu0 0
    %720 = vmatprep.mubr.bf16.mxu0 0
    %721 = vmatmul.mubr.bf16.gmra.mrb[0].mxu0 %v682
    %v722 = vpop.f32.mrb[0].mxu0
    %v723 = vadd.f32 0.0, %v722
    %v724 = vpop.f32.mrb[0].mxu0
    %v725 = vpop.f32.mrb[0].mxu0
    %v726 = vpop.f32.mrb[0].mxu0
    %727 = vdwg.mxu0
    %728 = vrot.lane.b32.xlu0 %v173, 112
    %v729 = vpop.permute.xlu0 %728
    %v731 = vsel %vm188, %v672, 0
    %v734 = vsel %vm684, %v729, 0
    %736 = vmatprep.subr.bf16.mxu0 0
    %737 = vmatpush1.bf16.msra.mxu0 %v734
    %738 = vmatprep.subr.bf16.mxu0 0
    %739 = vmatpush1.bf16.msra.mxu0 0
    %740 = vmatprep.subr.bf16.mxu0 0
    %741 = vmatpush1.bf16.msra.mxu0 0
    %742 = vmatprep.subr.bf16.mxu0 0
    %743 = vmatpush1.bf16.msra.mxu0 0
    %744 = vmatprep.subr.bf16.mxu0 0
    %745 = vmatpush1.bf16.msra.mxu0 0
    %746 = vmatprep.subr.bf16.mxu0 0
    %747 = vmatpush1.bf16.msra.mxu0 0
    %748 = vmatprep.subr.bf16.mxu0 0
    %749 = vmatpush1.bf16.msra.mxu0 0
    %750 = vmatprep.subr.bf16.mxu0 0
    %751 = vmatpush1.bf16.msra.mxu0 0
    %752 = vmatprep.subr.bf16.mxu0 0
    %753 = vmatpush1.bf16.msra.mxu0 0
    %754 = vmatprep.subr.bf16.mxu0 0
    %755 = vmatpush1.bf16.msra.mxu0 0
    %756 = vmatprep.subr.bf16.mxu0 0
    %757 = vmatpush1.bf16.msra.mxu0 0
    %758 = vmatprep.subr.bf16.mxu0 0
    %759 = vmatpush1.bf16.msra.mxu0 0
    %760 = vmatprep.subr.bf16.mxu0 0
    %761 = vmatpush1.bf16.msra.mxu0 0
    %762 = vmatprep.subr.bf16.mxu0 0
    %763 = vmatpush1.bf16.msra.mxu0 0
    %764 = vmatprep.subr.bf16.mxu0 0
    %765 = vmatpush1.bf16.msra.mxu0 0
    %766 = vmatprep.subr.bf16.mxu0 0
    %767 = vmatpush1.bf16.msra.mxu0 0
    %768 = vmatprep.mubr.bf16.mxu0 0
    %769 = vmatmul.mubr.bf16.gmra.mrb[0].mxu0 %v731
    %v770 = vpop.f32.mrb[0].mxu0
    %v771 = vadd.f32 0.0, %v770
    %v772 = vpop.f32.mrb[0].mxu0
    %v773 = vpop.f32.mrb[0].mxu0
    %v774 = vpop.f32.mrb[0].mxu0
    %775 = vdwg.mxu0
    %776 = vrot.lane.b32.xlu0 %v284, 112
    %v777 = vpop.permute.xlu0 %776
    %v779 = vsel %vm188, %v673, 0
    %v782 = vsel %vm684, %v777, 0
    %784 = vmatprep.subr.bf16.mxu0 0
    %785 = vmatpush1.bf16.msra.mxu0 %v782
    %786 = vmatprep.subr.bf16.mxu0 0
    %787 = vmatpush1.bf16.msra.mxu0 0
    %788 = vmatprep.subr.bf16.mxu0 0
    %789 = vmatpush1.bf16.msra.mxu0 0
    %790 = vmatprep.subr.bf16.mxu0 0
    %791 = vmatpush1.bf16.msra.mxu0 0
    %792 = vmatprep.subr.bf16.mxu0 0
    %793 = vmatpush1.bf16.msra.mxu0 0
    %794 = vmatprep.subr.bf16.mxu0 0
    %795 = vmatpush1.bf16.msra.mxu0 0
    %796 = vmatprep.subr.bf16.mxu0 0
    %797 = vmatpush1.bf16.msra.mxu0 0
    %798 = vmatprep.subr.bf16.mxu0 0
    %799 = vmatpush1.bf16.msra.mxu0 0
    %800 = vmatprep.subr.bf16.mxu0 0
    %801 = vmatpush1.bf16.msra.mxu0 0
    %802 = vmatprep.subr.bf16.mxu0 0
    %803 = vmatpush1.bf16.msra.mxu0 0
    %804 = vmatprep.subr.bf16.mxu0 0
    %805 = vmatpush1.bf16.msra.mxu0 0
    %806 = vmatprep.subr.bf16.mxu0 0
    %807 = vmatpush1.bf16.msra.mxu0 0
    %808 = vmatprep.subr.bf16.mxu0 0
    %809 = vmatpush1.bf16.msra.mxu0 0
    %810 = vmatprep.subr.bf16.mxu0 0
    %811 = vmatpush1.bf16.msra.mxu0 0
    %812 = vmatprep.subr.bf16.mxu0 0
    %813 = vmatpush1.bf16.msra.mxu0 0
    %814 = vmatprep.subr.bf16.mxu0 0
    %815 = vmatpush1.bf16.msra.mxu0 0
    %816 = vmatprep.mubr.bf16.mxu0 0
    %817 = vmatmul.mubr.bf16.gmra.mrb[0].mxu0 %v779
    %v818 = vpop.f32.mrb[0].mxu0
    %v819 = vadd.f32 0.0, %v818
    %v820 = vpop.f32.mrb[0].mxu0
    %v821 = vpop.f32.mrb[0].mxu0
    %v822 = vpop.f32.mrb[0].mxu0
    %823 = vdwg.mxu0
    %824 = vrot.lane.b32.xlu0 %v334, 112
    %v825 = vpop.permute.xlu0 %824
    %v827 = vsel %vm188, %v674, 0
    %v830 = vsel %vm684, %v825, 0
    %832 = vmatprep.subr.bf16.mxu0 0
    %833 = vmatpush1.bf16.msra.mxu0 %v830
    %834 = vmatprep.subr.bf16.mxu0 0
    %835 = vmatpush1.bf16.msra.mxu0 0
    %836 = vmatprep.subr.bf16.mxu0 0
    %837 = vmatpush1.bf16.msra.mxu0 0
    %838 = vmatprep.subr.bf16.mxu0 0
    %839 = vmatpush1.bf16.msra.mxu0 0
    %840 = vmatprep.subr.bf16.mxu0 0
    %841 = vmatpush1.bf16.msra.mxu0 0
    %842 = vmatprep.subr.bf16.mxu0 0
    %843 = vmatpush1.bf16.msra.mxu0 0
    %844 = vmatprep.subr.bf16.mxu0 0
    %845 = vmatpush1.bf16.msra.mxu0 0
    %846 = vmatprep.subr.bf16.mxu0 0
    %847 = vmatpush1.bf16.msra.mxu0 0
    %848 = vmatprep.subr.bf16.mxu0 0
    %849 = vmatpush1.bf16.msra.mxu0 0
    %850 = vmatprep.subr.bf16.mxu0 0
    %851 = vmatpush1.bf16.msra.mxu0 0
    %852 = vmatprep.subr.bf16.mxu0 0
    %853 = vmatpush1.bf16.msra.mxu0 0
    %854 = vmatprep.subr.bf16.mxu0 0
    %855 = vmatpush1.bf16.msra.mxu0 0
    %856 = vmatprep.subr.bf16.mxu0 0
    %857 = vmatpush1.bf16.msra.mxu0 0
    %858 = vmatprep.subr.bf16.mxu0 0
    %859 = vmatpush1.bf16.msra.mxu0 0
    %860 = vmatprep.subr.bf16.mxu0 0
    %861 = vmatpush1.bf16.msra.mxu0 0
    %862 = vmatprep.subr.bf16.mxu0 0
    %863 = vmatpush1.bf16.msra.mxu0 0
    %864 = vmatprep.mubr.bf16.mxu0 0
    %865 = vmatmul.mubr.bf16.gmra.mrb[0].mxu0 %v827
    %v866 = vpop.f32.mrb[0].mxu0
    %v867 = vadd.f32 0.0, %v866
    %v868 = vpop.f32.mrb[0].mxu0
    %v869 = vpop.f32.mrb[0].mxu0
    %v870 = vpop.f32.mrb[0].mxu0
    %871 = vdwg.mxu0
    %872 = vrot.lane.b32.xlu0 %v384, 112
    %v873 = vpop.permute.xlu0 %872
    %v875 = vsel %vm188, %v675, 0
    %v878 = vsel %vm684, %v873, 0
    %880 = vmatprep.subr.bf16.mxu0 0
    %881 = vmatpush1.bf16.msra.mxu0 %v878
    %882 = vmatprep.subr.bf16.mxu0 0
    %883 = vmatpush1.bf16.msra.mxu0 0
    %884 = vmatprep.subr.bf16.mxu0 0
    %885 = vmatpush1.bf16.msra.mxu0 0
    %886 = vmatprep.subr.bf16.mxu0 0
    %887 = vmatpush1.bf16.msra.mxu0 0
    %888 = vmatprep.subr.bf16.mxu0 0
    %889 = vmatpush1.bf16.msra.mxu0 0
    %890 = vmatprep.subr.bf16.mxu0 0
    %891 = vmatpush1.bf16.msra.mxu0 0
    %892 = vmatprep.subr.bf16.mxu0 0
    %893 = vmatpush1.bf16.msra.mxu0 0
    %894 = vmatprep.subr.bf16.mxu0 0
    %895 = vmatpush1.bf16.msra.mxu0 0
    %896 = vmatprep.subr.bf16.mxu0 0
    %897 = vmatpush1.bf16.msra.mxu0 0
    %898 = vmatprep.subr.bf16.mxu0 0
    %899 = vmatpush1.bf16.msra.mxu0 0
    %900 = vmatprep.subr.bf16.mxu0 0
    %901 = vmatpush1.bf16.msra.mxu0 0
    %902 = vmatprep.subr.bf16.mxu0 0
    %903 = vmatpush1.bf16.msra.mxu0 0
    %904 = vmatprep.subr.bf16.mxu0 0
    %905 = vmatpush1.bf16.msra.mxu0 0
    %906 = vmatprep.subr.bf16.mxu0 0
    %907 = vmatpush1.bf16.msra.mxu0 0
    %908 = vmatprep.subr.bf16.mxu0 0
    %909 = vmatpush1.bf16.msra.mxu0 0
    %910 = vmatprep.subr.bf16.mxu0 0
    %911 = vmatpush1.bf16.msra.mxu0 0
    %912 = vmatprep.mubr.bf16.mxu0 0
    %913 = vmatmul.mubr.bf16.gmra.mrb[0].mxu0 %v875
    %v914 = vpop.f32.mrb[0].mxu0
    %v915 = vadd.f32 0.0, %v914
    %v916 = vpop.f32.mrb[0].mxu0
    %v917 = vpop.f32.mrb[0].mxu0
    %v918 = vpop.f32.mrb[0].mxu0
    %919 = vdwg.mxu0
    %920 = vrot.lane.b32.xlu0 %v434, 112
    %v921 = vpop.permute.xlu0 %920
    %v923 = vsel %vm188, %v676, 0
    %v926 = vsel %vm684, %v921, 0
    %928 = vmatprep.subr.bf16.mxu0 0
    %929 = vmatpush1.bf16.msra.mxu0 %v926
    %930 = vmatprep.subr.bf16.mxu0 0
    %931 = vmatpush1.bf16.msra.mxu0 0
    %932 = vmatprep.subr.bf16.mxu0 0
    %933 = vmatpush1.bf16.msra.mxu0 0
    %934 = vmatprep.subr.bf16.mxu0 0
    %935 = vmatpush1.bf16.msra.mxu0 0
    %936 = vmatprep.subr.bf16.mxu0 0
    %937 = vmatpush1.bf16.msra.mxu0 0
    %938 = vmatprep.subr.bf16.mxu0 0
    %939 = vmatpush1.bf16.msra.mxu0 0
    %940 = vmatprep.subr.bf16.mxu0 0
    %941 = vmatpush1.bf16.msra.mxu0 0
    %942 = vmatprep.subr.bf16.mxu0 0
    %943 = vmatpush1.bf16.msra.mxu0 0
    %944 = vmatprep.subr.bf16.mxu0 0
    %945 = vmatpush1.bf16.msra.mxu0 0
    %946 = vmatprep.subr.bf16.mxu0 0
    %947 = vmatpush1.bf16.msra.mxu0 0
    %948 = vmatprep.subr.bf16.mxu0 0
    %949 = vmatpush1.bf16.msra.mxu0 0
    %950 = vmatprep.subr.bf16.mxu0 0
    %951 = vmatpush1.bf16.msra.mxu0 0
    %952 = vmatprep.subr.bf16.mxu0 0
    %953 = vmatpush1.bf16.msra.mxu0 0
    %954 = vmatprep.subr.bf16.mxu0 0
    %955 = vmatpush1.bf16.msra.mxu0 0
    %956 = vmatprep.subr.bf16.mxu0 0
    %957 = vmatpush1.bf16.msra.mxu0 0
    %958 = vmatprep.subr.bf16.mxu0 0
    %959 = vmatpush1.bf16.msra.mxu0 0
    %960 = vmatprep.mubr.bf16.mxu0 0
    %961 = vmatmul.mubr.bf16.gmra.mrb[0].mxu0 %v923
    %v962 = vpop.f32.mrb[0].mxu0
    %v963 = vadd.f32 0.0, %v962
    %v964 = vpop.f32.mrb[0].mxu0
    %v965 = vpop.f32.mrb[0].mxu0
    %v966 = vpop.f32.mrb[0].mxu0
    %967 = vdwg.mxu0
    %968 = vrot.lane.b32.xlu0 %v484, 112
    %v969 = vpop.permute.xlu0 %968
    %v971 = vsel %vm188, %v677, 0
    %v974 = vsel %vm684, %v969, 0
    %976 = vmatprep.subr.bf16.mxu0 0
    %977 = vmatpush1.bf16.msra.mxu0 %v974
    %978 = vmatprep.subr.bf16.mxu0 0
    %979 = vmatpush1.bf16.msra.mxu0 0
    %980 = vmatprep.subr.bf16.mxu0 0
    %981 = vmatpush1.bf16.msra.mxu0 0
    %982 = vmatprep.subr.bf16.mxu0 0
    %983 = vmatpush1.bf16.msra.mxu0 0
    %984 = vmatprep.subr.bf16.mxu0 0
    %985 = vmatpush1.bf16.msra.mxu0 0
    %986 = vmatprep.subr.bf16.mxu0 0
    %987 = vmatpush1.bf16.msra.mxu0 0
    %988 = vmatprep.subr.bf16.mxu0 0
    %989 = vmatpush1.bf16.msra.mxu0 0
    %990 = vmatprep.subr.bf16.mxu0 0
    %991 = vmatpush1.bf16.msra.mxu0 0
    %992 = vmatprep.subr.bf16.mxu0 0
    %993 = vmatpush1.bf16.msra.mxu0 0
    %994 = vmatprep.subr.bf16.mxu0 0
    %995 = vmatpush1.bf16.msra.mxu0 0
    %996 = vmatprep.subr.bf16.mxu0 0
    %997 = vmatpush1.bf16.msra.mxu0 0
    %998 = vmatprep.subr.bf16.mxu0 0
    %999 = vmatpush1.bf16.msra.mxu0 0
    %1000 = vmatprep.subr.bf16.mxu0 0
    %1001 = vmatpush1.bf16.msra.mxu0 0
    %1002 = vmatprep.subr.bf16.mxu0 0
    %1003 = vmatpush1.bf16.msra.mxu0 0
    %1004 = vmatprep.subr.bf16.mxu0 0
    %1005 = vmatpush1.bf16.msra.mxu0 0
    %1006 = vmatprep.subr.bf16.mxu0 0
    %1007 = vmatpush1.bf16.msra.mxu0 0
    %1008 = vmatprep.mubr.bf16.mxu0 0
    %1009 = vmatmul.mubr.bf16.gmra.mrb[0].mxu0 %v971
    %v1010 = vpop.f32.mrb[0].mxu0
    %v1011 = vadd.f32 0.0, %v1010
    %v1012 = vpop.f32.mrb[0].mxu0
    %v1013 = vpop.f32.mrb[0].mxu0
    %v1014 = vpop.f32.mrb[0].mxu0
    %1015 = vdwg.mxu0
    %1016 = vrot.lane.b32.xlu0 %v534, 112
    %v1017 = vpop.permute.xlu0 %1016
    %v1019 = vsel %vm188, %v678, 0
    %v1022 = vsel %vm684, %v1017, 0
    %1024 = vmatprep.subr.bf16.mxu0 0
    %1025 = vmatpush1.bf16.msra.mxu0 %v1022
    %1026 = vmatprep.subr.bf16.mxu0 0
    %1027 = vmatpush1.bf16.msra.mxu0 0
    %1028 = vmatprep.subr.bf16.mxu0 0
    %1029 = vmatpush1.bf16.msra.mxu0 0
    %1030 = vmatprep.subr.bf16.mxu0 0
    %1031 = vmatpush1.bf16.msra.mxu0 0
    %1032 = vmatprep.subr.bf16.mxu0 0
    %1033 = vmatpush1.bf16.msra.mxu0 0
    %1034 = vmatprep.subr.bf16.mxu0 0
    %1035 = vmatpush1.bf16.msra.mxu0 0
    %1036 = vmatprep.subr.bf16.mxu0 0
    %1037 = vmatpush1.bf16.msra.mxu0 0
    %1038 = vmatprep.subr.bf16.mxu0 0
    %1039 = vmatpush1.bf16.msra.mxu0 0
    %1040 = vmatprep.subr.bf16.mxu0 0
    %1041 = vmatpush1.bf16.msra.mxu0 0
    %1042 = vmatprep.subr.bf16.mxu0 0
    %1043 = vmatpush1.bf16.msra.mxu0 0
    %1044 = vmatprep.subr.bf16.mxu0 0
    %1045 = vmatpush1.bf16.msra.mxu0 0
    %1046 = vmatprep.subr.bf16.mxu0 0
    %1047 = vmatpush1.bf16.msra.mxu0 0
    %1048 = vmatprep.subr.bf16.mxu0 0
    %1049 = vmatpush1.bf16.msra.mxu0 0
    %1050 = vmatprep.subr.bf16.mxu0 0
    %1051 = vmatpush1.bf16.msra.mxu0 0
    %1052 = vmatprep.subr.bf16.mxu0 0
    %1053 = vmatpush1.bf16.msra.mxu0 0
    %1054 = vmatprep.subr.bf16.mxu0 0
    %1055 = vmatpush1.bf16.msra.mxu0 0
    %1056 = vmatprep.mubr.bf16.mxu0 0
    %1057 = vmatmul.mubr.bf16.gmra.mrb[0].mxu0 %v1019
    %v1058 = vpop.f32.mrb[0].mxu0
    %v1059 = vadd.f32 0.0, %v1058
    %v1060 = vpop.f32.mrb[0].mxu0
    %v1061 = vpop.f32.mrb[0].mxu0
    %v1062 = vpop.f32.mrb[0].mxu0
    %1063 = vdwg.mxu0
    %1066 = vrot.lane.b32.xlu0 %v819, 8
    %v1067 = vpop.permute.xlu0 %1066
    %1068 = vrot.lane.b32.xlu0 %v867, 8
    %v1069 = vpop.permute.xlu0 %1068
    %1074 = vrot.lane.b32.xlu0 %v915, 16
    %v1075 = vpop.permute.xlu0 %1074
    %1076 = vrot.lane.b32.xlu0 %v963, 16
    %v1077 = vpop.permute.xlu0 %1076
    %1082 = vrot.lane.b32.xlu0 %v1011, 24
    %v1083 = vpop.permute.xlu0 %1082
    %1084 = vrot.lane.b32.xlu0 %v1059, 24
    %v1085 = vpop.permute.xlu0 %1084
    %v1088 = vsel %vm188, %v723, %v1067
    %v1089 = vsel %vm188, %v771, %v1069
    %vm1090 = vcmask 130048
    %v1091 = vsel %vm1090, %v1088, %v1075
    %v1092 = vsel %vm1090, %v1089, %v1077
    %vm1093 = vcmask 195584
    %v1094 = vsel %vm1093, %v1091, %v1083
    %v1095 = vsel %vm1093, %v1092, %v1085
    %v1096 = vpack.c.bf16 %v1095, %v1094
    %v1097 = vld [vmem:[%s5] sm:$0xf]
    %v1098 = vld [vmem:[%s5 + $0x4] sm:$0xf]
    %v1099 = vld [vmem:[%s5 + $0x8] sm:$0xf]
    %v1100 = vld [vmem:[%s5 + $0xc] sm:$0xf]
    %v1101 = vld [vmem:[%s6] sm:$0x1]
    %v1103 = vlaneseq
    %v1104 = vshrl.u32 %v1103, 7
    %v1105 = vsub.s32 0, %v1104
    %v1106 = vrot.slane %v1101, %v1105
    %v1112 = vunpack.c.l.b16 %v1097
    %v1113 = vunpack.c.l.b16 %v1098
    %v1114 = vunpack.c.l.b16 %v1099
    %v1115 = vunpack.c.l.b16 %v1100
    %v1116 = vpack.c.b16 %v1113, %v1112
    %v1117 = vpack.c.b16 %v1115, %v1114
    %v1121 = vsel %vm56, %v1096, 0
    %1123 = vmatprep.subr.bf16.mxu0 0
    %1124 = vmatpush1.bf16.msra.mxu0 %v1116
    %1125 = vmatprep.subr.bf16.mxu0 0
    %1126 = vmatpush1.bf16.msra.mxu0 %v1117
    %1127 = vmatprep.subr.bf16.mxu0 0
    %1128 = vmatpush1.bf16.msra.mxu0 0
    %1129 = vmatprep.subr.bf16.mxu0 0
    %1130 = vmatpush1.bf16.msra.mxu0 0
    %1131 = vmatprep.subr.bf16.mxu0 0
    %1132 = vmatpush1.bf16.msra.mxu0 0
    %1133 = vmatprep.subr.bf16.mxu0 0
    %1134 = vmatpush1.bf16.msra.mxu0 0
    %1135 = vmatprep.subr.bf16.mxu0 0
    %1136 = vmatpush1.bf16.msra.mxu0 0
    %1137 = vmatprep.subr.bf16.mxu0 0
    %1138 = vmatpush1.bf16.msra.mxu0 0
    %1139 = vmatprep.subr.bf16.mxu0 0
    %1140 = vmatpush1.bf16.msra.mxu0 0
    %1141 = vmatprep.subr.bf16.mxu0 0
    %1142 = vmatpush1.bf16.msra.mxu0 0
    %1143 = vmatprep.subr.bf16.mxu0 0
    %1144 = vmatpush1.bf16.msra.mxu0 0
    %1145 = vmatprep.subr.bf16.mxu0 0
    %1146 = vmatpush1.bf16.msra.mxu0 0
    %1147 = vmatprep.subr.bf16.mxu0 0
    %1148 = vmatpush1.bf16.msra.mxu0 0
    %1149 = vmatprep.subr.bf16.mxu0 0
    %1150 = vmatpush1.bf16.msra.mxu0 0
    %1151 = vmatprep.subr.bf16.mxu0 0
    %1152 = vmatpush1.bf16.msra.mxu0 0
    %1153 = vmatprep.subr.bf16.mxu0 0
    %1154 = vmatpush1.bf16.msra.mxu0 0
    %1155 = vmatprep.mubr.bf16.mxu0 0
    %1156 = vmatmul.mubr.bf16.gmra.mrb[0].mxu0 %v1121
    %v1157 = vpop.f32.mrb[0].mxu0
    %v1158 = vadd.f32 %v1106, %v1157
    %v1159 = vpop.f32.mrb[0].mxu0
    %v1160 = vpop.f32.mrb[0].mxu0
    %v1161 = vadd.f32 %v1106, %v1160
    %v1162 = vpop.f32.mrb[0].mxu0
    %1163 = vdwg.mxu0
    %v1164 = vadd.f32 %v98, %v1158
    %v1165 = vadd.f32 %v99, %v1161
    %v1166 = vld [vmem:[%s7] sm:$0x1]
    %v1167 = vld [vmem:[%s8] sm:$0x1]
    %v1168 = vsel %vm56, %v1164, 0.0
    %1169 = vadd.xlane.f32.xlu0 %v1168
    %v1170 = vpop.xlane.xlu0 %1169
    %v1171 = vsel %vm56, %v1165, 0.0
    %1172 = vadd.xlane.f32.xlu0 %v1171
    %v1173 = vpop.xlane.xlu0 %1172
    %v1174 = vmul.f32 %v1170, %v63
    %v1175 = vmul.f32 %v1173, %v63
    %v1176 = vsub.f32 %v1164, %v1174
    %v1177 = vsub.f32 %v1165, %v1175
    %v1178 = vmul.f32 %v1176, %v1176
    %v1179 = vmul.f32 %v1177, %v1177
    %v1180 = vsel %vm56, %v1178, 0.0
    %1181 = vadd.xlane.f32.xlu0 %v1180
    %v1182 = vpop.xlane.xlu0 %1181
    %v1183 = vsel %vm56, %v1179, 0.0
    %1184 = vadd.xlane.f32.xlu0 %v1183
    %v1185 = vpop.xlane.xlu0 %1184
    %v1186 = vmul.f32 %v1182, %v63
    %v1187 = vmul.f32 %v1185, %v63
    %v1188 = vadd.f32 %v1186, 1e-12
    %v1189 = vadd.f32 %v1187, 1e-12
    %v1190 = vrsqrt.pop %v1188
    %v1191 = vrsqrt.pop %v1189
    %v1192 = vmul.f32 %v1176, %v1190
    %v1193 = vmul.f32 %v1177, %v1191
    %v1195 = vlaneseq
    %v1196 = vshrl.u32 %v1195, 7
    %v1197 = vsub.s32 0, %v1196
    %v1198 = vrot.slane %v1166, %v1197
    %v1200 = vmul.f32 %v1192, %v1198
    %v1201 = vmul.f32 %v1193, %v1198
    %v1203 = vlaneseq
    %v1204 = vshrl.u32 %v1203, 7
    %v1205 = vsub.s32 0, %v1204
    %v1206 = vrot.slane %v1167, %v1205
    %v1208 = vadd.f32 %v1200, %v1206
    %v1209 = vadd.f32 %v1201, %v1206
    %v1210 = vpack.c.bf16 %v1209, %v1208
    %v1211 = vld [vmem:[%s9] sm:$0xf]
    %v1212 = vld [vmem:[%s9 + $0x4] sm:$0xf]
    %v1213 = vld [vmem:[%s9 + $0x8] sm:$0xf]
    %v1214 = vld [vmem:[%s9 + $0xc] sm:$0xf]
    %v1215 = vld [vmem:[%s10] sm:$0x1]
    %v1217 = vlaneseq
    %v1218 = vshrl.u32 %v1217, 7
    %v1219 = vsub.s32 0, %v1218
    %v1220 = vrot.slane %v1215, %v1219
    %v1226 = vunpack.c.l.b16 %v1211
    %v1227 = vunpack.c.l.b16 %v1212
    %v1228 = vunpack.c.l.b16 %v1213
    %v1229 = vunpack.c.l.b16 %v1214
    %v1230 = vpack.c.b16 %v1227, %v1226
    %v1231 = vpack.c.b16 %v1229, %v1228
    %v1235 = vsel %vm56, %v1210, 0
    %1237 = vmatprep.subr.bf16.mxu0 0
    %1238 = vmatpush1.bf16.msra.mxu0 %v1230
    %1239 = vmatprep.subr.bf16.mxu0 0
    %1240 = vmatpush1.bf16.msra.mxu0 %v1231
    %1241 = vmatprep.subr.bf16.mxu0 0
    %1242 = vmatpush1.bf16.msra.mxu0 0
    %1243 = vmatprep.subr.bf16.mxu0 0
    %1244 = vmatpush1.bf16.msra.mxu0 0
    %1245 = vmatprep.subr.bf16.mxu0 0
    %1246 = vmatpush1.bf16.msra.mxu0 0
    %1247 = vmatprep.subr.bf16.mxu0 0
    %1248 = vmatpush1.bf16.msra.mxu0 0
    %1249 = vmatprep.subr.bf16.mxu0 0
    %1250 = vmatpush1.bf16.msra.mxu0 0
    %1251 = vmatprep.subr.bf16.mxu0 0
    %1252 = vmatpush1.bf16.msra.mxu0 0
    %1253 = vmatprep.subr.bf16.mxu0 0
    %1254 = vmatpush1.bf16.msra.mxu0 0
    %1255 = vmatprep.subr.bf16.mxu0 0
    %1256 = vmatpush1.bf16.msra.mxu0 0
    %1257 = vmatprep.subr.bf16.mxu0 0
    %1258 = vmatpush1.bf16.msra.mxu0 0
    %1259 = vmatprep.subr.bf16.mxu0 0
    %1260 = vmatpush1.bf16.msra.mxu0 0
    %1261 = vmatprep.subr.bf16.mxu0 0
    %1262 = vmatpush1.bf16.msra.mxu0 0
    %1263 = vmatprep.subr.bf16.mxu0 0
    %1264 = vmatpush1.bf16.msra.mxu0 0
    %1265 = vmatprep.subr.bf16.mxu0 0
    %1266 = vmatpush1.bf16.msra.mxu0 0
    %1267 = vmatprep.subr.bf16.mxu0 0
    %1268 = vmatpush1.bf16.msra.mxu0 0
    %1269 = vmatprep.mubr.bf16.mxu0 0
    %1270 = vmatmul.mubr.bf16.gmra.mrb[0].mxu0 %v1235
    %v1271 = vpop.f32.mrb[0].mxu0
    %v1272 = vadd.f32 %v1220, %v1271
    %v1273 = vpop.f32.mrb[0].mxu0
    %v1274 = vpop.f32.mrb[0].mxu0
    %v1275 = vadd.f32 %v1220, %v1274
    %v1276 = vpop.f32.mrb[0].mxu0
    %1277 = vdwg.mxu0
    %v1278 = vmul.f32 %v1272, 0.5
    %v1279 = vmul.f32 %v1275, 0.5
    %v1280 = vmul.f32 %v1272, 0.044715
    %v1281 = vmul.f32 %v1275, 0.044715
    %v1282 = vmul.f32 %v1280, %v1272
    %v1283 = vmul.f32 %v1281, %v1275
    %v1284 = vmul.f32 %v1282, %v1272
    %v1285 = vmul.f32 %v1283, %v1275
    %v1286 = vadd.f32 %v1272, %v1284
    %v1287 = vadd.f32 %v1275, %v1285
    %v1288 = vmul.f32 %v1286, 0.7978846
    %v1289 = vmul.f32 %v1287, 0.7978846
    %v1290 = vtanh.pop %v1288
    %v1291 = vtanh.pop %v1289
    %v1292 = vadd.f32 %v1290, 1.0
    %v1293 = vadd.f32 %v1291, 1.0
    %v1294 = vmul.f32 %v1278, %v1292
    %v1295 = vmul.f32 %v1279, %v1293
    %v1296 = vpack.c.bf16 %v1295, %v1294
    %v1297 = vld [vmem:[%s11] sm:$0xf]
    %v1298 = vld [vmem:[%s11 + $0x4] sm:$0xf]
    %v1299 = vld [vmem:[%s11 + $0x8] sm:$0xf]
    %v1300 = vld [vmem:[%s11 + $0xc] sm:$0xf]
    %v1301 = vld [vmem:[%s11 + $0x10] sm:$0xf]
    %v1302 = vld [vmem:[%s11 + $0x14] sm:$0xf]
    %v1303 = vld [vmem:[%s11 + $0x18] sm:$0xf]
    %v1304 = vld [vmem:[%s11 + $0x1c] sm:$0xf]
    %v1305 = vld [vmem:[%s12] sm:$0x1]
    %v1307 = vlaneseq
    %v1308 = vshrl.u32 %v1307, 7
    %v1309 = vsub.s32 0, %v1308
    %v1310 = vrot.slane %v1305, %v1309
    %v1320 = vunpack.c.l.b16 %v1297
    %v1321 = vunpack.c.l.b16 %v1298
    %v1322 = vunpack.c.l.b16 %v1299
    %v1323 = vunpack.c.l.b16 %v1300
    %v1324 = vunpack.c.l.b16 %v1301
    %v1325 = vunpack.c.l.b16 %v1302
    %v1326 = vunpack.c.l.b16 %v1303
    %v1327 = vunpack.c.l.b16 %v1304
    %v1328 = vpack.c.b16 %v1321, %v1320
    %v1329 = vpack.c.b16 %v1323, %v1322
    %v1330 = vpack.c.b16 %v1325, %v1324
    %v1331 = vpack.c.b16 %v1327, %v1326
    %vm1336 = vcmask 523264
    %v1338 = vsel %vm1336, %v1296, 0
    %1340 = vmatprep.subr.bf16.mxu0 0
    %1341 = vmatpush1.bf16.msra.mxu0 %v1328
    %1342 = vmatprep.subr.bf16.mxu0 0
    %1343 = vmatpush1.bf16.msra.mxu0 %v1329
    %1344 = vmatprep.subr.bf16.mxu0 0
    %1345 = vmatpush1.bf16.msra.mxu0 %v1330
    %1346 = vmatprep.subr.bf16.mxu0 0
    %1347 = vmatpush1.bf16.msra.mxu0 %v1331
    %1348 = vmatprep.subr.bf16.mxu0 0
    %1349 = vmatpush1.bf16.msra.mxu0 0
    %1350 = vmatprep.subr.bf16.mxu0 0
    %1351 = vmatpush1.bf16.msra.mxu0 0
    %1352 = vmatprep.subr.bf16.mxu0 0
    %1353 = vmatpush1.bf16.msra.mxu0 0
    %1354 = vmatprep.subr.bf16.mxu0 0
    %1355 = vmatpush1.bf16.msra.mxu0 0
    %1356 = vmatprep.subr.bf16.mxu0 0
    %1357 = vmatpush1.bf16.msra.mxu0 0
    %1358 = vmatprep.subr.bf16.mxu0 0
    %1359 = vmatpush1.bf16.msra.mxu0 0
    %1360 = vmatprep.subr.bf16.mxu0 0
    %1361 = vmatpush1.bf16.msra.mxu0 0
    %1362 = vmatprep.subr.bf16.mxu0 0
    %1363 = vmatpush1.bf16.msra.mxu0 0
    %1364 = vmatprep.subr.bf16.mxu0 0
    %1365 = vmatpush1.bf16.msra.mxu0 0
    %1366 = vmatprep.subr.bf16.mxu0 0
    %1367 = vmatpush1.bf16.msra.mxu0 0
    %1368 = vmatprep.subr.bf16.mxu0 0
    %1369 = vmatpush1.bf16.msra.mxu0 0
    %1370 = vmatprep.subr.bf16.mxu0 0
    %1371 = vmatpush1.bf16.msra.mxu0 0
    %1372 = vmatprep.mubr.bf16.mxu0 0
    %1373 = vmatmul.mubr.bf16.gmra.mrb[0].mxu0 %v1338
    %v1374 = vpop.f32.mrb[0].mxu0
    %v1375 = vadd.f32 %v1310, %v1374
    %v1376 = vpop.f32.mrb[0].mxu0
    %v1377 = vpop.f32.mrb[0].mxu0
    %v1378 = vadd.f32 %v1310, %v1377
    %v1379 = vpop.f32.mrb[0].mxu0
    %1380 = vdwg.mxu0
    %v1381 = vadd.f32 %v1208, %v1375
    %v1382 = vadd.f32 %v1209, %v1378
    %v1383 = vld [vmem:[%s13] sm:$0x1]
    %v1384 = vld [vmem:[%s14] sm:$0x1]
    %v1385 = vsel %vm56, %v1381, 0.0
    %1386 = vadd.xlane.f32.xlu0 %v1385
    %v1387 = vpop.xlane.xlu0 %1386
    %v1388 = vsel %vm56, %v1382, 0.0
    %1389 = vadd.xlane.f32.xlu0 %v1388
    %v1390 = vpop.xlane.xlu0 %1389
    %v1391 = vmul.f32 %v1387, %v63
    %v1392 = vmul.f32 %v1390, %v63
    %v1393 = vsub.f32 %v1381, %v1391
    %v1394 = vsub.f32 %v1382, %v1392
    %v1395 = vmul.f32 %v1393, %v1393
    %v1396 = vmul.f32 %v1394, %v1394
    %v1397 = vsel %vm56, %v1395, 0.0
    %1398 = vadd.xlane.f32.xlu0 %v1397
    %v1399 = vpop.xlane.xlu0 %1398
    %v1400 = vsel %vm56, %v1396, 0.0
    %1401 = vadd.xlane.f32.xlu0 %v1400
    %v1402 = vpop.xlane.xlu0 %1401
    %v1403 = vmul.f32 %v1399, %v63
    %v1404 = vmul.f32 %v1402, %v63
    %v1405 = vadd.f32 %v1403, 1e-12
    %v1406 = vadd.f32 %v1404, 1e-12
    %v1407 = vrsqrt.pop %v1405
    %v1408 = vrsqrt.pop %v1406
    %v1409 = vmul.f32 %v1393, %v1407
    %v1410 = vmul.f32 %v1394, %v1408
    %v1412 = vlaneseq
    %v1413 = vshrl.u32 %v1412, 7
    %v1414 = vsub.s32 0, %v1413
    %v1415 = vrot.slane %v1383, %v1414
    %v1417 = vmul.f32 %v1409, %v1415
    %v1418 = vmul.f32 %v1410, %v1415
    %v1420 = vlaneseq
    %v1421 = vshrl.u32 %v1420, 7
    %v1422 = vsub.s32 0, %v1421
    %v1423 = vrot.slane %v1384, %v1422
    %v1425 = vadd.f32 %v1417, %v1423
    %v1426 = vadd.f32 %v1418, %v1423
    %v1427 = vpack.c.bf16 %v1426, %v1425
    %s1428 = scalar_lea.vmem %s3, 16
    %v1429 = vld [vmem:[%s1428] sm:$0xf]
    %v1430 = vld [vmem:[%s1428 + $0x4] sm:$0xf]
    %v1431 = vld [vmem:[%s1428 + $0x8] sm:$0xf]
    %v1432 = vld [vmem:[%s1428 + $0xc] sm:$0xf]
    %s1433 = scalar_lea.vmem %s4, 1
    %v1434 = vld [vmem:[%s1433] sm:$0x1]
    %v1436 = vlaneseq
    %v1437 = vshrl.u32 %v1436, 7
    %v1438 = vsub.s32 0, %v1437
    %v1439 = vrot.slane %v1434, %v1438
    %v1445 = vunpack.c.l.b16 %v1429
    %v1446 = vunpack.c.l.b16 %v1430
    %v1447 = vunpack.c.l.b16 %v1431
    %v1448 = vunpack.c.l.b16 %v1432
    %v1449 = vpack.c.b16 %v1446, %v1445
    %v1450 = vpack.c.b16 %v1448, %v1447
    %v1454 = vsel %vm56, %v1427, 0
    %1456 = vmatprep.subr.bf16.mxu0 0
    %1457 = vmatpush1.bf16.msra.mxu0 %v1449
    %1458 = vmatprep.subr.bf16.mxu0 0
    %1459 = vmatpush1.bf16.msra.mxu0 %v1450
    %1460 = vmatprep.subr.bf16.mxu0 0
    %1461 = vmatpush1.bf16.msra.mxu0 0
    %1462 = vmatprep.subr.bf16.mxu0 0
    %1463 = vmatpush1.bf16.msra.mxu0 0
    %1464 = vmatprep.subr.bf16.mxu0 0
    %1465 = vmatpush1.bf16.msra.mxu0 0
    %1466 = vmatprep.subr.bf16.mxu0 0
    %1467 = vmatpush1.bf16.msra.mxu0 0
    %1468 = vmatprep.subr.bf16.mxu0 0
    %1469 = vmatpush1.bf16.msra.mxu0 0
    %1470 = vmatprep.subr.bf16.mxu0 0
    %1471 = vmatpush1.bf16.msra.mxu0 0
    %1472 = vmatprep.subr.bf16.mxu0 0
    %1473 = vmatpush1.bf16.msra.mxu0 0
    %1474 = vmatprep.subr.bf16.mxu0 0
    %1475 = vmatpush1.bf16.msra.mxu0 0
    %1476 = vmatprep.subr.bf16.mxu0 0
    %1477 = vmatpush1.bf16.msra.mxu0 0
    %1478 = vmatprep.subr.bf16.mxu0 0
    %1479 = vmatpush1.bf16.msra.mxu0 0
    %1480 = vmatprep.subr.bf16.mxu0 0
    %1481 = vmatpush1.bf16.msra.mxu0 0
    %1482 = vmatprep.subr.bf16.mxu0 0
    %1483 = vmatpush1.bf16.msra.mxu0 0
    %1484 = vmatprep.subr.bf16.mxu0 0
    %1485 = vmatpush1.bf16.msra.mxu0 0
    %1486 = vmatprep.subr.bf16.mxu0 0
    %1487 = vmatpush1.bf16.msra.mxu0 0
    %1488 = vmatprep.mubr.bf16.mxu0 0
    %1489 = vmatmul.mubr.bf16.gmra.mrb[0].mxu0 %v1454
    %v1490 = vpop.f32.mrb[0].mxu0
    %v1491 = vadd.f32 %v1439, %v1490
    %v1492 = vpop.f32.mrb[0].mxu0
    %v1493 = vpop.f32.mrb[0].mxu0
    %v1494 = vadd.f32 %v1439, %v1493
    %v1495 = vpop.f32.mrb[0].mxu0
    %1496 = vdwg.mxu0
    %v1497 = vpack.c.bf16 %v1494, %v1491
    %v1499 = vunpack.c.l.b16 %v1497
    %v1500 = vunpack.c.h.b16 %v1497
    %v1501 = vpack.c.b16 %v1499, %v1499
    %v1502 = vpack.c.b16 %v1500, %v1500
    %1503 = vrot.lane.b32.xlu0 %v1501, 104
    %v1504 = vpop.permute.xlu0 %1503
    %1505 = vrot.lane.b32.xlu0 %v1502, 104
    %v1506 = vpop.permute.xlu0 %1505
    %1507 = vrot.lane.b32.xlu0 %v1501, 80
    %v1508 = vpop.permute.xlu0 %1507
    %1509 = vrot.lane.b32.xlu0 %v1502, 80
    %v1510 = vpop.permute.xlu0 %1509
    %1511 = vrot.lane.b32.xlu0 %v1501, 56
    %v1512 = vpop.permute.xlu0 %1511
    %1513 = vrot.lane.b32.xlu0 %v1502, 56
    %v1514 = vpop.permute.xlu0 %1513
    %1515 = vrot.lane.b32.xlu0 %v1501, 120
    %v1516 = vpop.permute.xlu0 %1515
    %v1518 = vsel %vm188, %v1501, 0
    %v1521 = vsel %vm188, %v1516, 0
    %1523 = vmatprep.subr.bf16.mxu0 0
    %1524 = vmatpush1.bf16.xpose.msra.mxu0 %v1521
    %1525 = vmatprep.subr.bf16.mxu0 0
    %1526 = vmatpush1.bf16.xpose.msra.mxu0 0
    %1527 = vmatprep.subr.bf16.mxu0 0
    %1528 = vmatpush1.bf16.xpose.msra.mxu0 0
    %1529 = vmatprep.subr.bf16.mxu0 0
    %1530 = vmatpush1.bf16.xpose.msra.mxu0 0
    %1531 = vmatprep.subr.bf16.mxu0 0
    %1532 = vmatpush1.bf16.xpose.msra.mxu0 0
    %1533 = vmatprep.subr.bf16.mxu0 0
    %1534 = vmatpush1.bf16.xpose.msra.mxu0 0
    %1535 = vmatprep.subr.bf16.mxu0 0
    %1536 = vmatpush1.bf16.xpose.msra.mxu0 0
    %1537 = vmatprep.subr.bf16.mxu0 0
    %1538 = vmatpush1.bf16.xpose.msra.mxu0 0
    %1539 = vmatprep.subr.bf16.mxu0 0
    %1540 = vmatpush1.bf16.xpose.msra.mxu0 0
    %1541 = vmatprep.subr.bf16.mxu0 0
    %1542 = vmatpush1.bf16.xpose.msra.mxu0 0
    %1543 = vmatprep.subr.bf16.mxu0 0
    %1544 = vmatpush1.bf16.xpose.msra.mxu0 0
    %1545 = vmatprep.subr.bf16.mxu0 0
    %1546 = vmatpush1.bf16.xpose.msra.mxu0 0
    %1547 = vmatprep.subr.bf16.mxu0 0
    %1548 = vmatpush1.bf16.xpose.msra.mxu0 0
    %1549 = vmatprep.subr.bf16.mxu0 0
    %1550 = vmatpush1.bf16.xpose.msra.mxu0 0
    %1551 = vmatprep.subr.bf16.mxu0 0
    %1552 = vmatpush1.bf16.xpose.msra.mxu0 0
    %1553 = vmatprep.subr.bf16.mxu0 0
    %1554 = vmatpush1.bf16.xpose.msra.mxu0 0
    %1555 = vmatprep.mubr.bf16.mxu0 0
    %1556 = vmatmul.mubr.bf16.gmra.mrb[0].mxu0 %v1518
    %v1557 = vpop.f32.mrb[0].mxu0
    %v1558 = vadd.f32 0.0, %v1557
    %v1559 = vpop.f32.mrb[0].mxu0
    %v1560 = vpop.f32.mrb[0].mxu0
    %v1561 = vpop.f32.mrb[0].mxu0
    %1562 = vdwg.mxu0
    %1563 = vrot.lane.b32.xlu0 %v1502, 120
    %v1564 = vpop.permute.xlu0 %1563
    %v1566 = vsel %vm188, %v1502, 0
    %v1569 = vsel %vm188, %v1564, 0
    %1571 = vmatprep.subr.bf16.mxu0 0
    %1572 = vmatpush1.bf16.xpose.msra.mxu0 %v1569
    %1573 = vmatprep.subr.bf16.mxu0 0
    %1574 = vmatpush1.bf16.xpose.msra.mxu0 0
    %1575 = vmatprep.subr.bf16.mxu0 0
    %1576 = vmatpush1.bf16.xpose.msra.mxu0 0
    %1577 = vmatprep.subr.bf16.mxu0 0
    %1578 = vmatpush1.bf16.xpose.msra.mxu0 0
    %1579 = vmatprep.subr.bf16.mxu0 0
    %1580 = vmatpush1.bf16.xpose.msra.mxu0 0
    %1581 = vmatprep.subr.bf16.mxu0 0
    %1582 = vmatpush1.bf16.xpose.msra.mxu0 0
    %1583 = vmatprep.subr.bf16.mxu0 0
    %1584 = vmatpush1.bf16.xpose.msra.mxu0 0
    %1585 = vmatprep.subr.bf16.mxu0 0
    %1586 = vmatpush1.bf16.xpose.msra.mxu0 0
    %1587 = vmatprep.subr.bf16.mxu0 0
    %1588 = vmatpush1.bf16.xpose.msra.mxu0 0
    %1589 = vmatprep.subr.bf16.mxu0 0
    %1590 = vmatpush1.bf16.xpose.msra.mxu0 0
    %1591 = vmatprep.subr.bf16.mxu0 0
    %1592 = vmatpush1.bf16.xpose.msra.mxu0 0
    %1593 = vmatprep.subr.bf16.mxu0 0
    %1594 = vmatpush1.bf16.xpose.msra.mxu0 0
    %1595 = vmatprep.subr.bf16.mxu0 0
    %1596 = vmatpush1.bf16.xpose.msra.mxu0 0
    %1597 = vmatprep.subr.bf16.mxu0 0
    %1598 = vmatpush1.bf16.xpose.msra.mxu0 0
    %1599 = vmatprep.subr.bf16.mxu0 0
    %1600 = vmatpush1.bf16.xpose.msra.mxu0 0
    %1601 = vmatprep.subr.bf16.mxu0 0
    %1602 = vmatpush1.bf16.xpose.msra.mxu0 0
    %1603 = vmatprep.mubr.bf16.mxu0 0
    %1604 = vmatmul.mubr.bf16.gmra.mrb[0].mxu0 %v1566
    %v1605 = vpop.f32.mrb[0].mxu0
    %v1606 = vadd.f32 0.0, %v1605
    %v1607 = vpop.f32.mrb[0].mxu0
    %v1608 = vpop.f32.mrb[0].mxu0
    %v1609 = vpop.f32.mrb[0].mxu0
    %1610 = vdwg.mxu0
    %v1611 = vunpack.c.l.b16 %v1504
    %v1612 = vpack.c.b16 %v1611, %v1611
    %1613 = vrot.lane.b32.xlu0 %v1612, 120
    %v1614 = vpop.permute.xlu0 %1613
    %v1616 = vsel %vm188, %v1504, 0
    %v1619 = vsel %vm188, %v1614, 0
    %1621 = vmatprep.subr.bf16.mxu0 0
    %1622 = vmatpush1.bf16.xpose.msra.mxu0 %v1619
    %1623 = vmatprep.subr.bf16.mxu0 0
    %1624 = vmatpush1.bf16.xpose.msra.mxu0 0
    %1625 = vmatprep.subr.bf16.mxu0 0
    %1626 = vmatpush1.bf16.xpose.msra.mxu0 0
    %1627 = vmatprep.subr.bf16.mxu0 0
    %1628 = vmatpush1.bf16.xpose.msra.mxu0 0
    %1629 = vmatprep.subr.bf16.mxu0 0
    %1630 = vmatpush1.bf16.xpose.msra.mxu0 0
    %1631 = vmatprep.subr.bf16.mxu0 0
    %1632 = vmatpush1.bf16.xpose.msra.mxu0 0
    %1633 = vmatprep.subr.bf16.mxu0 0
    %1634 = vmatpush1.bf16.xpose.msra.mxu0 0
    %1635 = vmatprep.subr.bf16.mxu0 0
    %1636 = vmatpush1.bf16.xpose.msra.mxu0 0
    %1637 = vmatprep.subr.bf16.mxu0 0
    %1638 = vmatpush1.bf16.xpose.msra.mxu0 0
    %1639 = vmatprep.subr.bf16.mxu0 0
    %1640 = vmatpush1.bf16.xpose.msra.mxu0 0
    %1641 = vmatprep.subr.bf16.mxu0 0
    %1642 = vmatpush1.bf16.xpose.msra.mxu0 0
    %1643 = vmatprep.subr.bf16.mxu0 0
    %1644 = vmatpush1.bf16.xpose.msra.mxu0 0
    %1645 = vmatprep.subr.bf16.mxu0 0
    %1646 = vmatpush1.bf16.xpose.msra.mxu0 0
    %1647 = vmatprep.subr.bf16.mxu0 0
    %1648 = vmatpush1.bf16.xpose.msra.mxu0 0
    %1649 = vmatprep.subr.bf16.mxu0 0
    %1650 = vmatpush1.bf16.xpose.msra.mxu0 0
    %1651 = vmatprep.subr.bf16.mxu0 0
    %1652 = vmatpush1.bf16.xpose.msra.mxu0 0
    %1653 = vmatprep.mubr.bf16.mxu0 0
    %1654 = vmatmul.mubr.bf16.gmra.mrb[0].mxu0 %v1616
    %v1655 = vpop.f32.mrb[0].mxu0
    %v1656 = vadd.f32 0.0, %v1655
    %v1657 = vpop.f32.mrb[0].mxu0
    %v1658 = vpop.f32.mrb[0].mxu0
    %v1659 = vpop.f32.mrb[0].mxu0
    %1660 = vdwg.mxu0
    %v1661 = vunpack.c.l.b16 %v1506
    %v1662 = vpack.c.b16 %v1661, %v1661
    %1663 = vrot.lane.b32.xlu0 %v1662, 120
    %v1664 = vpop.permute.xlu0 %1663
    %v1666 = vsel %vm188, %v1506, 0
    %v1669 = vsel %vm188, %v1664, 0
    %1671 = vmatprep.subr.bf16.mxu0 0
    %1672 = vmatpush1.bf16.xpose.msra.mxu0 %v1669
    %1673 = vmatprep.subr.bf16.mxu0 0
    %1674 = vmatpush1.bf16.xpose.msra.mxu0 0
    %1675 = vmatprep.subr.bf16.mxu0 0
    %1676 = vmatpush1.bf16.xpose.msra.mxu0 0
    %1677 = vmatprep.subr.bf16.mxu0 0
    %1678 = vmatpush1.bf16.xpose.msra.mxu0 0
    %1679 = vmatprep.subr.bf16.mxu0 0
    %1680 = vmatpush1.bf16.xpose.msra.mxu0 0
    %1681 = vmatprep.subr.bf16.mxu0 0
    %1682 = vmatpush1.bf16.xpose.msra.mxu0 0
    %1683 = vmatprep.subr.bf16.mxu0 0
    %1684 = vmatpush1.bf16.xpose.msra.mxu0 0
    %1685 = vmatprep.subr.bf16.mxu0 0
    %1686 = vmatpush1.bf16.xpose.msra.mxu0 0
    %1687 = vmatprep.subr.bf16.mxu0 0
    %1688 = vmatpush1.bf16.xpose.msra.mxu0 0
    %1689 = vmatprep.subr.bf16.mxu0 0
    %1690 = vmatpush1.bf16.xpose.msra.mxu0 0
    %1691 = vmatprep.subr.bf16.mxu0 0
    %1692 = vmatpush1.bf16.xpose.msra.mxu0 0
    %1693 = vmatprep.subr.bf16.mxu0 0
    %1694 = vmatpush1.bf16.xpose.msra.mxu0 0
    %1695 = vmatprep.subr.bf16.mxu0 0
    %1696 = vmatpush1.bf16.xpose.msra.mxu0 0
    %1697 = vmatprep.subr.bf16.mxu0 0
    %1698 = vmatpush1.bf16.xpose.msra.mxu0 0
    %1699 = vmatprep.subr.bf16.mxu0 0
    %1700 = vmatpush1.bf16.xpose.msra.mxu0 0
    %1701 = vmatprep.subr.bf16.mxu0 0
    %1702 = vmatpush1.bf16.xpose.msra.mxu0 0
    %1703 = vmatprep.mubr.bf16.mxu0 0
    %1704 = vmatmul.mubr.bf16.gmra.mrb[0].mxu0 %v1666
    %v1705 = vpop.f32.mrb[0].mxu0
    %v1706 = vadd.f32 0.0, %v1705
    %v1707 = vpop.f32.mrb[0].mxu0
    %v1708 = vpop.f32.mrb[0].mxu0
    %v1709 = vpop.f32.mrb[0].mxu0
    %1710 = vdwg.mxu0
    %v1711 = vunpack.c.l.b16 %v1508
    %v1712 = vpack.c.b16 %v1711, %v1711
    %1713 = vrot.lane.b32.xlu0 %v1712, 120
    %v1714 = vpop.permute.xlu0 %1713
    %v1716 = vsel %vm188, %v1508, 0
    %v1719 = vsel %vm188, %v1714, 0
    %1721 = vmatprep.subr.bf16.mxu0 0
    %1722 = vmatpush1.bf16.xpose.msra.mxu0 %v1719
    %1723 = vmatprep.subr.bf16.mxu0 0
    %1724 = vmatpush1.bf16.xpose.msra.mxu0 0
    %1725 = vmatprep.subr.bf16.mxu0 0
    %1726 = vmatpush1.bf16.xpose.msra.mxu0 0
    %1727 = vmatprep.subr.bf16.mxu0 0
    %1728 = vmatpush1.bf16.xpose.msra.mxu0 0
    %1729 = vmatprep.subr.bf16.mxu0 0
    %1730 = vmatpush1.bf16.xpose.msra.mxu0 0
    %1731 = vmatprep.subr.bf16.mxu0 0
    %1732 = vmatpush1.bf16.xpose.msra.mxu0 0
    %1733 = vmatprep.subr.bf16.mxu0 0
    %1734 = vmatpush1.bf16.xpose.msra.mxu0 0
    %1735 = vmatprep.subr.bf16.mxu0 0
    %1736 = vmatpush1.bf16.xpose.msra.mxu0 0
    %1737 = vmatprep.subr.bf16.mxu0 0
    %1738 = vmatpush1.bf16.xpose.msra.mxu0 0
    %1739 = vmatprep.subr.bf16.mxu0 0
    %1740 = vmatpush1.bf16.xpose.msra.mxu0 0
    %1741 = vmatprep.subr.bf16.mxu0 0
    %1742 = vmatpush1.bf16.xpose.msra.mxu0 0
    %1743 = vmatprep.subr.bf16.mxu0 0
    %1744 = vmatpush1.bf16.xpose.msra.mxu0 0
    %1745 = vmatprep.subr.bf16.mxu0 0
    %1746 = vmatpush1.bf16.xpose.msra.mxu0 0
    %1747 = vmatprep.subr.bf16.mxu0 0
    %1748 = vmatpush1.bf16.xpose.msra.mxu0 0
    %1749 = vmatprep.subr.bf16.mxu0 0
    %1750 = vmatpush1.bf16.xpose.msra.mxu0 0
    %1751 = vmatprep.subr.bf16.mxu0 0
    %1752 = vmatpush1.bf16.xpose.msra.mxu0 0
    %1753 = vmatprep.mubr.bf16.mxu0 0
    %1754 = vmatmul.mubr.bf16.gmra.mrb[0].mxu0 %v1716
    %v1755 = vpop.f32.mrb[0].mxu0
    %v1756 = vadd.f32 0.0, %v1755
    %v1757 = vpop.f32.mrb[0].mxu0
    %v1758 = vpop.f32.mrb[0].mxu0
    %v1759 = vpop.f32.mrb[0].mxu0
    %1760 = vdwg.mxu0
    %v1761 = vunpack.c.l.b16 %v1510
    %v1762 = vpack.c.b16 %v1761, %v1761
    %1763 = vrot.lane.b32.xlu0 %v1762, 120
    %v1764 = vpop.permute.xlu0 %1763
    %v1766 = vsel %vm188, %v1510, 0
    %v1769 = vsel %vm188, %v1764, 0
    %1771 = vmatprep.subr.bf16.mxu0 0
    %1772 = vmatpush1.bf16.xpose.msra.mxu0 %v1769
    %1773 = vmatprep.subr.bf16.mxu0 0
    %1774 = vmatpush1.bf16.xpose.msra.mxu0 0
    %1775 = vmatprep.subr.bf16.mxu0 0
    %1776 = vmatpush1.bf16.xpose.msra.mxu0 0
    %1777 = vmatprep.subr.bf16.mxu0 0
    %1778 = vmatpush1.bf16.xpose.msra.mxu0 0
    %1779 = vmatprep.subr.bf16.mxu0 0
    %1780 = vmatpush1.bf16.xpose.msra.mxu0 0
    %1781 = vmatprep.subr.bf16.mxu0 0
    %1782 = vmatpush1.bf16.xpose.msra.mxu0 0
    %1783 = vmatprep.subr.bf16.mxu0 0
    %1784 = vmatpush1.bf16.xpose.msra.mxu0 0
    %1785 = vmatprep.subr.bf16.mxu0 0
    %1786 = vmatpush1.bf16.xpose.msra.mxu0 0
    %1787 = vmatprep.subr.bf16.mxu0 0
    %1788 = vmatpush1.bf16.xpose.msra.mxu0 0
    %1789 = vmatprep.subr.bf16.mxu0 0
    %1790 = vmatpush1.bf16.xpose.msra.mxu0 0
    %1791 = vmatprep.subr.bf16.mxu0 0
    %1792 = vmatpush1.bf16.xpose.msra.mxu0 0
    %1793 = vmatprep.subr.bf16.mxu0 0
    %1794 = vmatpush1.bf16.xpose.msra.mxu0 0
    %1795 = vmatprep.subr.bf16.mxu0 0
    %1796 = vmatpush1.bf16.xpose.msra.mxu0 0
    %1797 = vmatprep.subr.bf16.mxu0 0
    %1798 = vmatpush1.bf16.xpose.msra.mxu0 0
    %1799 = vmatprep.subr.bf16.mxu0 0
    %1800 = vmatpush1.bf16.xpose.msra.mxu0 0
    %1801 = vmatprep.subr.bf16.mxu0 0
    %1802 = vmatpush1.bf16.xpose.msra.mxu0 0
    %1803 = vmatprep.mubr.bf16.mxu0 0
    %1804 = vmatmul.mubr.bf16.gmra.mrb[0].mxu0 %v1766
    %v1805 = vpop.f32.mrb[0].mxu0
    %v1806 = vadd.f32 0.0, %v1805
    %v1807 = vpop.f32.mrb[0].mxu0
    %v1808 = vpop.f32.mrb[0].mxu0
    %v1809 = vpop.f32.mrb[0].mxu0
    %1810 = vdwg.mxu0
    %v1811 = vunpack.c.l.b16 %v1512
    %v1812 = vpack.c.b16 %v1811, %v1811
    %1813 = vrot.lane.b32.xlu0 %v1812, 120
    %v1814 = vpop.permute.xlu0 %1813
    %v1816 = vsel %vm188, %v1512, 0
    %v1819 = vsel %vm188, %v1814, 0
    %1821 = vmatprep.subr.bf16.mxu0 0
    %1822 = vmatpush1.bf16.xpose.msra.mxu0 %v1819
    %1823 = vmatprep.subr.bf16.mxu0 0
    %1824 = vmatpush1.bf16.xpose.msra.mxu0 0
    %1825 = vmatprep.subr.bf16.mxu0 0
    %1826 = vmatpush1.bf16.xpose.msra.mxu0 0
    %1827 = vmatprep.subr.bf16.mxu0 0
    %1828 = vmatpush1.bf16.xpose.msra.mxu0 0
    %1829 = vmatprep.subr.bf16.mxu0 0
    %1830 = vmatpush1.bf16.xpose.msra.mxu0 0
    %1831 = vmatprep.subr.bf16.mxu0 0
    %1832 = vmatpush1.bf16.xpose.msra.mxu0 0
    %1833 = vmatprep.subr.bf16.mxu0 0
    %1834 = vmatpush1.bf16.xpose.msra.mxu0 0
    %1835 = vmatprep.subr.bf16.mxu0 0
    %1836 = vmatpush1.bf16.xpose.msra.mxu0 0
    %1837 = vmatprep.subr.bf16.mxu0 0
    %1838 = vmatpush1.bf16.xpose.msra.mxu0 0
    %1839 = vmatprep.subr.bf16.mxu0 0
    %1840 = vmatpush1.bf16.xpose.msra.mxu0 0
    %1841 = vmatprep.subr.bf16.mxu0 0
    %1842 = vmatpush1.bf16.xpose.msra.mxu0 0
    %1843 = vmatprep.subr.bf16.mxu0 0
    %1844 = vmatpush1.bf16.xpose.msra.mxu0 0
    %1845 = vmatprep.subr.bf16.mxu0 0
    %1846 = vmatpush1.bf16.xpose.msra.mxu0 0
    %1847 = vmatprep.subr.bf16.mxu0 0
    %1848 = vmatpush1.bf16.xpose.msra.mxu0 0
    %1849 = vmatprep.subr.bf16.mxu0 0
    %1850 = vmatpush1.bf16.xpose.msra.mxu0 0
    %1851 = vmatprep.subr.bf16.mxu0 0
    %1852 = vmatpush1.bf16.xpose.msra.mxu0 0
    %1853 = vmatprep.mubr.bf16.mxu0 0
    %1854 = vmatmul.mubr.bf16.gmra.mrb[0].mxu0 %v1816
    %v1855 = vpop.f32.mrb[0].mxu0
    %v1856 = vadd.f32 0.0, %v1855
    %v1857 = vpop.f32.mrb[0].mxu0
    %v1858 = vpop.f32.mrb[0].mxu0
    %v1859 = vpop.f32.mrb[0].mxu0
    %1860 = vdwg.mxu0
    %v1861 = vunpack.c.l.b16 %v1514
    %v1862 = vpack.c.b16 %v1861, %v1861
    %1863 = vrot.lane.b32.xlu0 %v1862, 120
    %v1864 = vpop.permute.xlu0 %1863
    %v1866 = vsel %vm188, %v1514, 0
    %v1869 = vsel %vm188, %v1864, 0
    %1871 = vmatprep.subr.bf16.mxu0 0
    %1872 = vmatpush1.bf16.xpose.msra.mxu0 %v1869
    %1873 = vmatprep.subr.bf16.mxu0 0
    %1874 = vmatpush1.bf16.xpose.msra.mxu0 0
    %1875 = vmatprep.subr.bf16.mxu0 0
    %1876 = vmatpush1.bf16.xpose.msra.mxu0 0
    %1877 = vmatprep.subr.bf16.mxu0 0
    %1878 = vmatpush1.bf16.xpose.msra.mxu0 0
    %1879 = vmatprep.subr.bf16.mxu0 0
    %1880 = vmatpush1.bf16.xpose.msra.mxu0 0
    %1881 = vmatprep.subr.bf16.mxu0 0
    %1882 = vmatpush1.bf16.xpose.msra.mxu0 0
    %1883 = vmatprep.subr.bf16.mxu0 0
    %1884 = vmatpush1.bf16.xpose.msra.mxu0 0
    %1885 = vmatprep.subr.bf16.mxu0 0
    %1886 = vmatpush1.bf16.xpose.msra.mxu0 0
    %1887 = vmatprep.subr.bf16.mxu0 0
    %1888 = vmatpush1.bf16.xpose.msra.mxu0 0
    %1889 = vmatprep.subr.bf16.mxu0 0
    %1890 = vmatpush1.bf16.xpose.msra.mxu0 0
    %1891 = vmatprep.subr.bf16.mxu0 0
    %1892 = vmatpush1.bf16.xpose.msra.mxu0 0
    %1893 = vmatprep.subr.bf16.mxu0 0
    %1894 = vmatpush1.bf16.xpose.msra.mxu0 0
    %1895 = vmatprep.subr.bf16.mxu0 0
    %1896 = vmatpush1.bf16.xpose.msra.mxu0 0
    %1897 = vmatprep.subr.bf16.mxu0 0
    %1898 = vmatpush1.bf16.xpose.msra.mxu0 0
    %1899 = vmatprep.subr.bf16.mxu0 0
    %1900 = vmatpush1.bf16.xpose.msra.mxu0 0
    %1901 = vmatprep.subr.bf16.mxu0 0
    %1902 = vmatpush1.bf16.xpose.msra.mxu0 0
    %1903 = vmatprep.mubr.bf16.mxu0 0
    %1904 = vmatmul.mubr.bf16.gmra.mrb[0].mxu0 %v1866
    %v1905 = vpop.f32.mrb[0].mxu0
    %v1906 = vadd.f32 0.0, %v1905
    %v1907 = vpop.f32.mrb[0].mxu0
    %v1908 = vpop.f32.mrb[0].mxu0
    %v1909 = vpop.f32.mrb[0].mxu0
    %1910 = vdwg.mxu0
    %v1911 = vsel %vm188, %v1558, -inf
    %1912 = vmax.xlane.f32.xlu0 %v1911
    %v1913 = vpop.xlane.xlu0 %1912
    %v1914 = vsel %vm188, %v1606, -inf
    %1915 = vmax.xlane.f32.xlu0 %v1914
    %v1916 = vpop.xlane.xlu0 %1915
    %v1917 = vsel %vm188, %v1656, -inf
    %1918 = vmax.xlane.f32.xlu0 %v1917
    %v1919 = vpop.xlane.xlu0 %1918
    %v1920 = vsel %vm188, %v1706, -inf
    %1921 = vmax.xlane.f32.xlu0 %v1920
    %v1922 = vpop.xlane.xlu0 %1921
    %v1923 = vsel %vm188, %v1756, -inf
    %1924 = vmax.xlane.f32.xlu0 %v1923
    %v1925 = vpop.xlane.xlu0 %1924
    %v1926 = vsel %vm188, %v1806, -inf
    %1927 = vmax.xlane.f32.xlu0 %v1926
    %v1928 = vpop.xlane.xlu0 %1927
    %v1929 = vsel %vm188, %v1856, -inf
    %1930 = vmax.xlane.f32.xlu0 %v1929
    %v1931 = vpop.xlane.xlu0 %1930
    %v1932 = vsel %vm188, %v1906, -inf
    %1933 = vmax.xlane.f32.xlu0 %v1932
    %v1934 = vpop.xlane.xlu0 %1933
    %v1935 = vsub.f32 %v1558, %v1913
    %v1936 = vsub.f32 %v1606, %v1916
    %v1937 = vsub.f32 %v1656, %v1919
    %v1938 = vsub.f32 %v1706, %v1922
    %v1939 = vsub.f32 %v1756, %v1925
    %v1940 = vsub.f32 %v1806, %v1928
    %v1941 = vsub.f32 %v1856, %v1931
    %v1942 = vsub.f32 %v1906, %v1934
    %v1943 = vmul.f32 %v1935, 1.442695
    %v1944 = vpow.pop %v1943
    %v1945 = vmul.f32 %v1936, 1.442695
    %v1946 = vpow.pop %v1945
    %v1947 = vmul.f32 %v1937, 1.442695
    %v1948 = vpow.pop %v1947
    %v1949 = vmul.f32 %v1938, 1.442695
    %v1950 = vpow.pop %v1949
    %v1951 = vmul.f32 %v1939, 1.442695
    %v1952 = vpow.pop %v1951
    %v1953 = vmul.f32 %v1940, 1.442695
    %v1954 = vpow.pop %v1953
    %v1955 = vmul.f32 %v1941, 1.442695
    %v1956 = vpow.pop %v1955
    %v1957 = vmul.f32 %v1942, 1.442695
    %v1958 = vpow.pop %v1957
    %v1959 = vsel %vm188, %v1944, 0.0
    %1960 = vadd.xlane.f32.xlu0 %v1959
    %v1961 = vpop.xlane.xlu0 %1960
    %v1962 = vsel %vm188, %v1946, 0.0
    %1963 = vadd.xlane.f32.xlu0 %v1962
    %v1964 = vpop.xlane.xlu0 %1963
    %v1965 = vsel %vm188, %v1948, 0.0
    %1966 = vadd.xlane.f32.xlu0 %v1965
    %v1967 = vpop.xlane.xlu0 %1966
    %v1968 = vsel %vm188, %v1950, 0.0
    %1969 = vadd.xlane.f32.xlu0 %v1968
    %v1970 = vpop.xlane.xlu0 %1969
    %v1971 = vsel %vm188, %v1952, 0.0
    %1972 = vadd.xlane.f32.xlu0 %v1971
    %v1973 = vpop.xlane.xlu0 %1972
    %v1974 = vsel %vm188, %v1954, 0.0
    %1975 = vadd.xlane.f32.xlu0 %v1974
    %v1976 = vpop.xlane.xlu0 %1975
    %v1977 = vsel %vm188, %v1956, 0.0
    %1978 = vadd.xlane.f32.xlu0 %v1977
    %v1979 = vpop.xlane.xlu0 %1978
    %v1980 = vsel %vm188, %v1958, 0.0
    %1981 = vadd.xlane.f32.xlu0 %v1980
    %v1982 = vpop.xlane.xlu0 %1981
    %v1983 = vrcp.pop %v1961
    %v1984 = vrcp.pop %v1964
    %v1985 = vrcp.pop %v1967
    %v1986 = vrcp.pop %v1970
    %v1987 = vrcp.pop %v1973
    %v1988 = vrcp.pop %v1976
    %v1989 = vrcp.pop %v1979
    %v1990 = vrcp.pop %v1982
    %v1991 = vmul.f32 %v1944, %v1983
    %v1992 = vmul.f32 %v1946, %v1984
    %v1993 = vmul.f32 %v1948, %v1985
    %v1994 = vmul.f32 %v1950, %v1986
    %v1995 = vmul.f32 %v1952, %v1987
    %v1996 = vmul.f32 %v1954, %v1988
    %v1997 = vmul.f32 %v1956, %v1989
    %v1998 = vmul.f32 %v1958, %v1990
    %v1999 = vpack.c.bf16 %v1991, %v1991
    %v2000 = vpack.c.bf16 %v1992, %v1992
    %v2001 = vpack.c.bf16 %v1993, %v1993
    %v2002 = vpack.c.bf16 %v1994, %v1994
    %v2003 = vpack.c.bf16 %v1995, %v1995
    %v2004 = vpack.c.bf16 %v1996, %v1996
    %v2005 = vpack.c.bf16 %v1997, %v1997
    %v2006 = vpack.c.bf16 %v1998, %v1998
    %2007 = vrot.lane.b32.xlu0 %v1501, 112
    %v2008 = vpop.permute.xlu0 %2007
    %v2010 = vsel %vm188, %v1999, 0
    %v2013 = vsel %vm684, %v2008, 0
    %2015 = vmatprep.subr.bf16.mxu0 0
    %2016 = vmatpush1.bf16.msra.mxu0 %v2013
    %2017 = vmatprep.subr.bf16.mxu0 0
    %2018 = vmatpush1.bf16.msra.mxu0 0
    %2019 = vmatprep.subr.bf16.mxu0 0
    %2020 = vmatpush1.bf16.msra.mxu0 0
    %2021 = vmatprep.subr.bf16.mxu0 0
    %2022 = vmatpush1.bf16.msra.mxu0 0
    %2023 = vmatprep.subr.bf16.mxu0 0
    %2024 = vmatpush1.bf16.msra.mxu0 0
    %2025 = vmatprep.subr.bf16.mxu0 0
    %2026 = vmatpush1.bf16.msra.mxu0 0
    %2027 = vmatprep.subr.bf16.mxu0 0
    %2028 = vmatpush1.bf16.msra.mxu0 0
    %2029 = vmatprep.subr.bf16.mxu0 0
    %2030 = vmatpush1.bf16.msra.mxu0 0
    %2031 = vmatprep.subr.bf16.mxu0 0
    %2032 = vmatpush1.bf16.msra.mxu0 0
    %2033 = vmatprep.subr.bf16.mxu0 0
    %2034 = vmatpush1.bf16.msra.mxu0 0
    %2035 = vmatprep.subr.bf16.mxu0 0
    %2036 = vmatpush1.bf16.msra.mxu0 0
    %2037 = vmatprep.subr.bf16.mxu0 0
    %2038 = vmatpush1.bf16.msra.mxu0 0
    %2039 = vmatprep.subr.bf16.mxu0 0
    %2040 = vmatpush1.bf16.msra.mxu0 0
    %2041 = vmatprep.subr.bf16.mxu0 0
    %2042 = vmatpush1.bf16.msra.mxu0 0
    %2043 = vmatprep.subr.bf16.mxu0 0
    %2044 = vmatpush1.bf16.msra.mxu0 0
    %2045 = vmatprep.subr.bf16.mxu0 0
    %2046 = vmatpush1.bf16.msra.mxu0 0
    %2047 = vmatprep.mubr.bf16.mxu0 0
    %2048 = vmatmul.mubr.bf16.gmra.mrb[0].mxu0 %v2010
    %v2049 = vpop.f32.mrb[0].mxu0
    %v2050 = vadd.f32 0.0, %v2049
    %v2051 = vpop.f32.mrb[0].mxu0
    %v2052 = vpop.f32.mrb[0].mxu0
    %v2053 = vpop.f32.mrb[0].mxu0
    %2054 = vdwg.mxu0
    %2055 = vrot.lane.b32.xlu0 %v1502, 112
    %v2056 = vpop.permute.xlu0 %2055
    %v2058 = vsel %vm188, %v2000, 0
    %v2061 = vsel %vm684, %v2056, 0
    %2063 = vmatprep.subr.bf16.mxu0 0
    %2064 = vmatpush1.bf16.msra.mxu0 %v2061
    %2065 = vmatprep.subr.bf16.mxu0 0
    %2066 = vmatpush1.bf16.msra.mxu0 0
    %2067 = vmatprep.subr.bf16.mxu0 0
    %2068 = vmatpush1.bf16.msra.mxu0 0
    %2069 = vmatprep.subr.bf16.mxu0 0
    %2070 = vmatpush1.bf16.msra.mxu0 0
    %2071 = vmatprep.subr.bf16.mxu0 0
    %2072 = vmatpush1.bf16.msra.mxu0 0
    %2073 = vmatprep.subr.bf16.mxu0 0
    %2074 = vmatpush1.bf16.msra.mxu0 0
    %2075 = vmatprep.subr.bf16.mxu0 0
    %2076 = vmatpush1.bf16.msra.mxu0 0
    %2077 = vmatprep.subr.bf16.mxu0 0
    %2078 = vmatpush1.bf16.msra.mxu0 0
    %2079 = vmatprep.subr.bf16.mxu0 0
    %2080 = vmatpush1.bf16.msra.mxu0 0
    %2081 = vmatprep.subr.bf16.mxu0 0
    %2082 = vmatpush1.bf16.msra.mxu0 0
    %2083 = vmatprep.subr.bf16.mxu0 0
    %2084 = vmatpush1.bf16.msra.mxu0 0
    %2085 = vmatprep.subr.bf16.mxu0 0
    %2086 = vmatpush1.bf16.msra.mxu0 0
    %2087 = vmatprep.subr.bf16.mxu0 0
    %2088 = vmatpush1.bf16.msra.mxu0 0
    %2089 = vmatprep.subr.bf16.mxu0 0
    %2090 = vmatpush1.bf16.msra.mxu0 0
    %2091 = vmatprep.subr.bf16.mxu0 0
    %2092 = vmatpush1.bf16.msra.mxu0 0
    %2093 = vmatprep.subr.bf16.mxu0 0
    %2094 = vmatpush1.bf16.msra.mxu0 0
    %2095 = vmatprep.mubr.bf16.mxu0 0
    %2096 = vmatmul.mubr.bf16.gmra.mrb[0].mxu0 %v2058
    %v2097 = vpop.f32.mrb[0].mxu0
    %v2098 = vadd.f32 0.0, %v2097
    %v2099 = vpop.f32.mrb[0].mxu0
    %v2100 = vpop.f32.mrb[0].mxu0
    %v2101 = vpop.f32.mrb[0].mxu0
    %2102 = vdwg.mxu0
    %2103 = vrot.lane.b32.xlu0 %v1612, 112
    %v2104 = vpop.permute.xlu0 %2103
    %v2106 = vsel %vm188, %v2001, 0
    %v2109 = vsel %vm684, %v2104, 0
    %2111 = vmatprep.subr.bf16.mxu0 0
    %2112 = vmatpush1.bf16.msra.mxu0 %v2109
    %2113 = vmatprep.subr.bf16.mxu0 0
    %2114 = vmatpush1.bf16.msra.mxu0 0
    %2115 = vmatprep.subr.bf16.mxu0 0
    %2116 = vmatpush1.bf16.msra.mxu0 0
    %2117 = vmatprep.subr.bf16.mxu0 0
    %2118 = vmatpush1.bf16.msra.mxu0 0
    %2119 = vmatprep.subr.bf16.mxu0 0
    %2120 = vmatpush1.bf16.msra.mxu0 0
    %2121 = vmatprep.subr.bf16.mxu0 0
    %2122 = vmatpush1.bf16.msra.mxu0 0
    %2123 = vmatprep.subr.bf16.mxu0 0
    %2124 = vmatpush1.bf16.msra.mxu0 0
    %2125 = vmatprep.subr.bf16.mxu0 0
    %2126 = vmatpush1.bf16.msra.mxu0 0
    %2127 = vmatprep.subr.bf16.mxu0 0
    %2128 = vmatpush1.bf16.msra.mxu0 0
    %2129 = vmatprep.subr.bf16.mxu0 0
    %2130 = vmatpush1.bf16.msra.mxu0 0
    %2131 = vmatprep.subr.bf16.mxu0 0
    %2132 = vmatpush1.bf16.msra.mxu0 0
    %2133 = vmatprep.subr.bf16.mxu0 0
    %2134 = vmatpush1.bf16.msra.mxu0 0
    %2135 = vmatprep.subr.bf16.mxu0 0
    %2136 = vmatpush1.bf16.msra.mxu0 0
    %2137 = vmatprep.subr.bf16.mxu0 0
    %2138 = vmatpush1.bf16.msra.mxu0 0
    %2139 = vmatprep.subr.bf16.mxu0 0
    %2140 = vmatpush1.bf16.msra.mxu0 0
    %2141 = vmatprep.subr.bf16.mxu0 0
    %2142 = vmatpush1.bf16.msra.mxu0 0
    %2143 = vmatprep.mubr.bf16.mxu0 0
    %2144 = vmatmul.mubr.bf16.gmra.mrb[0].mxu0 %v2106
    %v2145 = vpop.f32.mrb[0].mxu0
    %v2146 = vadd.f32 0.0, %v2145
    %v2147 = vpop.f32.mrb[0].mxu0
    %v2148 = vpop.f32.mrb[0].mxu0
    %v2149 = vpop.f32.mrb[0].mxu0
    %2150 = vdwg.mxu0
    %2151 = vrot.lane.b32.xlu0 %v1662, 112
    %v2152 = vpop.permute.xlu0 %2151
    %v2154 = vsel %vm188, %v2002, 0
    %v2157 = vsel %vm684, %v2152, 0
    %2159 = vmatprep.subr.bf16.mxu0 0
    %2160 = vmatpush1.bf16.msra.mxu0 %v2157
    %2161 = vmatprep.subr.bf16.mxu0 0
    %2162 = vmatpush1.bf16.msra.mxu0 0
    %2163 = vmatprep.subr.bf16.mxu0 0
    %2164 = vmatpush1.bf16.msra.mxu0 0
    %2165 = vmatprep.subr.bf16.mxu0 0
    %2166 = vmatpush1.bf16.msra.mxu0 0
    %2167 = vmatprep.subr.bf16.mxu0 0
    %2168 = vmatpush1.bf16.msra.mxu0 0
    %2169 = vmatprep.subr.bf16.mxu0 0
    %2170 = vmatpush1.bf16.msra.mxu0 0
    %2171 = vmatprep.subr.bf16.mxu0 0
    %2172 = vmatpush1.bf16.msra.mxu0 0
    %2173 = vmatprep.subr.bf16.mxu0 0
    %2174 = vmatpush1.bf16.msra.mxu0 0
    %2175 = vmatprep.subr.bf16.mxu0 0
    %2176 = vmatpush1.bf16.msra.mxu0 0
    %2177 = vmatprep.subr.bf16.mxu0 0
    %2178 = vmatpush1.bf16.msra.mxu0 0
    %2179 = vmatprep.subr.bf16.mxu0 0
    %2180 = vmatpush1.bf16.msra.mxu0 0
    %2181 = vmatprep.subr.bf16.mxu0 0
    %2182 = vmatpush1.bf16.msra.mxu0 0
    %2183 = vmatprep.subr.bf16.mxu0 0
    %2184 = vmatpush1.bf16.msra.mxu0 0
    %2185 = vmatprep.subr.bf16.mxu0 0
    %2186 = vmatpush1.bf16.msra.mxu0 0
    %2187 = vmatprep.subr.bf16.mxu0 0
    %2188 = vmatpush1.bf16.msra.mxu0 0
    %2189 = vmatprep.subr.bf16.mxu0 0
    %2190 = vmatpush1.bf16.msra.mxu0 0
    %2191 = vmatprep.mubr.bf16.mxu0 0
    %2192 = vmatmul.mubr.bf16.gmra.mrb[0].mxu0 %v2154
    %v2193 = vpop.f32.mrb[0].mxu0
    %v2194 = vadd.f32 0.0, %v2193
    %v2195 = vpop.f32.mrb[0].mxu0
    %v2196 = vpop.f32.mrb[0].mxu0
    %v2197 = vpop.f32.mrb[0].mxu0
    %2198 = vdwg.mxu0
    %2199 = vrot.lane.b32.xlu0 %v1712, 112
    %v2200 = vpop.permute.xlu0 %2199
    %v2202 = vsel %vm188, %v2003, 0
    %v2205 = vsel %vm684, %v2200, 0
    %2207 = vmatprep.subr.bf16.mxu0 0
    %2208 = vmatpush1.bf16.msra.mxu0 %v2205
    %2209 = vmatprep.subr.bf16.mxu0 0
    %2210 = vmatpush1.bf16.msra.mxu0 0
    %2211 = vmatprep.subr.bf16.mxu0 0
    %2212 = vmatpush1.bf16.msra.mxu0 0
    %2213 = vmatprep.subr.bf16.mxu0 0
    %2214 = vmatpush1.bf16.msra.mxu0 0
    %2215 = vmatprep.subr.bf16.mxu0 0
    %2216 = vmatpush1.bf16.msra.mxu0 0
    %2217 = vmatprep.subr.bf16.mxu0 0
    %2218 = vmatpush1.bf16.msra.mxu0 0
    %2219 = vmatprep.subr.bf16.mxu0 0
    %2220 = vmatpush1.bf16.msra.mxu0 0
    %2221 = vmatprep.subr.bf16.mxu0 0
    %2222 = vmatpush1.bf16.msra.mxu0 0
    %2223 = vmatprep.subr.bf16.mxu0 0
    %2224 = vmatpush1.bf16.msra.mxu0 0
    %2225 = vmatprep.subr.bf16.mxu0 0
    %2226 = vmatpush1.bf16.msra.mxu0 0
    %2227 = vmatprep.subr.bf16.mxu0 0
    %2228 = vmatpush1.bf16.msra.mxu0 0
    %2229 = vmatprep.subr.bf16.mxu0 0
    %2230 = vmatpush1.bf16.msra.mxu0 0
    %2231 = vmatprep.subr.bf16.mxu0 0
    %2232 = vmatpush1.bf16.msra.mxu0 0
    %2233 = vmatprep.subr.bf16.mxu0 0
    %2234 = vmatpush1.bf16.msra.mxu0 0
    %2235 = vmatprep.subr.bf16.mxu0 0
    %2236 = vmatpush1.bf16.msra.mxu0 0
    %2237 = vmatprep.subr.bf16.mxu0 0
    %2238 = vmatpush1.bf16.msra.mxu0 0
    %2239 = vmatprep.mubr.bf16.mxu0 0
    %2240 = vmatmul.mubr.bf16.gmra.mrb[0].mxu0 %v2202
    %v2241 = vpop.f32.mrb[0].mxu0
    %v2242 = vadd.f32 0.0, %v2241
    %v2243 = vpop.f32.mrb[0].mxu0
    %v2244 = vpop.f32.mrb[0].mxu0
    %v2245 = vpop.f32.mrb[0].mxu0
    %2246 = vdwg.mxu0
    %2247 = vrot.lane.b32.xlu0 %v1762, 112
    %v2248 = vpop.permute.xlu0 %2247
    %v2250 = vsel %vm188, %v2004, 0
    %v2253 = vsel %vm684, %v2248, 0
    %2255 = vmatprep.subr.bf16.mxu0 0
    %2256 = vmatpush1.bf16.msra.mxu0 %v2253
    %2257 = vmatprep.subr.bf16.mxu0 0
    %2258 = vmatpush1.bf16.msra.mxu0 0
    %2259 = vmatprep.subr.bf16.mxu0 0
    %2260 = vmatpush1.bf16.msra.mxu0 0
    %2261 = vmatprep.subr.bf16.mxu0 0
    %2262 = vmatpush1.bf16.msra.mxu0 0
    %2263 = vmatprep.subr.bf16.mxu0 0
    %2264 = vmatpush1.bf16.msra.mxu0 0
    %2265 = vmatprep.subr.bf16.mxu0 0
    %2266 = vmatpush1.bf16.msra.mxu0 0
    %2267 = vmatprep.subr.bf16.mxu0 0
    %2268 = vmatpush1.bf16.msra.mxu0 0
    %2269 = vmatprep.subr.bf16.mxu0 0
    %2270 = vmatpush1.bf16.msra.mxu0 0
    %2271 = vmatprep.subr.bf16.mxu0 0
    %2272 = vmatpush1.bf16.msra.mxu0 0
    %2273 = vmatprep.subr.bf16.mxu0 0
    %2274 = vmatpush1.bf16.msra.mxu0 0
    %2275 = vmatprep.subr.bf16.mxu0 0
    %2276 = vmatpush1.bf16.msra.mxu0 0
    %2277 = vmatprep.subr.bf16.mxu0 0
    %2278 = vmatpush1.bf16.msra.mxu0 0
    %2279 = vmatprep.subr.bf16.mxu0 0
    %2280 = vmatpush1.bf16.msra.mxu0 0
    %2281 = vmatprep.subr.bf16.mxu0 0
    %2282 = vmatpush1.bf16.msra.mxu0 0
    %2283 = vmatprep.subr.bf16.mxu0 0
    %2284 = vmatpush1.bf16.msra.mxu0 0
    %2285 = vmatprep.subr.bf16.mxu0 0
    %2286 = vmatpush1.bf16.msra.mxu0 0
    %2287 = vmatprep.mubr.bf16.mxu0 0
    %2288 = vmatmul.mubr.bf16.gmra.mrb[0].mxu0 %v2250
    %v2289 = vpop.f32.mrb[0].mxu0
    %v2290 = vadd.f32 0.0, %v2289
    %v2291 = vpop.f32.mrb[0].mxu0
    %v2292 = vpop.f32.mrb[0].mxu0
    %v2293 = vpop.f32.mrb[0].mxu0
    %2294 = vdwg.mxu0
    %2295 = vrot.lane.b32.xlu0 %v1812, 112
    %v2296 = vpop.permute.xlu0 %2295
    %v2298 = vsel %vm188, %v2005, 0
    %v2301 = vsel %vm684, %v2296, 0
    %2303 = vmatprep.subr.bf16.mxu0 0
    %2304 = vmatpush1.bf16.msra.mxu0 %v2301
    %2305 = vmatprep.subr.bf16.mxu0 0
    %2306 = vmatpush1.bf16.msra.mxu0 0
    %2307 = vmatprep.subr.bf16.mxu0 0
    %2308 = vmatpush1.bf16.msra.mxu0 0
    %2309 = vmatprep.subr.bf16.mxu0 0
    %2310 = vmatpush1.bf16.msra.mxu0 0
    %2311 = vmatprep.subr.bf16.mxu0 0
    %2312 = vmatpush1.bf16.msra.mxu0 0
    %2313 = vmatprep.subr.bf16.mxu0 0
    %2314 = vmatpush1.bf16.msra.mxu0 0
    %2315 = vmatprep.subr.bf16.mxu0 0
    %2316 = vmatpush1.bf16.msra.mxu0 0
    %2317 = vmatprep.subr.bf16.mxu0 0
    %2318 = vmatpush1.bf16.msra.mxu0 0
    %2319 = vmatprep.subr.bf16.mxu0 0
    %2320 = vmatpush1.bf16.msra.mxu0 0
    %2321 = vmatprep.subr.bf16.mxu0 0
    %2322 = vmatpush1.bf16.msra.mxu0 0
    %2323 = vmatprep.subr.bf16.mxu0 0
    %2324 = vmatpush1.bf16.msra.mxu0 0
    %2325 = vmatprep.subr.bf16.mxu0 0
    %2326 = vmatpush1.bf16.msra.mxu0 0
    %2327 = vmatprep.subr.bf16.mxu0 0
    %2328 = vmatpush1.bf16.msra.mxu0 0
    %2329 = vmatprep.subr.bf16.mxu0 0
    %2330 = vmatpush1.bf16.msra.mxu0 0
    %2331 = vmatprep.subr.bf16.mxu0 0
    %2332 = vmatpush1.bf16.msra.mxu0 0
    %2333 = vmatprep.subr.bf16.mxu0 0
    %2334 = vmatpush1.bf16.msra.mxu0 0
    %2335 = vmatprep.mubr.bf16.mxu0 0
    %2336 = vmatmul.mubr.bf16.gmra.mrb[0].mxu0 %v2298
    %v2337 = vpop.f32.mrb[0].mxu0
    %v2338 = vadd.f32 0.0, %v2337
    %v2339 = vpop.f32.mrb[0].mxu0
    %v2340 = vpop.f32.mrb[0].mxu0
    %v2341 = vpop.f32.mrb[0].mxu0
    %2342 = vdwg.mxu0
    %2343 = vrot.lane.b32.xlu0 %v1862, 112
    %v2344 = vpop.permute.xlu0 %2343
    %v2346 = vsel %vm188, %v2006, 0
    %v2349 = vsel %vm684, %v2344, 0
    %2351 = vmatprep.subr.bf16.mxu0 0
    %2352 = vmatpush1.bf16.msra.mxu0 %v2349
    %2353 = vmatprep.subr.bf16.mxu0 0
    %2354 = vmatpush1.bf16.msra.mxu0 0
    %2355 = vmatprep.subr.bf16.mxu0 0
    %2356 = vmatpush1.bf16.msra.mxu0 0
    %2357 = vmatprep.subr.bf16.mxu0 0
    %2358 = vmatpush1.bf16.msra.mxu0 0
    %2359 = vmatprep.subr.bf16.mxu0 0
    %2360 = vmatpush1.bf16.msra.mxu0 0
    %2361 = vmatprep.subr.bf16.mxu0 0
    %2362 = vmatpush1.bf16.msra.mxu0 0
    %2363 = vmatprep.subr.bf16.mxu0 0
    %2364 = vmatpush1.bf16.msra.mxu0 0
    %2365 = vmatprep.subr.bf16.mxu0 0
    %2366 = vmatpush1.bf16.msra.mxu0 0
    %2367 = vmatprep.subr.bf16.mxu0 0
    %2368 = vmatpush1.bf16.msra.mxu0 0
    %2369 = vmatprep.subr.bf16.mxu0 0
    %2370 = vmatpush1.bf16.msra.mxu0 0
    %2371 = vmatprep.subr.bf16.mxu0 0
    %2372 = vmatpush1.bf16.msra.mxu0 0
    %2373 = vmatprep.subr.bf16.mxu0 0
    %2374 = vmatpush1.bf16.msra.mxu0 0
    %2375 = vmatprep.subr.bf16.mxu0 0
    %2376 = vmatpush1.bf16.msra.mxu0 0
    %2377 = vmatprep.subr.bf16.mxu0 0
    %2378 = vmatpush1.bf16.msra.mxu0 0
    %2379 = vmatprep.subr.bf16.mxu0 0
    %2380 = vmatpush1.bf16.msra.mxu0 0
    %2381 = vmatprep.subr.bf16.mxu0 0
    %2382 = vmatpush1.bf16.msra.mxu0 0
    %2383 = vmatprep.mubr.bf16.mxu0 0
    %2384 = vmatmul.mubr.bf16.gmra.mrb[0].mxu0 %v2346
    %v2385 = vpop.f32.mrb[0].mxu0
    %v2386 = vadd.f32 0.0, %v2385
    %v2387 = vpop.f32.mrb[0].mxu0
    %v2388 = vpop.f32.mrb[0].mxu0
    %v2389 = vpop.f32.mrb[0].mxu0
    %2390 = vdwg.mxu0
    %2393 = vrot.lane.b32.xlu0 %v2146, 8
    %v2394 = vpop.permute.xlu0 %2393
    %2395 = vrot.lane.b32.xlu0 %v2194, 8
    %v2396 = vpop.permute.xlu0 %2395
    %2401 = vrot.lane.b32.xlu0 %v2242, 16
    %v2402 = vpop.permute.xlu0 %2401
    %2403 = vrot.lane.b32.xlu0 %v2290, 16
    %v2404 = vpop.permute.xlu0 %2403
    %2409 = vrot.lane.b32.xlu0 %v2338, 24
    %v2410 = vpop.permute.xlu0 %2409
    %2411 = vrot.lane.b32.xlu0 %v2386, 24
    %v2412 = vpop.permute.xlu0 %2411
    %v2415 = vsel %vm188, %v2050, %v2394
    %v2416 = vsel %vm188, %v2098, %v2396
    %v2417 = vsel %vm1090, %v2415, %v2402
    %v2418 = vsel %vm1090, %v2416, %v2404
    %v2419 = vsel %vm1093, %v2417, %v2410
    %v2420 = vsel %vm1093, %v2418, %v2412
    %v2421 = vpack.c.bf16 %v2420, %v2419
    %s2422 = scalar_lea.vmem %s5, 16
    %v2423 = vld [vmem:[%s2422] sm:$0xf]
    %v2424 = vld [vmem:[%s2422 + $0x4] sm:$0xf]
    %v2425 = vld [vmem:[%s2422 + $0x8] sm:$0xf]
    %v2426 = vld [vmem:[%s2422 + $0xc] sm:$0xf]
    %s2427 = scalar_lea.vmem %s6, 1
    %v2428 = vld [vmem:[%s2427] sm:$0x1]
    %v2430 = vlaneseq
    %v2431 = vshrl.u32 %v2430, 7
    %v2432 = vsub.s32 0, %v2431
    %v2433 = vrot.slane %v2428, %v2432
    %v2439 = vunpack.c.l.b16 %v2423
    %v2440 = vunpack.c.l.b16 %v2424
    %v2441 = vunpack.c.l.b16 %v2425
    %v2442 = vunpack.c.l.b16 %v2426
    %v2443 = vpack.c.b16 %v2440, %v2439
    %v2444 = vpack.c.b16 %v2442, %v2441
    %v2448 = vsel %vm56, %v2421, 0
    %2450 = vmatprep.subr.bf16.mxu0 0
    %2451 = vmatpush1.bf16.msra.mxu0 %v2443
    %2452 = vmatprep.subr.bf16.mxu0 0
    %2453 = vmatpush1.bf16.msra.mxu0 %v2444
    %2454 = vmatprep.subr.bf16.mxu0 0
    %2455 = vmatpush1.bf16.msra.mxu0 0
    %2456 = vmatprep.subr.bf16.mxu0 0
    %2457 = vmatpush1.bf16.msra.mxu0 0
    %2458 = vmatprep.subr.bf16.mxu0 0
    %2459 = vmatpush1.bf16.msra.mxu0 0
    %2460 = vmatprep.subr.bf16.mxu0 0
    %2461 = vmatpush1.bf16.msra.mxu0 0
    %2462 = vmatprep.subr.bf16.mxu0 0
    %2463 = vmatpush1.bf16.msra.mxu0 0
    %2464 = vmatprep.subr.bf16.mxu0 0
    %2465 = vmatpush1.bf16.msra.mxu0 0
    %2466 = vmatprep.subr.bf16.mxu0 0
    %2467 = vmatpush1.bf16.msra.mxu0 0
    %2468 = vmatprep.subr.bf16.mxu0 0
    %2469 = vmatpush1.bf16.msra.mxu0 0
    %2470 = vmatprep.subr.bf16.mxu0 0
    %2471 = vmatpush1.bf16.msra.mxu0 0
    %2472 = vmatprep.subr.bf16.mxu0 0
    %2473 = vmatpush1.bf16.msra.mxu0 0
    %2474 = vmatprep.subr.bf16.mxu0 0
    %2475 = vmatpush1.bf16.msra.mxu0 0
    %2476 = vmatprep.subr.bf16.mxu0 0
    %2477 = vmatpush1.bf16.msra.mxu0 0
    %2478 = vmatprep.subr.bf16.mxu0 0
    %2479 = vmatpush1.bf16.msra.mxu0 0
    %2480 = vmatprep.subr.bf16.mxu0 0
    %2481 = vmatpush1.bf16.msra.mxu0 0
    %2482 = vmatprep.mubr.bf16.mxu0 0
    %2483 = vmatmul.mubr.bf16.gmra.mrb[0].mxu0 %v2448
    %v2484 = vpop.f32.mrb[0].mxu0
    %v2485 = vadd.f32 %v2433, %v2484
    %v2486 = vpop.f32.mrb[0].mxu0
    %v2487 = vpop.f32.mrb[0].mxu0
    %v2488 = vadd.f32 %v2433, %v2487
    %v2489 = vpop.f32.mrb[0].mxu0
    %2490 = vdwg.mxu0
    %v2491 = vadd.f32 %v1425, %v2485
    %v2492 = vadd.f32 %v1426, %v2488
    %s2493 = scalar_lea.vmem %s7, 1
    %v2494 = vld [vmem:[%s2493] sm:$0x1]
    %s2495 = scalar_lea.vmem %s8, 1
    %v2496 = vld [vmem:[%s2495] sm:$0x1]
    %v2497 = vsel %vm56, %v2491, 0.0
    %2498 = vadd.xlane.f32.xlu0 %v2497
    %v2499 = vpop.xlane.xlu0 %2498
    %v2500 = vsel %vm56, %v2492, 0.0
    %2501 = vadd.xlane.f32.xlu0 %v2500
    %v2502 = vpop.xlane.xlu0 %2501
    %v2503 = vmul.f32 %v2499, %v63
    %v2504 = vmul.f32 %v2502, %v63
    %v2505 = vsub.f32 %v2491, %v2503
    %v2506 = vsub.f32 %v2492, %v2504
    %v2507 = vmul.f32 %v2505, %v2505
    %v2508 = vmul.f32 %v2506, %v2506
    %v2509 = vsel %vm56, %v2507, 0.0
    %2510 = vadd.xlane.f32.xlu0 %v2509
    %v2511 = vpop.xlane.xlu0 %2510
    %v2512 = vsel %vm56, %v2508, 0.0
    %2513 = vadd.xlane.f32.xlu0 %v2512
    %v2514 = vpop.xlane.xlu0 %2513
    %v2515 = vmul.f32 %v2511, %v63
    %v2516 = vmul.f32 %v2514, %v63
    %v2517 = vadd.f32 %v2515, 1e-12
    %v2518 = vadd.f32 %v2516, 1e-12
    %v2519 = vrsqrt.pop %v2517
    %v2520 = vrsqrt.pop %v2518
    %v2521 = vmul.f32 %v2505, %v2519
    %v2522 = vmul.f32 %v2506, %v2520
    %v2524 = vlaneseq
    %v2525 = vshrl.u32 %v2524, 7
    %v2526 = vsub.s32 0, %v2525
    %v2527 = vrot.slane %v2494, %v2526
    %v2529 = vmul.f32 %v2521, %v2527
    %v2530 = vmul.f32 %v2522, %v2527
    %v2532 = vlaneseq
    %v2533 = vshrl.u32 %v2532, 7
    %v2534 = vsub.s32 0, %v2533
    %v2535 = vrot.slane %v2496, %v2534
    %v2537 = vadd.f32 %v2529, %v2535
    %v2538 = vadd.f32 %v2530, %v2535
    %v2539 = vpack.c.bf16 %v2538, %v2537
    %s2540 = scalar_lea.vmem %s9, 16
    %v2541 = vld [vmem:[%s2540] sm:$0xf]
    %v2542 = vld [vmem:[%s2540 + $0x4] sm:$0xf]
    %v2543 = vld [vmem:[%s2540 + $0x8] sm:$0xf]
    %v2544 = vld [vmem:[%s2540 + $0xc] sm:$0xf]
    %s2545 = scalar_lea.vmem %s10, 1
    %v2546 = vld [vmem:[%s2545] sm:$0x1]
    %v2548 = vlaneseq
    %v2549 = vshrl.u32 %v2548, 7
    %v2550 = vsub.s32 0, %v2549
    %v2551 = vrot.slane %v2546, %v2550
    %v2557 = vunpack.c.l.b16 %v2541
    %v2558 = vunpack.c.l.b16 %v2542
    %v2559 = vunpack.c.l.b16 %v2543
    %v2560 = vunpack.c.l.b16 %v2544
    %v2561 = vpack.c.b16 %v2558, %v2557
    %v2562 = vpack.c.b16 %v2560, %v2559
    %v2566 = vsel %vm56, %v2539, 0
    %2568 = vmatprep.subr.bf16.mxu0 0
    %2569 = vmatpush1.bf16.msra.mxu0 %v2561
    %2570 = vmatprep.subr.bf16.mxu0 0
    %2571 = vmatpush1.bf16.msra.mxu0 %v2562
    %2572 = vmatprep.subr.bf16.mxu0 0
    %2573 = vmatpush1.bf16.msra.mxu0 0
    %2574 = vmatprep.subr.bf16.mxu0 0
    %2575 = vmatpush1.bf16.msra.mxu0 0
    %2576 = vmatprep.subr.bf16.mxu0 0
    %2577 = vmatpush1.bf16.msra.mxu0 0
    %2578 = vmatprep.subr.bf16.mxu0 0
    %2579 = vmatpush1.bf16.msra.mxu0 0
    %2580 = vmatprep.subr.bf16.mxu0 0
    %2581 = vmatpush1.bf16.msra.mxu0 0
    %2582 = vmatprep.subr.bf16.mxu0 0
    %2583 = vmatpush1.bf16.msra.mxu0 0
    %2584 = vmatprep.subr.bf16.mxu0 0
    %2585 = vmatpush1.bf16.msra.mxu0 0
    %2586 = vmatprep.subr.bf16.mxu0 0
    %2587 = vmatpush1.bf16.msra.mxu0 0
    %2588 = vmatprep.subr.bf16.mxu0 0
    %2589 = vmatpush1.bf16.msra.mxu0 0
    %2590 = vmatprep.subr.bf16.mxu0 0
    %2591 = vmatpush1.bf16.msra.mxu0 0
    %2592 = vmatprep.subr.bf16.mxu0 0
    %2593 = vmatpush1.bf16.msra.mxu0 0
    %2594 = vmatprep.subr.bf16.mxu0 0
    %2595 = vmatpush1.bf16.msra.mxu0 0
    %2596 = vmatprep.subr.bf16.mxu0 0
    %2597 = vmatpush1.bf16.msra.mxu0 0
    %2598 = vmatprep.subr.bf16.mxu0 0
    %2599 = vmatpush1.bf16.msra.mxu0 0
    %2600 = vmatprep.mubr.bf16.mxu0 0
    %2601 = vmatmul.mubr.bf16.gmra.mrb[0].mxu0 %v2566
    %v2602 = vpop.f32.mrb[0].mxu0
    %v2603 = vadd.f32 %v2551, %v2602
    %v2604 = vpop.f32.mrb[0].mxu0
    %v2605 = vpop.f32.mrb[0].mxu0
    %v2606 = vadd.f32 %v2551, %v2605
    %v2607 = vpop.f32.mrb[0].mxu0
    %2608 = vdwg.mxu0
    %v2609 = vmul.f32 %v2603, 0.5
    %v2610 = vmul.f32 %v2606, 0.5
    %v2611 = vmul.f32 %v2603, 0.044715
    %v2612 = vmul.f32 %v2606, 0.044715
    %v2613 = vmul.f32 %v2611, %v2603
    %v2614 = vmul.f32 %v2612, %v2606
    %v2615 = vmul.f32 %v2613, %v2603
    %v2616 = vmul.f32 %v2614, %v2606
    %v2617 = vadd.f32 %v2603, %v2615
    %v2618 = vadd.f32 %v2606, %v2616
    %v2619 = vmul.f32 %v2617, 0.7978846
    %v2620 = vmul.f32 %v2618, 0.7978846
    %v2621 = vtanh.pop %v2619
    %v2622 = vtanh.pop %v2620
    %v2623 = vadd.f32 %v2621, 1.0
    %v2624 = vadd.f32 %v2622, 1.0
    %v2625 = vmul.f32 %v2609, %v2623
    %v2626 = vmul.f32 %v2610, %v2624
    %v2627 = vpack.c.bf16 %v2626, %v2625
    %s2628 = scalar_lea.vmem %s11, 32
    %v2629 = vld [vmem:[%s2628] sm:$0xf]
    %v2630 = vld [vmem:[%s2628 + $0x4] sm:$0xf]
    %v2631 = vld [vmem:[%s2628 + $0x8] sm:$0xf]
    %v2632 = vld [vmem:[%s2628 + $0xc] sm:$0xf]
    %v2633 = vld [vmem:[%s2628 + $0x10] sm:$0xf]
    %v2634 = vld [vmem:[%s2628 + $0x14] sm:$0xf]
    %v2635 = vld [vmem:[%s2628 + $0x18] sm:$0xf]
    %v2636 = vld [vmem:[%s2628 + $0x1c] sm:$0xf]
    %s2637 = scalar_lea.vmem %s12, 1
    %v2638 = vld [vmem:[%s2637] sm:$0x1]
    %v2640 = vlaneseq
    %v2641 = vshrl.u32 %v2640, 7
    %v2642 = vsub.s32 0, %v2641
    %v2643 = vrot.slane %v2638, %v2642
    %v2653 = vunpack.c.l.b16 %v2629
    %v2654 = vunpack.c.l.b16 %v2630
    %v2655 = vunpack.c.l.b16 %v2631
    %v2656 = vunpack.c.l.b16 %v2632
    %v2657 = vunpack.c.l.b16 %v2633
    %v2658 = vunpack.c.l.b16 %v2634
    %v2659 = vunpack.c.l.b16 %v2635
    %v2660 = vunpack.c.l.b16 %v2636
    %v2661 = vpack.c.b16 %v2654, %v2653
    %v2662 = vpack.c.b16 %v2656, %v2655
    %v2663 = vpack.c.b16 %v2658, %v2657
    %v2664 = vpack.c.b16 %v2660, %v2659
    %v2670 = vsel %vm1336, %v2627, 0
    %2672 = vmatprep.subr.bf16.mxu0 0
    %2673 = vmatpush1.bf16.msra.mxu0 %v2661
    %2674 = vmatprep.subr.bf16.mxu0 0
    %2675 = vmatpush1.bf16.msra.mxu0 %v2662
    %2676 = vmatprep.subr.bf16.mxu0 0
    %2677 = vmatpush1.bf16.msra.mxu0 %v2663
    %2678 = vmatprep.subr.bf16.mxu0 0
    %2679 = vmatpush1.bf16.msra.mxu0 %v2664
    %2680 = vmatprep.subr.bf16.mxu0 0
    %2681 = vmatpush1.bf16.msra.mxu0 0
    %2682 = vmatprep.subr.bf16.mxu0 0
    %2683 = vmatpush1.bf16.msra.mxu0 0
    %2684 = vmatprep.subr.bf16.mxu0 0
    %2685 = vmatpush1.bf16.msra.mxu0 0
    %2686 = vmatprep.subr.bf16.mxu0 0
    %2687 = vmatpush1.bf16.msra.mxu0 0
    %2688 = vmatprep.subr.bf16.mxu0 0
    %2689 = vmatpush1.bf16.msra.mxu0 0
    %2690 = vmatprep.subr.bf16.mxu0 0
    %2691 = vmatpush1.bf16.msra.mxu0 0
    %2692 = vmatprep.subr.bf16.mxu0 0
    %2693 = vmatpush1.bf16.msra.mxu0 0
    %2694 = vmatprep.subr.bf16.mxu0 0
    %2695 = vmatpush1.bf16.msra.mxu0 0
    %2696 = vmatprep.subr.bf16.mxu0 0
    %2697 = vmatpush1.bf16.msra.mxu0 0
    %2698 = vmatprep.subr.bf16.mxu0 0
    %2699 = vmatpush1.bf16.msra.mxu0 0
    %2700 = vmatprep.subr.bf16.mxu0 0
    %2701 = vmatpush1.bf16.msra.mxu0 0
    %2702 = vmatprep.subr.bf16.mxu0 0
    %2703 = vmatpush1.bf16.msra.mxu0 0
    %2704 = vmatprep.mubr.bf16.mxu0 0
    %2705 = vmatmul.mubr.bf16.gmra.mrb[0].mxu0 %v2670
    %v2706 = vpop.f32.mrb[0].mxu0
    %v2707 = vadd.f32 %v2643, %v2706
    %v2708 = vpop.f32.mrb[0].mxu0
    %v2709 = vpop.f32.mrb[0].mxu0
    %v2710 = vadd.f32 %v2643, %v2709
    %v2711 = vpop.f32.mrb[0].mxu0
    %2712 = vdwg.mxu0
    %v2713 = vadd.f32 %v2537, %v2707
    %v2714 = vadd.f32 %v2538, %v2710
    %s2715 = scalar_lea.vmem %s13, 1
    %v2716 = vld [vmem:[%s2715] sm:$0x1]
    %s2717 = scalar_lea.vmem %s14, 1
    %v2718 = vld [vmem:[%s2717] sm:$0x1]
    %v2719 = vsel %vm56, %v2713, 0.0
    %2720 = vadd.xlane.f32.xlu0 %v2719
    %v2721 = vpop.xlane.xlu0 %2720
    %v2722 = vsel %vm56, %v2714, 0.0
    %2723 = vadd.xlane.f32.xlu0 %v2722
    %v2724 = vpop.xlane.xlu0 %2723
    %v2725 = vmul.f32 %v2721, %v63
    %v2726 = vmul.f32 %v2724, %v63
    %v2727 = vsub.f32 %v2713, %v2725
    %v2728 = vsub.f32 %v2714, %v2726
    %v2729 = vmul.f32 %v2727, %v2727
    %v2730 = vmul.f32 %v2728, %v2728
    %v2731 = vsel %vm56, %v2729, 0.0
    %2732 = vadd.xlane.f32.xlu0 %v2731
    %v2733 = vpop.xlane.xlu0 %2732
    %v2734 = vsel %vm56, %v2730, 0.0
    %2735 = vadd.xlane.f32.xlu0 %v2734
    %v2736 = vpop.xlane.xlu0 %2735
    %v2737 = vmul.f32 %v2733, %v63
    %v2738 = vmul.f32 %v2736, %v63
    %v2739 = vadd.f32 %v2737, 1e-12
    %v2740 = vadd.f32 %v2738, 1e-12
    %v2741 = vrsqrt.pop %v2739
    %v2742 = vrsqrt.pop %v2740
    %v2743 = vmul.f32 %v2727, %v2741
    %v2744 = vmul.f32 %v2728, %v2742
    %v2746 = vlaneseq
    %v2747 = vshrl.u32 %v2746, 7
    %v2748 = vsub.s32 0, %v2747
    %v2749 = vrot.slane %v2716, %v2748
    %v2751 = vmul.f32 %v2743, %v2749
    %v2752 = vmul.f32 %v2744, %v2749
    %v2754 = vlaneseq
    %v2755 = vshrl.u32 %v2754, 7
    %v2756 = vsub.s32 0, %v2755
    %v2757 = vrot.slane %v2718, %v2756
    %v2759 = vadd.f32 %v2751, %v2757
    %v2760 = vadd.f32 %v2752, %v2757
    %v2763 = vrot.slane %v2760, 7
    %vm2764 = vcmask 1041409
    %v2765 = vsel %vm2764, %v2763, %v2759
    %vm2767 = vcmask 254976
    %2768 = vst.msk [vmem:[#allocation2] sm:$0x3] %vm2767, %v2765
    // Predicated region
    $region62: #{bert_cls_forward.1} parent=1 // pred_check
      _
    $region63: #{bert_cls_forward.1} parent=1 // pred_check_branch
      %2770 = sbr.rel (0) target = $region65
    $region64: #{bert_cls_forward.1} parent=1 // pred_region
      %s2772 = ssub.s32 32, 32
      %2773 = vsyncadd [#allocation3], %s2772
      %s2775 = sshll.u32 [#allocation2], 4
      %s2776 = int_to_ptr.vmem [resolvable:$true] %s2775
      %2778 = dma.vmem_to_hbm [thread:$0]  %s2776, 32, %s15, [#allocation3]
    $region65: #{bert_cls_forward.1} parent=1 // pred_fallthru
      _
    // Predicated region
    $region66: #{bert_cls_forward.1} parent=1 // pred_check
      _
    $region67: #{bert_cls_forward.1} parent=1 // pred_check_branch
      %2780 = sbr.rel (0) target = $region69
    $region68: #{bert_cls_forward.1} parent=1 // pred_region
      %2781 = dma.done [#allocation3], 32
    $region69: #{bert_cls_forward.1} parent=1 // pred_fallthru
      _
    %2782 = vsyncpa [#allocation3], 1

</llo_original>
